<compile_context>
chip_gen: v6e
topology: v6e:2x2x1
jax: 0.10.0
libtpu: 0.0.40
codegen_flags: <defaults>
</compile_context>

<pallas_src>
import math
from functools import partial

import jax
import jax.numpy as jnp
from jax import lax
from jax.experimental import pallas as pl
from jax.experimental.pallas import tpu as pltpu

# ---------------- small synthetic config (shapes consistent with PhiMoE) ----------------
HIDDEN = 64
HEADS = 4
KV_HEADS = 2
HEAD_DIM = HIDDEN // HEADS          # 16
FFN = 128                            # intermediate_size
EXPERTS = 4                          # num_local_experts
TOPK = 2                             # num_experts_per_tok
VOCAB = 256
LAYERS = 2
EPS = 1e-5                           # rms_norm_eps (LayerNorm eps in PhiMoE)
ROPE_THETA = 10000.0
ROUTER_JITTER = 0.01                 # router_jitter_noise (deterministic threshold)
# input_jitter_noise == 0 -> no input jitter applied (inference path)
B, S = 2, 8
TOKENS = B * S

Q_SZ = HEADS * HEAD_DIM              # 64
KV_SZ = KV_HEADS * HEAD_DIM          # 32
QKV_OUT = Q_SZ + 2 * KV_SZ           # 128 (lane-dense fused qkv output)

TOK_TILE = 8                         # token block for M-parallel kernels (2 blocks -> 2 v7x TCs)
VOCAB_TILE = 128                     # lm_head vocab tile (unmasked stores + pipelined weight DMA)

# contraction over the shared LAST axis of both operands (q . k^T) -- MXU-native, no vxpose
_DN_LAST = (((1,), (1,)), ((), ()))


def _full_spec(shape):
    # whole-array block for a grid=(1,) call
    n = len(shape)
    return pl.BlockSpec(shape, lambda i, _n=n: (0,) * _n)


# ================================ Pallas kernels ================================

def _ln_qkv_kernel(eps, x_ref, res_ref, g_ref, b_ref, w_ref, wb_ref,
                   res_out_ref, qkv_ref):
    # total = x + residual ; normed = LN(total) ; qkv = normed @ Wqkv + b  (one 128-wide slab)
    total = x_ref[...] + res_ref[...]
    res_out_ref[...] = total
    mean = jnp.mean(total, axis=-1, keepdims=True)
    xc = total - mean
    var = jnp.mean(xc * xc, axis=-1, keepdims=True)
    normed = xc * lax.rsqrt(var + eps) * g_ref[...] + b_ref[...]
    qkv_ref[...] = jnp.dot(normed.astype(jnp.bfloat16), w_ref[...],
                           preferred_element_type=jnp.float32) + wb_ref[...]


def pallas_ln_qkv(x, residual, ln_w, ln_b, w_kn, b):
    M, H = x.shape
    N = w_kn.shape[1]
    res_out, qkv = pl.pallas_call(
        partial(_ln_qkv_kernel, EPS),
        out_shape=(
            jax.ShapeDtypeStruct((M, H), jnp.float32),
            jax.ShapeDtypeStruct((M, N), jnp.float32),
        ),
        grid=(M // TOK_TILE,),
        in_specs=[
            pl.BlockSpec((TOK_TILE, H), lambda i: (i, 0)),
            pl.BlockSpec((TOK_TILE, H), lambda i: (i, 0)),
            pl.BlockSpec((1, H), lambda i: (0, 0)),
            pl.BlockSpec((1, H), lambda i: (0, 0)),
            pl.BlockSpec((H, N), lambda i: (0, 0)),
            pl.BlockSpec((1, N), lambda i: (0, 0)),
        ],
        out_specs=(
            pl.BlockSpec((TOK_TILE, H), lambda i: (i, 0)),
            pl.BlockSpec((TOK_TILE, N), lambda i: (i, 0)),
        ),
        input_output_aliases={1: 0},     # residual buffer reused for res_out
        compiler_params=pltpu.CompilerParams(
            dimension_semantics=("parallel",), vmem_limit_bytes=32 << 20),
    )(x, residual, ln_w.reshape(1, H), ln_b.reshape(1, H), w_kn, b.reshape(1, N))
    return res_out, qkv


def _attn_oproj_ln_gate_kernel(scale, eps, qkv_ref, cos_ref, sin_ref, res_ref,
                               wo_ref, bo_ref, g_ref, b_ref, wg_ref,
                               res_out_ref, normed_ref, logits_ref):
    # RoPE + causal GQA attention for the whole batch, then o_proj -> (+residual) ->
    # post-attention LayerNorm -> router gate.  Everything stays in vregs; each output
    # ref is written exactly once.
    D = HEAD_DIM
    group = HEADS // KV_HEADS
    qkv = qkv_ref[...]                       # [M, 128]
    cos = cos_ref[...]                       # [S, D]
    sin = sin_ref[...]

    # hoisted once (rope() is invoked 6x; JAX does not CSE broadcast_in_dim)
    half_sign = jnp.where(
        lax.broadcasted_iota(jnp.int32, (S, D), 1) < (D // 2),
        jnp.float32(-1.0), jnp.float32(1.0))
    row = lax.broadcasted_iota(jnp.int32, (S, S), 0)
    col = lax.broadcasted_iota(jnp.int32, (S, S), 1)
    causal_g = jnp.concatenate([col <= row] * group, axis=0)   # [group*S, S]

    def rope(x):                              # rotate_half via XLU roll
        return x * cos + (pltpu.roll(x, shift=D // 2, axis=1) * half_sign) * sin

    # TODO(synk): lmdeploy uses a paged KV cache + attn_metadata; with an empty cache this
    # prefill causal attention over the current sequence is equivalent.
    batch_rows = []
    for bb in range(B):
        rows = slice(bb * S, (bb + 1) * S)
        head_cols = []
        for kv in range(KV_HEADS):            # static unroll; K/V roped/loaded once per kv head
            k = rope(qkv[rows, Q_SZ + kv * D: Q_SZ + (kv + 1) * D])              # [S, D]
            v = qkv[rows, Q_SZ + KV_SZ + kv * D: Q_SZ + KV_SZ + (kv + 1) * D]    # [S, D]
            # batch the whole q-group into one score / one PV matmul
            q_g = jnp.concatenate(
                [rope(qkv[rows, (kv * group + g) * D:(kv * group + g + 1) * D])
                 for g in range(group)], axis=0)                                 # [group*S, D]
            s = lax.dot_general(q_g, k, _DN_LAST,
                                preferred_element_type=jnp.float32) * scale      # [group*S, S]
            s = jnp.where(causal_g, s, -jnp.inf)
            p = jnp.exp(s - jnp.max(s, axis=-1, keepdims=True))
            p = p * pl.reciprocal(jnp.sum(p, axis=-1, keepdims=True), approx=True)
            pv = jnp.dot(p, v, preferred_element_type=jnp.float32)               # [group*S, D]
            head_cols.extend(pv[g * S:(g + 1) * S, :] for g in range(group))
        batch_rows.append(jnp.concatenate(head_cols, axis=1))                    # [S, Hq*D]
    attn = jnp.concatenate(batch_rows, axis=0)                                    # [M, Hq*D]

    # TODO(synk): at real PhiMoE sizes tile wo/wg over their output dims with a grid axis
    # so the weight DMA pipelines; at toy sizes they are a few KiB.
    attn_out = jnp.dot(attn.astype(jnp.bfloat16), wo_ref[...],
                       preferred_element_type=jnp.float32) + bo_ref[...]
    total = attn_out + res_ref[...]
    res_out_ref[...] = total
    mean = jnp.mean(total, axis=-1, keepdims=True)
    xc = total - mean
    var = jnp.mean(xc * xc, axis=-1, keepdims=True)
    normed = xc * lax.rsqrt(var + eps) * g_ref[...] + b_ref[...]
    normed_ref[...] = normed
    logits_ref[...] = jnp.dot(normed.astype(jnp.bfloat16), wg_ref[...],
                              preferred_element_type=jnp.float32)


def pallas_attn_oproj_ln_gate(qkv, cos, sin, residual, wo_kn, bo, ln_w, ln_b, wg_kn):
    M, QKVN = qkv.shape
    H = residual.shape[1]
    E = wg_kn.shape[1]
    scale = 1.0 / math.sqrt(HEAD_DIM)
    res_out, normed, logits = pl.pallas_call(
        partial(_attn_oproj_ln_gate_kernel, scale, EPS),
        out_shape=(
            jax.ShapeDtypeStruct((M, H), jnp.float32),
            jax.ShapeDtypeStruct((M, H), jnp.float32),
            jax.ShapeDtypeStruct((M, E), jnp.float32),
        ),
        grid=(1,),
        in_specs=[
            _full_spec((M, QKVN)),
            _full_spec((S, HEAD_DIM)), _full_spec((S, HEAD_DIM)),
            _full_spec((M, H)),
            _full_spec((Q_SZ, H)), _full_spec((1, H)),
            _full_spec((1, H)), _full_spec((1, H)),
            _full_spec((H, E)),
        ],
        out_specs=(_full_spec((M, H)), _full_spec((M, H)), _full_spec((M, E))),
        input_output_aliases={3: 0},     # residual buffer reused for res_out
        compiler_params=pltpu.CompilerParams(
            dimension_semantics=("arbitrary",), vmem_limit_bytes=32 << 20),
    )(qkv, cos, sin, residual, wo_kn, bo.reshape(1, H),
      ln_w.reshape(1, H), ln_b.reshape(1, H), wg_kn)
    return logits, res_out, normed


def _moe_kernel(ffn_dim, hit_ref, x_ref, wgu_ref, wd_ref, cw_ref, o_ref):
    # grid axis = expert id; accumulate weighted expert outputs into the resident o_ref.
    # hit_ref (SMEM, scalar-prefetched) gates experts with no routed tokens.
    e = pl.program_id(0)

    @pl.when(e == 0)
    def _():
        o_ref[...] = jnp.zeros_like(o_ref)

    @pl.when(hit_ref[e] > 0)
    def _():
        x = x_ref[...].astype(jnp.bfloat16)                     # [M, H]
        gu = jnp.dot(x, wgu_ref[0], preferred_element_type=jnp.float32)   # [M, 2F]
        act = jax.nn.silu(gu[:, :ffn_dim]) * gu[:, ffn_dim:]    # silu(gate) * up, f32
        y = jnp.dot(act.astype(jnp.bfloat16), wd_ref[0],
                    preferred_element_type=jnp.float32)          # [M, H]
        o_ref[...] += cw_ref[0] * y                              # cw_ref[0]: [M, 1]


def pallas_moe(x, w_gate_up, w_down, cw_em1, expert_hit):
    # TODO(synk): at real PhiMoE scale, sort tokens by expert and use group offsets in the
    # index_map so un-routed expert weights are never DMA'd; pl.when only skips the compute.
    M, H = x.shape
    E, _, twoF = w_gate_up.shape
    F = twoF // 2
    return pl.pallas_call(
        partial(_moe_kernel, F),
        out_shape=jax.ShapeDtypeStruct((M, H), jnp.float32),
        grid_spec=pltpu.PrefetchScalarGridSpec(
            num_scalar_prefetch=1,
            grid=(E,),
            in_specs=[
                pl.BlockSpec((M, H), lambda e, hit: (0, 0)),
                pl.BlockSpec((1, H, twoF), lambda e, hit: (e, 0, 0)),
                pl.BlockSpec((1, F, H), lambda e, hit: (e, 0, 0)),
                pl.BlockSpec((1, M, 1), lambda e, hit: (e, 0, 0)),
            ],
            out_specs=pl.BlockSpec((M, H), lambda e, hit: (0, 0)),
        ),
        compiler_params=pltpu.CompilerParams(
            dimension_semantics=("arbitrary",), vmem_limit_bytes=32 << 20),
    )(expert_hit, x, w_gate_up, w_down, cw_em1)


def _ln_lm_head_kernel(eps, x_ref, res_ref, g_ref, b_ref, w_ref, wb_ref,
                       hid_ref, logits_ref):
    # final: total = x + residual ; hidden = LN(total) ; logits tile = hidden @ Wlm[:, jV] + b
    total = x_ref[...] + res_ref[...]
    mean = jnp.mean(total, axis=-1, keepdims=True)
    xc = total - mean
    var = jnp.mean(xc * xc, axis=-1, keepdims=True)
    normed = xc * lax.rsqrt(var + eps) * g_ref[...] + b_ref[...]

    @pl.when(pl.program_id(1) == 0)
    def _():
        hid_ref[...] = normed

    logits_ref[...] = jnp.dot(normed.astype(jnp.bfloat16), w_ref[...],
                              preferred_element_type=jnp.float32) + wb_ref[...]


def pallas_ln_lm_head(x, residual, ln_w, ln_b, w_kn, b):
    M, H = x.shape
    N = w_kn.shape[1]
    hidden, logits = pl.pallas_call(
        partial(_ln_lm_head_kernel, EPS),
        out_shape=(
            jax.ShapeDtypeStruct((M, H), jnp.float32),
            jax.ShapeDtypeStruct((M, N), jnp.float32),
        ),
        grid=(M // TOK_TILE, N // VOCAB_TILE),
        in_specs=[
            pl.BlockSpec((TOK_TILE, H), lambda i, j: (i, 0)),
            pl.BlockSpec((TOK_TILE, H), lambda i, j: (i, 0)),
            pl.BlockSpec((1, H), lambda i, j: (0, 0)),
            pl.BlockSpec((1, H), lambda i, j: (0, 0)),
            pl.BlockSpec((H, VOCAB_TILE), lambda i, j: (0, j)),
            pl.BlockSpec((1, VOCAB_TILE), lambda i, j: (0, j)),
        ],
        out_specs=(
            pl.BlockSpec((TOK_TILE, H), lambda i, j: (i, 0)),
            pl.BlockSpec((TOK_TILE, VOCAB_TILE), lambda i, j: (i, j)),
        ),
        compiler_params=pltpu.CompilerParams(
            dimension_semantics=("parallel", "arbitrary"),
            vmem_limit_bytes=32 << 20),
    )(x, residual, ln_w.reshape(1, H), ln_b.reshape(1, H), w_kn, b.reshape(1, N))
    return logits, hidden


# ================================ JAX glue ================================

def sparsemixer_jax(scores, jitter_eps):
    """Exact port of lmdeploy's sparsemixer (top_k == 2, deterministic inference path)."""
    neg_inf = jnp.float32(-jnp.inf)
    # --- expert 1 ---
    max_val = jnp.max(scores, axis=-1, keepdims=True)
    max_ind = jnp.argmax(scores, axis=-1, keepdims=True)
    factor = jnp.maximum(jnp.abs(scores), max_val)
    mask = ((max_val - scores) / factor) > (2.0 * jitter_eps)
    masked_gates = jnp.where(mask, neg_inf, scores)
    masked_gates = jax.nn.softmax(masked_gates, axis=-1)
    mult1 = jnp.take_along_axis(masked_gates, max_ind, axis=-1)
    # --- expert 2 (mask out expert 1) ---
    onehot1 = jnp.arange(scores.shape[-1])[None, :] == max_ind
    masked_scores = jnp.where(onehot1, neg_inf, scores)
    max_val2 = jnp.max(masked_scores, axis=-1, keepdims=True)
    max_ind2 = jnp.argmax(masked_scores, axis=-1, keepdims=True)
    factor2 = jnp.maximum(jnp.abs(scores), max_val2)
    mask2 = ((max_val2 - scores) / factor2) > (2.0 * jitter_eps)
    masked_gates2 = jnp.where(mask2, neg_inf, masked_scores)
    masked_gates2 = jax.nn.softmax(masked_gates2, axis=-1)
    mult2 = jnp.take_along_axis(masked_gates2, max_ind2, axis=-1)

    multiplier = jnp.concatenate([mult1, mult2], axis=-1)          # [M, 2]
    selected = jnp.concatenate([max_ind, max_ind2], axis=-1)       # [M, 2]
    return multiplier, selected


def make_rope(positions, head_dim, base):
    inv_freq = 1.0 / (base ** (jnp.arange(0, head_dim, 2, dtype=jnp.float32) / head_dim))
    freqs = positions.astype(jnp.float32)[:, None] * inv_freq[None, :]   # [S, D/2]
    emb = jnp.concatenate([freqs, freqs], axis=-1)                       # [S, D]
    return jnp.cos(emb), jnp.sin(emb)


def decoder_layer(h, residual, cos, sin, lp):
    # fused: input_layernorm (+residual) -> qkv proj (single 128-wide slab)
    residual, qkv = pallas_ln_qkv(h, residual, lp["ln_in_w"], lp["ln_in_b"],
                                  lp["qkv_w"], lp["qkv_b"])
    # fused: RoPE + causal GQA attention + o_proj + post_attention_layernorm (+residual) + gate
    router_logits, residual, normed2 = pallas_attn_oproj_ln_gate(
        qkv, cos, sin, residual, lp["o_w"], lp["o_b"],
        lp["ln_post_w"], lp["ln_post_b"], lp["gate_w"])
    # sparsemixer routing (tiny [M, E] math) stays in plain JAX
    topk_w, topk_i = sparsemixer_jax(router_logits, ROUTER_JITTER)
    onehot = jax.nn.one_hot(topk_i, EXPERTS, dtype=jnp.float32)      # [M, K, E]
    cw_me = jnp.sum(topk_w[:, :, None] * onehot, axis=1)             # [M, E] (renormalize=False)
    cw_em1 = cw_me.T.reshape(EXPERTS, TOKENS, 1)                     # [E, M, 1] per-expert rows
    expert_hit = jnp.any(topk_i[:, :, None] == jnp.arange(EXPERTS)[None, None, :],
                         axis=(0, 1)).astype(jnp.int32)              # [E] scalar-prefetch flags
    moe_out = pallas_moe(normed2, lp["exp_gu_w"], lp["exp_down_w"], cw_em1, expert_hit)
    return moe_out, residual


def forward(params, input_ids, position_ids):
    bsz, seq = input_ids.shape
    x = jnp.take(params["embed"], input_ids.reshape(-1), axis=0)        # [M, H]
    # Reference model uses cos[0]/sin[0]: a single [S, D] table shared across the batch.
    cos, sin = make_rope(position_ids[0], HEAD_DIM, ROPE_THETA)
    residual = jnp.zeros_like(x)
    h = x
    for lp in params["layers"]:
        h, residual = decoder_layer(h, residual, cos, sin, lp)
    # fused: final norm (+residual) -> lm_head (tiled over M and VOCAB)
    logits, hidden = pallas_ln_lm_head(h, residual, params["norm_w"], params["norm_b"],
                                       params["lm_head_w"], params["lm_head_b"])
    return hidden.reshape(bsz, seq, HIDDEN), logits.reshape(bsz, seq, VOCAB)


# ================================ params ================================

def init_params(key):
    # Weights are stored pre-transposed to [in, out] (one-time host transpose of the torch
    # [out, in] layout -> no in-kernel relayout) and in bfloat16 to halve weight DMA bytes.
    def norm(k, shape, dtype=jnp.float32, scale=0.02):
        return (scale * jax.random.normal(k, shape, dtype=jnp.float32)).astype(dtype)

    keys = jax.random.split(key, 4 + LAYERS)
    params = {
        "embed": norm(keys[0], (VOCAB, HIDDEN)),
        "norm_w": jnp.ones((HIDDEN,), jnp.float32),
        "norm_b": jnp.zeros((HIDDEN,), jnp.float32),
        "lm_head_w": norm(keys[1], (HIDDEN, VOCAB), jnp.bfloat16),
        "lm_head_b": norm(keys[2], (VOCAB,)),
        "layers": [],
    }
    for li in range(LAYERS):
        lk = jax.random.split(keys[4 + li], 8)
        lp = {
            "ln_in_w": jnp.ones((HIDDEN,), jnp.float32),
            "ln_in_b": jnp.zeros((HIDDEN,), jnp.float32),
            "ln_post_w": jnp.ones((HIDDEN,), jnp.float32),
            "ln_post_b": jnp.zeros((HIDDEN,), jnp.float32),
            "qkv_w": norm(lk[0], (HIDDEN, QKV_OUT), jnp.bfloat16),
            "qkv_b": norm(lk[1], (QKV_OUT,)),
            "o_w": norm(lk[2], (Q_SZ, HIDDEN), jnp.bfloat16),
            "o_b": norm(lk[3], (HIDDEN,)),
            "gate_w": norm(lk[4], (HIDDEN, EXPERTS), jnp.bfloat16),
            "exp_gu_w": norm(lk[5], (EXPERTS, HIDDEN, 2 * FFN), jnp.bfloat16),
            "exp_down_w": norm(lk[6], (EXPERTS, FFN, HIDDEN), jnp.bfloat16),
        }
        params["layers"].append(lp)
    return params


if __name__ == "__main__":
    root = jax.random.PRNGKey(0)
    pkey, ikey = jax.random.split(root)
    params = init_params(pkey)
    input_ids = jax.random.randint(ikey, (B, S), 0, VOCAB)
    position_ids = jnp.broadcast_to(jnp.arange(S, dtype=jnp.int32), (B, S))

    fwd = jax.jit(forward)
    hidden_states, logits = fwd(params, input_ids, position_ids)
    jax.block_until_ready((hidden_states, logits))

    assert hidden_states.shape == (B, S, HIDDEN)
    assert logits.shape == (B, S, VOCAB)
    assert bool(jnp.all(jnp.isfinite(hidden_states))) and bool(jnp.all(jnp.isfinite(logits)))
    print("KERNEL_OK")
</pallas_src>

<mosaic_0001>
module attributes {stable_mosaic.version = 11 : i64} {
  func.func @_ln_qkv_kernel(%arg0: i32, %arg1: memref<8x64xf32, #tpu.memory_space<vmem>>, %arg2: memref<8x64xf32, #tpu.memory_space<vmem>>, %arg3: memref<1x64xf32, #tpu.memory_space<vmem>>, %arg4: memref<1x64xf32, #tpu.memory_space<vmem>>, %arg5: memref<64x128xbf16, #tpu.memory_space<vmem>>, %arg6: memref<1x128xf32, #tpu.memory_space<vmem>>, %arg7: memref<8x64xf32, #tpu.memory_space<vmem>>, %arg8: memref<8x128xf32, #tpu.memory_space<vmem>>) attributes {dimension_semantics = [#tpu.dimension_semantics<parallel>], iteration_bounds = array<i64: 2>, scalar_prefetch = 0 : i64, scratch_operands = 0 : i64, tpu.core_type = #tpu.core_type<tc>, window_params = [{transform_indices = @transform_0, window_bounds = array<i64: 8, 64>}, {transform_indices = @transform_1, window_bounds = array<i64: 8, 64>}, {pipeline_mode = #tpu.pipeline_mode<synchronous>, transform_indices = @transform_2, window_bounds = array<i64: 1, 64>}, {pipeline_mode = #tpu.pipeline_mode<synchronous>, transform_indices = @transform_3, window_bounds = array<i64: 1, 64>}, {pipeline_mode = #tpu.pipeline_mode<synchronous>, transform_indices = @transform_4, window_bounds = array<i64: 64, 128>}, {pipeline_mode = #tpu.pipeline_mode<synchronous>, transform_indices = @transform_5, window_bounds = array<i64: 1, 128>}, {transform_indices = @transform_6, window_bounds = array<i64: 8, 64>}, {transform_indices = @transform_7, window_bounds = array<i64: 8, 128>}]} {
    %c0 = arith.constant 0 : index
    %c0_0 = arith.constant 0 : index
    %0 = vector.load %arg1[%c0, %c0_0] : memref<8x64xf32, #tpu.memory_space<vmem>>, vector<8x64xf32>
    %c0_1 = arith.constant 0 : index
    %c0_2 = arith.constant 0 : index
    %1 = vector.load %arg2[%c0_1, %c0_2] : memref<8x64xf32, #tpu.memory_space<vmem>>, vector<8x64xf32>
    %2 = arith.addf %0, %1 : vector<8x64xf32>
    %c0_3 = arith.constant 0 : index
    %c0_4 = arith.constant 0 : index
    %3 = vector.load %arg7[%c0_3, %c0_4] : memref<8x64xf32, #tpu.memory_space<vmem>>, vector<8x64xf32>
    tpu.vector_store %arg7[%c0_3, %c0_4], %2 {strides = array<i32>} : memref<8x64xf32, #tpu.memory_space<vmem>>, vector<8x64xf32>,
    %cst = arith.constant dense<0.000000e+00> : vector<8xf32>
    %4 = vector.multi_reduction <add>, %2, %cst [1] : vector<8x64xf32> to vector<8xf32>
    %5 = vector.shape_cast %4 : vector<8xf32> to vector<8x1xf32>
    %cst_5 = arith.constant 6.400000e+01 : f32
    %6 = vector.broadcast %cst_5 : f32 to vector<8x1xf32>
    %7 = arith.divf %5, %6 : vector<8x1xf32>
    %8 = vector.broadcast %7 : vector<8x1xf32> to vector<8x64xf32>
    %9 = arith.subf %2, %8 : vector<8x64xf32>
    %10 = arith.mulf %9, %9 : vector<8x64xf32>
    %cst_6 = arith.constant dense<0.000000e+00> : vector<8xf32>
    %11 = vector.multi_reduction <add>, %10, %cst_6 [1] : vector<8x64xf32> to vector<8xf32>
    %12 = vector.shape_cast %11 : vector<8xf32> to vector<8x1xf32>
    %cst_7 = arith.constant 6.400000e+01 : f32
    %13 = vector.broadcast %cst_7 : f32 to vector<8x1xf32>
    %14 = arith.divf %12, %13 : vector<8x1xf32>
    %cst_8 = arith.constant 9.99999974E-6 : f32
    %15 = vector.broadcast %cst_8 : f32 to vector<8x1xf32>
    %16 = arith.addf %14, %15 : vector<8x1xf32>
    %17 = math.rsqrt %16 : vector<8x1xf32>
    %18 = vector.broadcast %17 : vector<8x1xf32> to vector<8x64xf32>
    %19 = arith.mulf %9, %18 : vector<8x64xf32>
    %c0_9 = arith.constant 0 : index
    %c0_10 = arith.constant 0 : index
    %20 = vector.load %arg3[%c0_9, %c0_10] : memref<1x64xf32, #tpu.memory_space<vmem>>, vector<1x64xf32>
    %21 = vector.broadcast %20 : vector<1x64xf32> to vector<8x64xf32>
    %22 = arith.mulf %19, %21 : vector<8x64xf32>
    %c0_11 = arith.constant 0 : index
    %c0_12 = arith.constant 0 : index
    %23 = vector.load %arg4[%c0_11, %c0_12] : memref<1x64xf32, #tpu.memory_space<vmem>>, vector<1x64xf32>
    %24 = vector.broadcast %23 : vector<1x64xf32> to vector<8x64xf32>
    %25 = arith.addf %22, %24 : vector<8x64xf32>
    %26 = arith.truncf %25 : vector<8x64xf32> to vector<8x64xbf16>
    %c0_13 = arith.constant 0 : index
    %c0_14 = arith.constant 0 : index
    %27 = vector.load %arg5[%c0_13, %c0_14] : memref<64x128xbf16, #tpu.memory_space<vmem>>, vector<64x128xbf16>
    %cst_15 = arith.constant dense<0.000000e+00> : vector<8x128xf32>
    %28 = tpu.matmul %26, %27, %cst_15 {dimension_numbers = #tpu.dot_dimension_numbers<[1], [0], [0], [1], [0, 0, 1, 1], [], []>} : vector<8x64xbf16>, vector<64x128xbf16>, vector<8x128xf32> -> vector<8x128xf32>
    %c0_16 = arith.constant 0 : index
    %c0_17 = arith.constant 0 : index
    %29 = vector.load %arg6[%c0_16, %c0_17] : memref<1x128xf32, #tpu.memory_space<vmem>>, vector<1x128xf32>
    %30 = vector.broadcast %29 : vector<1x128xf32> to vector<8x128xf32>
    %31 = arith.addf %28, %30 : vector<8x128xf32>
    %c0_18 = arith.constant 0 : index
    %c0_19 = arith.constant 0 : index
    %32 = vector.load %arg8[%c0_18, %c0_19] : memref<8x128xf32, #tpu.memory_space<vmem>>, vector<8x128xf32>
    tpu.vector_store %arg8[%c0_18, %c0_19], %31 {strides = array<i32>} : memref<8x128xf32, #tpu.memory_space<vmem>>, vector<8x128xf32>,
    return
  }
  func.func @transform_0(%arg0: i32) -> (i32, i32) {
    %c0_i32 = arith.constant 0 : i32
    %c0_i32_0 = arith.constant 0 : i32
    return %arg0, %c0_i32 : i32, i32
  }
  func.func @transform_1(%arg0: i32) -> (i32, i32) {
    %c0_i32 = arith.constant 0 : i32
    %c0_i32_0 = arith.constant 0 : i32
    return %arg0, %c0_i32 : i32, i32
  }
  func.func @transform_2(%arg0: i32) -> (i32, i32) {
    %c0_i32 = arith.constant 0 : i32
    %c0_i32_0 = arith.constant 0 : i32
    %c0_i32_1 = arith.constant 0 : i32
    return %c0_i32, %c0_i32_0 : i32, i32
  }
  func.func @transform_3(%arg0: i32) -> (i32, i32) {
    %c0_i32 = arith.constant 0 : i32
    %c0_i32_0 = arith.constant 0 : i32
    %c0_i32_1 = arith.constant 0 : i32
    return %c0_i32, %c0_i32_0 : i32, i32
  }
  func.func @transform_4(%arg0: i32) -> (i32, i32) {
    %c0_i32 = arith.constant 0 : i32
    %c0_i32_0 = arith.constant 0 : i32
    %c0_i32_1 = arith.constant 0 : i32
    return %c0_i32, %c0_i32_0 : i32, i32
  }
  func.func @transform_5(%arg0: i32) -> (i32, i32) {
    %c0_i32 = arith.constant 0 : i32
    %c0_i32_0 = arith.constant 0 : i32
    %c0_i32_1 = arith.constant 0 : i32
    return %c0_i32, %c0_i32_0 : i32, i32
  }
  func.func @transform_6(%arg0: i32) -> (i32, i32) {
    %c0_i32 = arith.constant 0 : i32
    %c0_i32_0 = arith.constant 0 : i32
    return %arg0, %c0_i32 : i32, i32
  }
  func.func @transform_7(%arg0: i32) -> (i32, i32) {
    %c0_i32 = arith.constant 0 : i32
    %c0_i32_0 = arith.constant 0 : i32
    return %arg0, %c0_i32 : i32, i32
  }
}

module attributes {stable_mosaic.version = 11 : i64} {
  func.func @_attn_oproj_ln_gate_kernel(%arg0: i32, %arg1: memref<16x128xf32, #tpu.memory_space<vmem>>, %arg2: memref<8x16xf32, #tpu.memory_space<vmem>>, %arg3: memref<8x16xf32, #tpu.memory_space<vmem>>, %arg4: memref<16x64xf32, #tpu.memory_space<vmem>>, %arg5: memref<64x64xbf16, #tpu.memory_space<vmem>>, %arg6: memref<1x64xf32, #tpu.memory_space<vmem>>, %arg7: memref<1x64xf32, #tpu.memory_space<vmem>>, %arg8: memref<1x64xf32, #tpu.memory_space<vmem>>, %arg9: memref<64x4xbf16, #tpu.memory_space<vmem>>, %arg10: memref<16x64xf32, #tpu.memory_space<vmem>>, %arg11: memref<16x64xf32, #tpu.memory_space<vmem>>, %arg12: memref<16x4xf32, #tpu.memory_space<vmem>>) attributes {dimension_semantics = [#tpu.dimension_semantics<arbitrary>], iteration_bounds = array<i64: 1>, scalar_prefetch = 0 : i64, scratch_operands = 0 : i64, tpu.core_type = #tpu.core_type<tc>, window_params = [{pipeline_mode = #tpu.pipeline_mode<synchronous>, transform_indices = @transform_0, window_bounds = array<i64: 16, 128>}, {pipeline_mode = #tpu.pipeline_mode<synchronous>, transform_indices = @transform_1, window_bounds = array<i64: 8, 16>}, {pipeline_mode = #tpu.pipeline_mode<synchronous>, transform_indices = @transform_2, window_bounds = array<i64: 8, 16>}, {pipeline_mode = #tpu.pipeline_mode<synchronous>, transform_indices = @transform_3, window_bounds = array<i64: 16, 64>}, {pipeline_mode = #tpu.pipeline_mode<synchronous>, transform_indices = @transform_4, window_bounds = array<i64: 64, 64>}, {pipeline_mode = #tpu.pipeline_mode<synchronous>, transform_indices = @transform_5, window_bounds = array<i64: 1, 64>}, {pipeline_mode = #tpu.pipeline_mode<synchronous>, transform_indices = @transform_6, window_bounds = array<i64: 1, 64>}, {pipeline_mode = #tpu.pipeline_mode<synchronous>, transform_indices = @transform_7, window_bounds = array<i64: 1, 64>}, {pipeline_mode = #tpu.pipeline_mode<synchronous>, transform_indices = @transform_8, window_bounds = array<i64: 64, 4>}, {pipeline_mode = #tpu.pipeline_mode<synchronous>, transform_indices = @transform_9, window_bounds = array<i64: 16, 64>}, {pipeline_mode = #tpu.pipeline_mode<synchronous>, transform_indices = @transform_10, window_bounds = array<i64: 16, 64>}, {pipeline_mode = #tpu.pipeline_mode<synchronous>, transform_indices = @transform_11, window_bounds = array<i64: 16, 4>}]} {
    %c0 = arith.constant 0 : index
    %c0_0 = arith.constant 0 : index
    %0 = vector.load %arg1[%c0, %c0_0] : memref<16x128xf32, #tpu.memory_space<vmem>>, vector<16x128xf32>
    %c0_1 = arith.constant 0 : index
    %c0_2 = arith.constant 0 : index
    %1 = vector.load %arg2[%c0_1, %c0_2] : memref<8x16xf32, #tpu.memory_space<vmem>>, vector<8x16xf32>
    %c0_3 = arith.constant 0 : index
    %c0_4 = arith.constant 0 : index
    %2 = vector.load %arg3[%c0_3, %c0_4] : memref<8x16xf32, #tpu.memory_space<vmem>>, vector<8x16xf32>
    %3 = tpu.iota {dimensions = array<i32: 1>} : vector<8x16xi32>
    %c8_i32 = arith.constant 8 : i32
    %4 = vector.broadcast %c8_i32 : i32 to vector<8x16xi32>
    %5 = arith.cmpi slt, %3, %4 : vector<8x16xi32>
    %cst = arith.constant -1.000000e+00 : f32
    %cst_5 = arith.constant 1.000000e+00 : f32
    %6 = vector.broadcast %cst : f32 to vector<8x16xf32>
    %7 = vector.broadcast %cst_5 : f32 to vector<8x16xf32>
    %8 = arith.select %5, %6, %7 : vector<8x16xi1>, vector<8x16xf32>
    %9 = tpu.iota {dimensions = array<i32: 0>} : vector<8x8xi32>
    %10 = tpu.iota {dimensions = array<i32: 1>} : vector<8x8xi32>
    %11 = arith.cmpi sle, %10, %9 : vector<8x8xi32>
    %12 = tpu.concatenate %11, %11 in 0 : vector<8x8xi1>, vector<8x8xi1> -> vector<16x8xi1>
    %13 = vector.extract_strided_slice %0 {offsets = [0, 64], sizes = [8, 16], strides = [1, 1]} : vector<16x128xf32> to vector<8x16xf32>
    %14 = arith.mulf %13, %1 : vector<8x16xf32>
    %c8_i32_6 = arith.constant 8 : i32
    %15 = tpu.dynamic_rotate %13 by %c8_i32_6 dim 1 : vector<8x16xf32>, i32 -> vector<8x16xf32>
    %16 = arith.mulf %15, %8 : vector<8x16xf32>
    %17 = arith.mulf %16, %2 : vector<8x16xf32>
    %18 = arith.addf %14, %17 : vector<8x16xf32>
    %19 = vector.extract_strided_slice %0 {offsets = [0, 96], sizes = [8, 16], strides = [1, 1]} : vector<16x128xf32> to vector<8x16xf32>
    %20 = vector.extract_strided_slice %0 {offsets = [0, 0], sizes = [8, 16], strides = [1, 1]} : vector<16x128xf32> to vector<8x16xf32>
    %21 = arith.mulf %20, %1 : vector<8x16xf32>
    %c8_i32_7 = arith.constant 8 : i32
    %22 = tpu.dynamic_rotate %20 by %c8_i32_7 dim 1 : vector<8x16xf32>, i32 -> vector<8x16xf32>
    %23 = arith.mulf %22, %8 : vector<8x16xf32>
    %24 = arith.mulf %23, %2 : vector<8x16xf32>
    %25 = arith.addf %21, %24 : vector<8x16xf32>
    %26 = vector.extract_strided_slice %0 {offsets = [0, 16], sizes = [8, 16], strides = [1, 1]} : vector<16x128xf32> to vector<8x16xf32>
    %27 = arith.mulf %26, %1 : vector<8x16xf32>
    %c8_i32_8 = arith.constant 8 : i32
    %28 = tpu.dynamic_rotate %26 by %c8_i32_8 dim 1 : vector<8x16xf32>, i32 -> vector<8x16xf32>
    %29 = arith.mulf %28, %8 : vector<8x16xf32>
    %30 = arith.mulf %29, %2 : vector<8x16xf32>
    %31 = arith.addf %27, %30 : vector<8x16xf32>
    %32 = tpu.concatenate %25, %31 in 0 : vector<8x16xf32>, vector<8x16xf32> -> vector<16x16xf32>
    %cst_9 = arith.constant dense<0.000000e+00> : vector<16x8xf32>
    %33 = tpu.matmul %32, %18, %cst_9 {dimension_numbers = #tpu.dot_dimension_numbers<[1], [1], [0], [0], [0, 0, 1, 0], [], []>} : vector<16x16xf32>, vector<8x16xf32>, vector<16x8xf32> -> vector<16x8xf32>
    %cst_10 = arith.constant 2.500000e-01 : f32
    %34 = vector.broadcast %cst_10 : f32 to vector<16x8xf32>
    %35 = arith.mulf %33, %34 : vector<16x8xf32>
    %cst_11 = arith.constant 0xFF800000 : f32
    %36 = vector.broadcast %cst_11 : f32 to vector<16x8xf32>
    %37 = arith.select %12, %35, %36 : vector<16x8xi1>, vector<16x8xf32>
    %cst_12 = arith.constant dense<0xFF800000> : vector<16xf32>
    %38 = vector.multi_reduction <maximumf>, %37, %cst_12 [1] : vector<16x8xf32> to vector<16xf32>
    %39 = vector.shape_cast %38 : vector<16xf32> to vector<16x1xf32>
    %40 = vector.broadcast %39 : vector<16x1xf32> to vector<16x8xf32>
    %41 = arith.subf %37, %40 : vector<16x8xf32>
    %42 = math.exp %41 : vector<16x8xf32>
    %cst_13 = arith.constant dense<0.000000e+00> : vector<16xf32>
    %43 = vector.multi_reduction <add>, %42, %cst_13 [1] : vector<16x8xf32> to vector<16xf32>
    %44 = vector.shape_cast %43 : vector<16xf32> to vector<16x1xf32>
    %45 = tpu.reciprocal %44 {approx = true} : vector<16x1xf32> -> vector<16x1xf32>
    %46 = vector.broadcast %45 : vector<16x1xf32> to vector<16x8xf32>
    %47 = arith.mulf %42, %46 : vector<16x8xf32>
    %cst_14 = arith.constant dense<0.000000e+00> : vector<16x16xf32>
    %48 = tpu.matmul %47, %19, %cst_14 {dimension_numbers = #tpu.dot_dimension_numbers<[1], [0], [0], [1], [0, 0, 1, 1], [], []>} : vector<16x8xf32>, vector<8x16xf32>, vector<16x16xf32> -> vector<16x16xf32>
    %49 = vector.extract_strided_slice %48 {offsets = [0, 0], sizes = [8, 16], strides = [1, 1]} : vector<16x16xf32> to vector<8x16xf32>
    %50 = vector.extract_strided_slice %48 {offsets = [8, 0], sizes = [8, 16], strides = [1, 1]} : vector<16x16xf32> to vector<8x16xf32>
    %51 = vector.extract_strided_slice %0 {offsets = [0, 80], sizes = [8, 16], strides = [1, 1]} : vector<16x128xf32> to vector<8x16xf32>
    %52 = arith.mulf %51, %1 : vector<8x16xf32>
    %c8_i32_15 = arith.constant 8 : i32
    %53 = tpu.dynamic_rotate %51 by %c8_i32_15 dim 1 : vector<8x16xf32>, i32 -> vector<8x16xf32>
    %54 = arith.mulf %53, %8 : vector<8x16xf32>
    %55 = arith.mulf %54, %2 : vector<8x16xf32>
    %56 = arith.addf %52, %55 : vector<8x16xf32>
    %57 = vector.extract_strided_slice %0 {offsets = [0, 112], sizes = [8, 16], strides = [1, 1]} : vector<16x128xf32> to vector<8x16xf32>
    %58 = vector.extract_strided_slice %0 {offsets = [0, 32], sizes = [8, 16], strides = [1, 1]} : vector<16x128xf32> to vector<8x16xf32>
    %59 = arith.mulf %58, %1 : vector<8x16xf32>
    %c8_i32_16 = arith.constant 8 : i32
    %60 = tpu.dynamic_rotate %58 by %c8_i32_16 dim 1 : vector<8x16xf32>, i32 -> vector<8x16xf32>
    %61 = arith.mulf %60, %8 : vector<8x16xf32>
    %62 = arith.mulf %61, %2 : vector<8x16xf32>
    %63 = arith.addf %59, %62 : vector<8x16xf32>
    %64 = vector.extract_strided_slice %0 {offsets = [0, 48], sizes = [8, 16], strides = [1, 1]} : vector<16x128xf32> to vector<8x16xf32>
    %65 = arith.mulf %64, %1 : vector<8x16xf32>
    %c8_i32_17 = arith.constant 8 : i32
    %66 = tpu.dynamic_rotate %64 by %c8_i32_17 dim 1 : vector<8x16xf32>, i32 -> vector<8x16xf32>
    %67 = arith.mulf %66, %8 : vector<8x16xf32>
    %68 = arith.mulf %67, %2 : vector<8x16xf32>
    %69 = arith.addf %65, %68 : vector<8x16xf32>
    %70 = tpu.concatenate %63, %69 in 0 : vector<8x16xf32>, vector<8x16xf32> -> vector<16x16xf32>
    %cst_18 = arith.constant dense<0.000000e+00> : vector<16x8xf32>
    %71 = tpu.matmul %70, %56, %cst_18 {dimension_numbers = #tpu.dot_dimension_numbers<[1], [1], [0], [0], [0, 0, 1, 0], [], []>} : vector<16x16xf32>, vector<8x16xf32>, vector<16x8xf32> -> vector<16x8xf32>
    %cst_19 = arith.constant 2.500000e-01 : f32
    %72 = vector.broadcast %cst_19 : f32 to vector<16x8xf32>
    %73 = arith.mulf %71, %72 : vector<16x8xf32>
    %cst_20 = arith.constant 0xFF800000 : f32
    %74 = vector.broadcast %cst_20 : f32 to vector<16x8xf32>
    %75 = arith.select %12, %73, %74 : vector<16x8xi1>, vector<16x8xf32>
    %cst_21 = arith.constant dense<0xFF800000> : vector<16xf32>
    %76 = vector.multi_reduction <maximumf>, %75, %cst_21 [1] : vector<16x8xf32> to vector<16xf32>
    %77 = vector.shape_cast %76 : vector<16xf32> to vector<16x1xf32>
    %78 = vector.broadcast %77 : vector<16x1xf32> to vector<16x8xf32>
    %79 = arith.subf %75, %78 : vector<16x8xf32>
    %80 = math.exp %79 : vector<16x8xf32>
    %cst_22 = arith.constant dense<0.000000e+00> : vector<16xf32>
    %81 = vector.multi_reduction <add>, %80, %cst_22 [1] : vector<16x8xf32> to vector<16xf32>
    %82 = vector.shape_cast %81 : vector<16xf32> to vector<16x1xf32>
    %83 = tpu.reciprocal %82 {approx = true} : vector<16x1xf32> -> vector<16x1xf32>
    %84 = vector.broadcast %83 : vector<16x1xf32> to vector<16x8xf32>
    %85 = arith.mulf %80, %84 : vector<16x8xf32>
    %cst_23 = arith.constant dense<0.000000e+00> : vector<16x16xf32>
    %86 = tpu.matmul %85, %57, %cst_23 {dimension_numbers = #tpu.dot_dimension_numbers<[1], [0], [0], [1], [0, 0, 1, 1], [], []>} : vector<16x8xf32>, vector<8x16xf32>, vector<16x16xf32> -> vector<16x16xf32>
    %87 = vector.extract_strided_slice %86 {offsets = [0, 0], sizes = [8, 16], strides = [1, 1]} : vector<16x16xf32> to vector<8x16xf32>
    %88 = vector.extract_strided_slice %86 {offsets = [8, 0], sizes = [8, 16], strides = [1, 1]} : vector<16x16xf32> to vector<8x16xf32>
    %89 = tpu.concatenate %49, %50, %87, %88 in 1 : vector<8x16xf32>, vector<8x16xf32>, vector<8x16xf32>, vector<8x16xf32> -> vector<8x64xf32>
    %90 = vector.extract_strided_slice %0 {offsets = [8, 64], sizes = [8, 16], strides = [1, 1]} : vector<16x128xf32> to vector<8x16xf32>
    %91 = arith.mulf %90, %1 : vector<8x16xf32>
    %c8_i32_24 = arith.constant 8 : i32
    %92 = tpu.dynamic_rotate %90 by %c8_i32_24 dim 1 : vector<8x16xf32>, i32 -> vector<8x16xf32>
    %93 = arith.mulf %92, %8 : vector<8x16xf32>
    %94 = arith.mulf %93, %2 : vector<8x16xf32>
    %95 = arith.addf %91, %94 : vector<8x16xf32>
    %96 = vector.extract_strided_slice %0 {offsets = [8, 96], sizes = [8, 16], strides = [1, 1]} : vector<16x128xf32> to vector<8x16xf32>
    %97 = vector.extract_strided_slice %0 {offsets = [8, 0], sizes = [8, 16], strides = [1, 1]} : vector<16x128xf32> to vector<8x16xf32>
    %98 = arith.mulf %97, %1 : vector<8x16xf32>
    %c8_i32_25 = arith.constant 8 : i32
    %99 = tpu.dynamic_rotate %97 by %c8_i32_25 dim 1 : vector<8x16xf32>, i32 -> vector<8x16xf32>
    %100 = arith.mulf %99, %8 : vector<8x16xf32>
    %101 = arith.mulf %100, %2 : vector<8x16xf32>
    %102 = arith.addf %98, %101 : vector<8x16xf32>
    %103 = vector.extract_strided_slice %0 {offsets = [8, 16], sizes = [8, 16], strides = [1, 1]} : vector<16x128xf32> to vector<8x16xf32>
    %104 = arith.mulf %103, %1 : vector<8x16xf32>
    %c8_i32_26 = arith.constant 8 : i32
    %105 = tpu.dynamic_rotate %103 by %c8_i32_26 dim 1 : vector<8x16xf32>, i32 -> vector<8x16xf32>
    %106 = arith.mulf %105, %8 : vector<8x16xf32>
    %107 = arith.mulf %106, %2 : vector<8x16xf32>
    %108 = arith.addf %104, %107 : vector<8x16xf32>
    %109 = tpu.concatenate %102, %108 in 0 : vector<8x16xf32>, vector<8x16xf32> -> vector<16x16xf32>
    %cst_27 = arith.constant dense<0.000000e+00> : vector<16x8xf32>
    %110 = tpu.matmul %109, %95, %cst_27 {dimension_numbers = #tpu.dot_dimension_numbers<[1], [1], [0], [0], [0, 0, 1, 0], [], []>} : vector<16x16xf32>, vector<8x16xf32>, vector<16x8xf32> -> vector<16x8xf32>
    %cst_28 = arith.constant 2.500000e-01 : f32
    %111 = vector.broadcast %cst_28 : f32 to vector<16x8xf32>
    %112 = arith.mulf %110, %111 : vector<16x8xf32>
    %cst_29 = arith.constant 0xFF800000 : f32
    %113 = vector.broadcast %cst_29 : f32 to vector<16x8xf32>
    %114 = arith.select %12, %112, %113 : vector<16x8xi1>, vector<16x8xf32>
    %cst_30 = arith.constant dense<0xFF800000> : vector<16xf32>
    %115 = vector.multi_reduction <maximumf>, %114, %cst_30 [1] : vector<16x8xf32> to vector<16xf32>
    %116 = vector.shape_cast %115 : vector<16xf32> to vector<16x1xf32>
    %117 = vector.broadcast %116 : vector<16x1xf32> to vector<16x8xf32>
    %118 = arith.subf %114, %117 : vector<16x8xf32>
    %119 = math.exp %118 : vector<16x8xf32>
    %cst_31 = arith.constant dense<0.000000e+00> : vector<16xf32>
    %120 = vector.multi_reduction <add>, %119, %cst_31 [1] : vector<16x8xf32> to vector<16xf32>
    %121 = vector.shape_cast %120 : vector<16xf32> to vector<16x1xf32>
    %122 = tpu.reciprocal %121 {approx = true} : vector<16x1xf32> -> vector<16x1xf32>
    %123 = vector.broadcast %122 : vector<16x1xf32> to vector<16x8xf32>
    %124 = arith.mulf %119, %123 : vector<16x8xf32>
    %cst_32 = arith.constant dense<0.000000e+00> : vector<16x16xf32>
    %125 = tpu.matmul %124, %96, %cst_32 {dimension_numbers = #tpu.dot_dimension_numbers<[1], [0], [0], [1], [0, 0, 1, 1], [], []>} : vector<16x8xf32>, vector<8x16xf32>, vector<16x16xf32> -> vector<16x16xf32>
    %126 = vector.extract_strided_slice %125 {offsets = [0, 0], sizes = [8, 16], strides = [1, 1]} : vector<16x16xf32> to vector<8x16xf32>
    %127 = vector.extract_strided_slice %125 {offsets = [8, 0], sizes = [8, 16], strides = [1, 1]} : vector<16x16xf32> to vector<8x16xf32>
    %128 = vector.extract_strided_slice %0 {offsets = [8, 80], sizes = [8, 16], strides = [1, 1]} : vector<16x128xf32> to vector<8x16xf32>
    %129 = arith.mulf %128, %1 : vector<8x16xf32>
    %c8_i32_33 = arith.constant 8 : i32
    %130 = tpu.dynamic_rotate %128 by %c8_i32_33 dim 1 : vector<8x16xf32>, i32 -> vector<8x16xf32>
    %131 = arith.mulf %130, %8 : vector<8x16xf32>
    %132 = arith.mulf %131, %2 : vector<8x16xf32>
    %133 = arith.addf %129, %132 : vector<8x16xf32>
    %134 = vector.extract_strided_slice %0 {offsets = [8, 112], sizes = [8, 16], strides = [1, 1]} : vector<16x128xf32> to vector<8x16xf32>
    %135 = vector.extract_strided_slice %0 {offsets = [8, 32], sizes = [8, 16], strides = [1, 1]} : vector<16x128xf32> to vector<8x16xf32>
    %136 = arith.mulf %135, %1 : vector<8x16xf32>
    %c8_i32_34 = arith.constant 8 : i32
    %137 = tpu.dynamic_rotate %135 by %c8_i32_34 dim 1 : vector<8x16xf32>, i32 -> vector<8x16xf32>
    %138 = arith.mulf %137, %8 : vector<8x16xf32>
    %139 = arith.mulf %138, %2 : vector<8x16xf32>
    %140 = arith.addf %136, %139 : vector<8x16xf32>
    %141 = vector.extract_strided_slice %0 {offsets = [8, 48], sizes = [8, 16], strides = [1, 1]} : vector<16x128xf32> to vector<8x16xf32>
    %142 = arith.mulf %141, %1 : vector<8x16xf32>
    %c8_i32_35 = arith.constant 8 : i32
    %143 = tpu.dynamic_rotate %141 by %c8_i32_35 dim 1 : vector<8x16xf32>, i32 -> vector<8x16xf32>
    %144 = arith.mulf %143, %8 : vector<8x16xf32>
    %145 = arith.mulf %144, %2 : vector<8x16xf32>
    %146 = arith.addf %142, %145 : vector<8x16xf32>
    %147 = tpu.concatenate %140, %146 in 0 : vector<8x16xf32>, vector<8x16xf32> -> vector<16x16xf32>
    %cst_36 = arith.constant dense<0.000000e+00> : vector<16x8xf32>
    %148 = tpu.matmul %147, %133, %cst_36 {dimension_numbers = #tpu.dot_dimension_numbers<[1], [1], [0], [0], [0, 0, 1, 0], [], []>} : vector<16x16xf32>, vector<8x16xf32>, vector<16x8xf32> -> vector<16x8xf32>
    %cst_37 = arith.constant 2.500000e-01 : f32
    %149 = vector.broadcast %cst_37 : f32 to vector<16x8xf32>
    %150 = arith.mulf %148, %149 : vector<16x8xf32>
    %cst_38 = arith.constant 0xFF800000 : f32
    %151 = vector.broadcast %cst_38 : f32 to vector<16x8xf32>
    %152 = arith.select %12, %150, %151 : vector<16x8xi1>, vector<16x8xf32>
    %cst_39 = arith.constant dense<0xFF800000> : vector<16xf32>
    %153 = vector.multi_reduction <maximumf>, %152, %cst_39 [1] : vector<16x8xf32> to vector<16xf32>
    %154 = vector.shape_cast %153 : vector<16xf32> to vector<16x1xf32>
    %155 = vector.broadcast %154 : vector<16x1xf32> to vector<16x8xf32>
    %156 = arith.subf %152, %155 : vector<16x8xf32>
    %157 = math.exp %156 : vector<16x8xf32>
    %cst_40 = arith.constant dense<0.000000e+00> : vector<16xf32>
    %158 = vector.multi_reduction <add>, %157, %cst_40 [1] : vector<16x8xf32> to vector<16xf32>
    %159 = vector.shape_cast %158 : vector<16xf32> to vector<16x1xf32>
    %160 = tpu.reciprocal %159 {approx = true} : vector<16x1xf32> -> vector<16x1xf32>
    %161 = vector.broadcast %160 : vector<16x1xf32> to vector<16x8xf32>
    %162 = arith.mulf %157, %161 : vector<16x8xf32>
    %cst_41 = arith.constant dense<0.000000e+00> : vector<16x16xf32>
    %163 = tpu.matmul %162, %134, %cst_41 {dimension_numbers = #tpu.dot_dimension_numbers<[1], [0], [0], [1], [0, 0, 1, 1], [], []>} : vector<16x8xf32>, vector<8x16xf32>, vector<16x16xf32> -> vector<16x16xf32>
    %164 = vector.extract_strided_slice %163 {offsets = [0, 0], sizes = [8, 16], strides = [1, 1]} : vector<16x16xf32> to vector<8x16xf32>
    %165 = vector.extract_strided_slice %163 {offsets = [8, 0], sizes = [8, 16], strides = [1, 1]} : vector<16x16xf32> to vector<8x16xf32>
    %166 = tpu.concatenate %126, %127, %164, %165 in 1 : vector<8x16xf32>, vector<8x16xf32>, vector<8x16xf32>, vector<8x16xf32> -> vector<8x64xf32>
    %167 = tpu.concatenate %89, %166 in 0 : vector<8x64xf32>, vector<8x64xf32> -> vector<16x64xf32>
    %168 = arith.truncf %167 : vector<16x64xf32> to vector<16x64xbf16>
    %c0_42 = arith.constant 0 : index
    %c0_43 = arith.constant 0 : index
    %169 = vector.load %arg5[%c0_42, %c0_43] : memref<64x64xbf16, #tpu.memory_space<vmem>>, vector<64x64xbf16>
    %cst_44 = arith.constant dense<0.000000e+00> : vector<16x64xf32>
    %170 = tpu.matmul %168, %169, %cst_44 {dimension_numbers = #tpu.dot_dimension_numbers<[1], [0], [0], [1], [0, 0, 1, 1], [], []>} : vector<16x64xbf16>, vector<64x64xbf16>, vector<16x64xf32> -> vector<16x64xf32>
    %c0_45 = arith.constant 0 : index
    %c0_46 = arith.constant 0 : index
    %171 = vector.load %arg6[%c0_45, %c0_46] : memref<1x64xf32, #tpu.memory_space<vmem>>, vector<1x64xf32>
    %172 = vector.broadcast %171 : vector<1x64xf32> to vector<16x64xf32>
    %173 = arith.addf %170, %172 : vector<16x64xf32>
    %c0_47 = arith.constant 0 : index
    %c0_48 = arith.constant 0 : index
    %174 = vector.load %arg4[%c0_47, %c0_48] : memref<16x64xf32, #tpu.memory_space<vmem>>, vector<16x64xf32>
    %175 = arith.addf %173, %174 : vector<16x64xf32>
    %c0_49 = arith.constant 0 : index
    %c0_50 = arith.constant 0 : index
    %176 = vector.load %arg10[%c0_49, %c0_50] : memref<16x64xf32, #tpu.memory_space<vmem>>, vector<16x64xf32>
    tpu.vector_store %arg10[%c0_49, %c0_50], %175 {strides = array<i32>} : memref<16x64xf32, #tpu.memory_space<vmem>>, vector<16x64xf32>,
    %cst_51 = arith.constant dense<0.000000e+00> : vector<16xf32>
    %177 = vector.multi_reduction <add>, %175, %cst_51 [1] : vector<16x64xf32> to vector<16xf32>
    %178 = vector.shape_cast %177 : vector<16xf32> to vector<16x1xf32>
    %cst_52 = arith.constant 6.400000e+01 : f32
    %179 = vector.broadcast %cst_52 : f32 to vector<16x1xf32>
    %180 = arith.divf %178, %179 : vector<16x1xf32>
    %181 = vector.broadcast %180 : vector<16x1xf32> to vector<16x64xf32>
    %182 = arith.subf %175, %181 : vector<16x64xf32>
    %183 = arith.mulf %182, %182 : vector<16x64xf32>
    %cst_53 = arith.constant dense<0.000000e+00> : vector<16xf32>
    %184 = vector.multi_reduction <add>, %183, %cst_53 [1] : vector<16x64xf32> to vector<16xf32>
    %185 = vector.shape_cast %184 : vector<16xf32> to vector<16x1xf32>
    %cst_54 = arith.constant 6.400000e+01 : f32
    %186 = vector.broadcast %cst_54 : f32 to vector<16x1xf32>
    %187 = arith.divf %185, %186 : vector<16x1xf32>
    %cst_55 = arith.constant 9.99999974E-6 : f32
    %188 = vector.broadcast %cst_55 : f32 to vector<16x1xf32>
    %189 = arith.addf %187, %188 : vector<16x1xf32>
    %190 = math.rsqrt %189 : vector<16x1xf32>
    %191 = vector.broadcast %190 : vector<16x1xf32> to vector<16x64xf32>
    %192 = arith.mulf %182, %191 : vector<16x64xf32>
    %c0_56 = arith.constant 0 : index
    %c0_57 = arith.constant 0 : index
    %193 = vector.load %arg7[%c0_56, %c0_57] : memref<1x64xf32, #tpu.memory_space<vmem>>, vector<1x64xf32>
    %194 = vector.broadcast %193 : vector<1x64xf32> to vector<16x64xf32>
    %195 = arith.mulf %192, %194 : vector<16x64xf32>
    %c0_58 = arith.constant 0 : index
    %c0_59 = arith.constant 0 : index
    %196 = vector.load %arg8[%c0_58, %c0_59] : memref<1x64xf32, #tpu.memory_space<vmem>>, vector<1x64xf32>
    %197 = vector.broadcast %196 : vector<1x64xf32> to vector<16x64xf32>
    %198 = arith.addf %195, %197 : vector<16x64xf32>
    %c0_60 = arith.constant 0 : index
    %c0_61 = arith.constant 0 : index
    %199 = vector.load %arg11[%c0_60, %c0_61] : memref<16x64xf32, #tpu.memory_space<vmem>>, vector<16x64xf32>
    tpu.vector_store %arg11[%c0_60, %c0_61], %198 {strides = array<i32>} : memref<16x64xf32, #tpu.memory_space<vmem>>, vector<16x64xf32>,
    %200 = arith.truncf %198 : vector<16x64xf32> to vector<16x64xbf16>
    %c0_62 = arith.constant 0 : index
    %c0_63 = arith.constant 0 : index
    %201 = vector.load %arg9[%c0_62, %c0_63] : memref<64x4xbf16, #tpu.memory_space<vmem>>, vector<64x4xbf16>
    %cst_64 = arith.constant dense<0.000000e+00> : vector<16x4xf32>
    %202 = tpu.matmul %200, %201, %cst_64 {dimension_numbers = #tpu.dot_dimension_numbers<[1], [0], [0], [1], [0, 0, 1, 1], [], []>} : vector<16x64xbf16>, vector<64x4xbf16>, vector<16x4xf32> -> vector<16x4xf32>
    %c0_65 = arith.constant 0 : index
    %c0_66 = arith.constant 0 : index
    %203 = vector.load %arg12[%c0_65, %c0_66] : memref<16x4xf32, #tpu.memory_space<vmem>>, vector<16x4xf32>
    tpu.vector_store %arg12[%c0_65, %c0_66], %202 {strides = array<i32>} : memref<16x4xf32, #tpu.memory_space<vmem>>, vector<16x4xf32>,
    return
  }
  func.func @transform_0(%arg0: i32) -> (i32, i32) {
    %c0_i32 = arith.constant 0 : i32
    %c0_i32_0 = arith.constant 0 : i32
    %c0_i32_1 = arith.constant 0 : i32
    return %c0_i32, %c0_i32_0 : i32, i32
  }
  func.func @transform_1(%arg0: i32) -> (i32, i32) {
    %c0_i32 = arith.constant 0 : i32
    %c0_i32_0 = arith.constant 0 : i32
    %c0_i32_1 = arith.constant 0 : i32
    return %c0_i32, %c0_i32_0 : i32, i32
  }
  func.func @transform_2(%arg0: i32) -> (i32, i32) {
    %c0_i32 = arith.constant 0 : i32
    %c0_i32_0 = arith.constant 0 : i32
    %c0_i32_1 = arith.constant 0 : i32
    return %c0_i32, %c0_i32_0 : i32, i32
  }
  func.func @transform_3(%arg0: i32) -> (i32, i32) {
    %c0_i32 = arith.constant 0 : i32
    %c0_i32_0 = arith.constant 0 : i32
    %c0_i32_1 = arith.constant 0 : i32
    return %c0_i32, %c0_i32_0 : i32, i32
  }
  func.func @transform_4(%arg0: i32) -> (i32, i32) {
    %c0_i32 = arith.constant 0 : i32
    %c0_i32_0 = arith.constant 0 : i32
    %c0_i32_1 = arith.constant 0 : i32
    return %c0_i32, %c0_i32_0 : i32, i32
  }
  func.func @transform_5(%arg0: i32) -> (i32, i32) {
    %c0_i32 = arith.constant 0 : i32
    %c0_i32_0 = arith.constant 0 : i32
    %c0_i32_1 = arith.constant 0 : i32
    return %c0_i32, %c0_i32_0 : i32, i32
  }
  func.func @transform_6(%arg0: i32) -> (i32, i32) {
    %c0_i32 = arith.constant 0 : i32
    %c0_i32_0 = arith.constant 0 : i32
    %c0_i32_1 = arith.constant 0 : i32
    return %c0_i32, %c0_i32_0 : i32, i32
  }
  func.func @transform_7(%arg0: i32) -> (i32, i32) {
    %c0_i32 = arith.constant 0 : i32
    %c0_i32_0 = arith.constant 0 : i32
    %c0_i32_1 = arith.constant 0 : i32
    return %c0_i32, %c0_i32_0 : i32, i32
  }
  func.func @transform_8(%arg0: i32) -> (i32, i32) {
    %c0_i32 = arith.constant 0 : i32
    %c0_i32_0 = arith.constant 0 : i32
    %c0_i32_1 = arith.constant 0 : i32
    return %c0_i32, %c0_i32_0 : i32, i32
  }
  func.func @transform_9(%arg0: i32) -> (i32, i32) {
    %c0_i32 = arith.constant 0 : i32
    %c0_i32_0 = arith.constant 0 : i32
    %c0_i32_1 = arith.constant 0 : i32
    return %c0_i32, %c0_i32_0 : i32, i32
  }
  func.func @transform_10(%arg0: i32) -> (i32, i32) {
    %c0_i32 = arith.constant 0 : i32
    %c0_i32_0 = arith.constant 0 : i32
    %c0_i32_1 = arith.constant 0 : i32
    return %c0_i32, %c0_i32_0 : i32, i32
  }
  func.func @transform_11(%arg0: i32) -> (i32, i32) {
    %c0_i32 = arith.constant 0 : i32
    %c0_i32_0 = arith.constant 0 : i32
    %c0_i32_1 = arith.constant 0 : i32
    return %c0_i32, %c0_i32_0 : i32, i32
  }
}

module attributes {stable_mosaic.version = 11 : i64} {
  func.func @_moe_kernel(%arg0: i32, %arg1: memref<4xi32, #tpu.memory_space<smem>>, %arg2: memref<16x64xf32, #tpu.memory_space<vmem>>, %arg3: memref<1x64x256xbf16, #tpu.memory_space<vmem>>, %arg4: memref<1x128x64xbf16, #tpu.memory_space<vmem>>, %arg5: memref<1x16x1xf32, #tpu.memory_space<vmem>>, %arg6: memref<16x64xf32, #tpu.memory_space<vmem>>) attributes {dimension_semantics = [#tpu.dimension_semantics<arbitrary>], iteration_bounds = array<i64: 4>, scalar_prefetch = 1 : i64, scratch_operands = 0 : i64, tpu.core_type = #tpu.core_type<tc>, window_params = [{pipeline_mode = #tpu.pipeline_mode<synchronous>, transform_indices = @transform_0, window_bounds = array<i64: 16, 64>}, {transform_indices = @transform_1, window_bounds = array<i64: 1, 64, 256>}, {transform_indices = @transform_2, window_bounds = array<i64: 1, 128, 64>}, {transform_indices = @transform_3, window_bounds = array<i64: 1, 16, 1>}, {pipeline_mode = #tpu.pipeline_mode<synchronous>, transform_indices = @transform_4, window_bounds = array<i64: 16, 64>}]} {
    %c0_i32 = arith.constant 0 : i32
    %0 = arith.cmpi eq, %arg0, %c0_i32 : i32
    %1 = arith.extui %0 : i1 to i32
    %c0_i32_0 = arith.constant 0 : i32
    %2 = arith.cmpi ne, %1, %c0_i32_0 : i32
    scf.if %2 {
      %cst = arith.constant 0.000000e+00 : f32
      %8 = vector.broadcast %cst : f32 to vector<16x64xf32>
      %c0 = arith.constant 0 : index
      %c0_3 = arith.constant 0 : index
      %9 = vector.load %arg6[%c0, %c0_3] : memref<16x64xf32, #tpu.memory_space<vmem>>, vector<16x64xf32>
      tpu.vector_store %arg6[%c0, %c0_3], %8 {strides = array<i32>} : memref<16x64xf32, #tpu.memory_space<vmem>>, vector<16x64xf32>,
    } else {
    }
    %3 = arith.index_cast %arg0 : i32 to index
    %4 = memref.load %arg1[%3] : memref<4xi32, #tpu.memory_space<smem>>
    %c0_i32_1 = arith.constant 0 : i32
    %5 = arith.cmpi sgt, %4, %c0_i32_1 : i32
    %6 = arith.extui %5 : i1 to i32
    %c0_i32_2 = arith.constant 0 : i32
    %7 = arith.cmpi ne, %6, %c0_i32_2 : i32
    scf.if %7 {
      %c0 = arith.constant 0 : index
      %c0_3 = arith.constant 0 : index
      %8 = vector.load %arg2[%c0, %c0_3] : memref<16x64xf32, #tpu.memory_space<vmem>>, vector<16x64xf32>
      %9 = arith.truncf %8 : vector<16x64xf32> to vector<16x64xbf16>
      %c0_4 = arith.constant 0 : index
      %c0_5 = arith.constant 0 : index
      %c0_6 = arith.constant 0 : index
      %10 = vector.load %arg3[%c0_4, %c0_5, %c0_6] : memref<1x64x256xbf16, #tpu.memory_space<vmem>>, vector<1x64x256xbf16>
      %11 = vector.shape_cast %10 : vector<1x64x256xbf16> to vector<64x256xbf16>
      %cst = arith.constant dense<0.000000e+00> : vector<16x256xf32>
      %12 = tpu.matmul %9, %11, %cst {dimension_numbers = #tpu.dot_dimension_numbers<[1], [0], [0], [1], [0, 0, 1, 1], [], []>} : vector<16x64xbf16>, vector<64x256xbf16>, vector<16x256xf32> -> vector<16x256xf32>
      %13 = vector.extract_strided_slice %12 {offsets = [0, 0], sizes = [16, 128], strides = [1, 1]} : vector<16x256xf32> to vector<16x128xf32>
      %14 = arith.negf %13 : vector<16x128xf32>
      %15 = math.exp %14 : vector<16x128xf32>
      %cst_7 = arith.constant 1.000000e+00 : f32
      %16 = vector.broadcast %cst_7 : f32 to vector<16x128xf32>
      %17 = arith.addf %16, %15 : vector<16x128xf32>
      %18 = arith.divf %16, %17 : vector<16x128xf32>
      %19 = arith.mulf %13, %18 : vector<16x128xf32>
      %20 = vector.extract_strided_slice %12 {offsets = [0, 128], sizes = [16, 128], strides = [1, 1]} : vector<16x256xf32> to vector<16x128xf32>
      %21 = arith.mulf %19, %20 : vector<16x128xf32>
      %22 = arith.truncf %21 : vector<16x128xf32> to vector<16x128xbf16>
      %c0_8 = arith.constant 0 : index
      %c0_9 = arith.constant 0 : index
      %c0_10 = arith.constant 0 : index
      %23 = vector.load %arg4[%c0_8, %c0_9, %c0_10] : memref<1x128x64xbf16, #tpu.memory_space<vmem>>, vector<1x128x64xbf16>
      %24 = vector.shape_cast %23 : vector<1x128x64xbf16> to vector<128x64xbf16>
      %cst_11 = arith.constant dense<0.000000e+00> : vector<16x64xf32>
      %25 = tpu.matmul %22, %24, %cst_11 {dimension_numbers = #tpu.dot_dimension_numbers<[1], [0], [0], [1], [0, 0, 1, 1], [], []>} : vector<16x128xbf16>, vector<128x64xbf16>, vector<16x64xf32> -> vector<16x64xf32>
      %c0_12 = arith.constant 0 : index
      %c0_13 = arith.constant 0 : index
      %26 = vector.load %arg6[%c0_12, %c0_13] : memref<16x64xf32, #tpu.memory_space<vmem>>, vector<16x64xf32>
      %c0_14 = arith.constant 0 : index
      %c0_15 = arith.constant 0 : index
      %c0_16 = arith.constant 0 : index
      %27 = vector.load %arg5[%c0_14, %c0_15, %c0_16] : memref<1x16x1xf32, #tpu.memory_space<vmem>>, vector<1x16x1xf32>
      %28 = vector.shape_cast %27 : vector<1x16x1xf32> to vector<16x1xf32>
      %29 = vector.broadcast %28 : vector<16x1xf32> to vector<16x64xf32>
      %30 = arith.mulf %29, %25 : vector<16x64xf32>
      %31 = arith.addf %26, %30 : vector<16x64xf32>
      %c0_17 = arith.constant 0 : index
      %c0_18 = arith.constant 0 : index
      %32 = vector.load %arg6[%c0_17, %c0_18] : memref<16x64xf32, #tpu.memory_space<vmem>>, vector<16x64xf32>
      tpu.vector_store %arg6[%c0_17, %c0_18], %31 {strides = array<i32>} : memref<16x64xf32, #tpu.memory_space<vmem>>, vector<16x64xf32>,
    } else {
    }
    return
  }
  func.func @transform_0(%arg0: i32, %arg1: memref<4xi32, #tpu.memory_space<smem>>) -> (i32, i32) {
    %c0_i32 = arith.constant 0 : i32
    %c0_i32_0 = arith.constant 0 : i32
    %c0_i32_1 = arith.constant 0 : i32
    return %c0_i32, %c0_i32_0 : i32, i32
  }
  func.func @transform_1(%arg0: i32, %arg1: memref<4xi32, #tpu.memory_space<smem>>) -> (i32, i32, i32) {
    %c0_i32 = arith.constant 0 : i32
    %c0_i32_0 = arith.constant 0 : i32
    %c0_i32_1 = arith.constant 0 : i32
    return %arg0, %c0_i32, %c0_i32_0 : i32, i32, i32
  }
  func.func @transform_2(%arg0: i32, %arg1: memref<4xi32, #tpu.memory_space<smem>>) -> (i32, i32, i32) {
    %c0_i32 = arith.constant 0 : i32
    %c0_i32_0 = arith.constant 0 : i32
    %c0_i32_1 = arith.constant 0 : i32
    return %arg0, %c0_i32, %c0_i32_0 : i32, i32, i32
  }
  func.func @transform_3(%arg0: i32, %arg1: memref<4xi32, #tpu.memory_space<smem>>) -> (i32, i32, i32) {
    %c0_i32 = arith.constant 0 : i32
    %c0_i32_0 = arith.constant 0 : i32
    %c0_i32_1 = arith.constant 0 : i32
    return %arg0, %c0_i32, %c0_i32_0 : i32, i32, i32
  }
  func.func @transform_4(%arg0: i32, %arg1: memref<4xi32, #tpu.memory_space<smem>>) -> (i32, i32) {
    %c0_i32 = arith.constant 0 : i32
    %c0_i32_0 = arith.constant 0 : i32
    %c0_i32_1 = arith.constant 0 : i32
    return %c0_i32, %c0_i32_0 : i32, i32
  }
}

module attributes {stable_mosaic.version = 11 : i64} {
  func.func @_ln_lm_head_kernel(%arg0: i32, %arg1: i32, %arg2: memref<8x64xf32, #tpu.memory_space<vmem>>, %arg3: memref<8x64xf32, #tpu.memory_space<vmem>>, %arg4: memref<1x64xf32, #tpu.memory_space<vmem>>, %arg5: memref<1x64xf32, #tpu.memory_space<vmem>>, %arg6: memref<64x128xbf16, #tpu.memory_space<vmem>>, %arg7: memref<1x128xf32, #tpu.memory_space<vmem>>, %arg8: memref<8x64xf32, #tpu.memory_space<vmem>>, %arg9: memref<8x128xf32, #tpu.memory_space<vmem>>) attributes {dimension_semantics = [#tpu.dimension_semantics<parallel>, #tpu.dimension_semantics<arbitrary>], iteration_bounds = array<i64: 2, 2>, scalar_prefetch = 0 : i64, scratch_operands = 0 : i64, tpu.core_type = #tpu.core_type<tc>, window_params = [{transform_indices = @transform_0, window_bounds = array<i64: 8, 64>}, {transform_indices = @transform_1, window_bounds = array<i64: 8, 64>}, {pipeline_mode = #tpu.pipeline_mode<synchronous>, transform_indices = @transform_2, window_bounds = array<i64: 1, 64>}, {pipeline_mode = #tpu.pipeline_mode<synchronous>, transform_indices = @transform_3, window_bounds = array<i64: 1, 64>}, {transform_indices = @transform_4, window_bounds = array<i64: 64, 128>}, {transform_indices = @transform_5, window_bounds = array<i64: 1, 128>}, {transform_indices = @transform_6, window_bounds = array<i64: 8, 64>}, {transform_indices = @transform_7, window_bounds = array<i64: 8, 128>}]} {
    %c0 = arith.constant 0 : index
    %c0_0 = arith.constant 0 : index
    %0 = vector.load %arg2[%c0, %c0_0] : memref<8x64xf32, #tpu.memory_space<vmem>>, vector<8x64xf32>
    %c0_1 = arith.constant 0 : index
    %c0_2 = arith.constant 0 : index
    %1 = vector.load %arg3[%c0_1, %c0_2] : memref<8x64xf32, #tpu.memory_space<vmem>>, vector<8x64xf32>
    %2 = arith.addf %0, %1 : vector<8x64xf32>
    %cst = arith.constant dense<0.000000e+00> : vector<8xf32>
    %3 = vector.multi_reduction <add>, %2, %cst [1] : vector<8x64xf32> to vector<8xf32>
    %4 = vector.shape_cast %3 : vector<8xf32> to vector<8x1xf32>
    %cst_3 = arith.constant 6.400000e+01 : f32
    %5 = vector.broadcast %cst_3 : f32 to vector<8x1xf32>
    %6 = arith.divf %4, %5 : vector<8x1xf32>
    %7 = vector.broadcast %6 : vector<8x1xf32> to vector<8x64xf32>
    %8 = arith.subf %2, %7 : vector<8x64xf32>
    %9 = arith.mulf %8, %8 : vector<8x64xf32>
    %cst_4 = arith.constant dense<0.000000e+00> : vector<8xf32>
    %10 = vector.multi_reduction <add>, %9, %cst_4 [1] : vector<8x64xf32> to vector<8xf32>
    %11 = vector.shape_cast %10 : vector<8xf32> to vector<8x1xf32>
    %cst_5 = arith.constant 6.400000e+01 : f32
    %12 = vector.broadcast %cst_5 : f32 to vector<8x1xf32>
    %13 = arith.divf %11, %12 : vector<8x1xf32>
    %cst_6 = arith.constant 9.99999974E-6 : f32
    %14 = vector.broadcast %cst_6 : f32 to vector<8x1xf32>
    %15 = arith.addf %13, %14 : vector<8x1xf32>
    %16 = math.rsqrt %15 : vector<8x1xf32>
    %17 = vector.broadcast %16 : vector<8x1xf32> to vector<8x64xf32>
    %18 = arith.mulf %8, %17 : vector<8x64xf32>
    %c0_7 = arith.constant 0 : index
    %c0_8 = arith.constant 0 : index
    %19 = vector.load %arg4[%c0_7, %c0_8] : memref<1x64xf32, #tpu.memory_space<vmem>>, vector<1x64xf32>
    %20 = vector.broadcast %19 : vector<1x64xf32> to vector<8x64xf32>
    %21 = arith.mulf %18, %20 : vector<8x64xf32>
    %c0_9 = arith.constant 0 : index
    %c0_10 = arith.constant 0 : index
    %22 = vector.load %arg5[%c0_9, %c0_10] : memref<1x64xf32, #tpu.memory_space<vmem>>, vector<1x64xf32>
    %23 = vector.broadcast %22 : vector<1x64xf32> to vector<8x64xf32>
    %24 = arith.addf %21, %23 : vector<8x64xf32>
    %c0_i32 = arith.constant 0 : i32
    %25 = arith.cmpi eq, %arg1, %c0_i32 : i32
    %26 = arith.extui %25 : i1 to i32
    %c0_i32_11 = arith.constant 0 : i32
    %27 = arith.cmpi ne, %26, %c0_i32_11 : i32
    scf.if %27 {
      %c0_19 = arith.constant 0 : index
      %c0_20 = arith.constant 0 : index
      %35 = vector.load %arg8[%c0_19, %c0_20] : memref<8x64xf32, #tpu.memory_space<vmem>>, vector<8x64xf32>
      tpu.vector_store %arg8[%c0_19, %c0_20], %24 {strides = array<i32>} : memref<8x64xf32, #tpu.memory_space<vmem>>, vector<8x64xf32>,
    } else {
    }
    %28 = arith.truncf %24 : vector<8x64xf32> to vector<8x64xbf16>
    %c0_12 = arith.constant 0 : index
    %c0_13 = arith.constant 0 : index
    %29 = vector.load %arg6[%c0_12, %c0_13] : memref<64x128xbf16, #tpu.memory_space<vmem>>, vector<64x128xbf16>
    %cst_14 = arith.constant dense<0.000000e+00> : vector<8x128xf32>
    %30 = tpu.matmul %28, %29, %cst_14 {dimension_numbers = #tpu.dot_dimension_numbers<[1], [0], [0], [1], [0, 0, 1, 1], [], []>} : vector<8x64xbf16>, vector<64x128xbf16>, vector<8x128xf32> -> vector<8x128xf32>
    %c0_15 = arith.constant 0 : index
    %c0_16 = arith.constant 0 : index
    %31 = vector.load %arg7[%c0_15, %c0_16] : memref<1x128xf32, #tpu.memory_space<vmem>>, vector<1x128xf32>
    %32 = vector.broadcast %31 : vector<1x128xf32> to vector<8x128xf32>
    %33 = arith.addf %30, %32 : vector<8x128xf32>
    %c0_17 = arith.constant 0 : index
    %c0_18 = arith.constant 0 : index
    %34 = vector.load %arg9[%c0_17, %c0_18] : memref<8x128xf32, #tpu.memory_space<vmem>>, vector<8x128xf32>
    tpu.vector_store %arg9[%c0_17, %c0_18], %33 {strides = array<i32>} : memref<8x128xf32, #tpu.memory_space<vmem>>, vector<8x128xf32>,
    return
  }
  func.func @transform_0(%arg0: i32, %arg1: i32) -> (i32, i32) {
    %c0_i32 = arith.constant 0 : i32
    %c0_i32_0 = arith.constant 0 : i32
    return %arg0, %c0_i32 : i32, i32
  }
  func.func @transform_1(%arg0: i32, %arg1: i32) -> (i32, i32) {
    %c0_i32 = arith.constant 0 : i32
    %c0_i32_0 = arith.constant 0 : i32
    return %arg0, %c0_i32 : i32, i32
  }
  func.func @transform_2(%arg0: i32, %arg1: i32) -> (i32, i32) {
    %c0_i32 = arith.constant 0 : i32
    %c0_i32_0 = arith.constant 0 : i32
    %c0_i32_1 = arith.constant 0 : i32
    return %c0_i32, %c0_i32_0 : i32, i32
  }
  func.func @transform_3(%arg0: i32, %arg1: i32) -> (i32, i32) {
    %c0_i32 = arith.constant 0 : i32
    %c0_i32_0 = arith.constant 0 : i32
    %c0_i32_1 = arith.constant 0 : i32
    return %c0_i32, %c0_i32_0 : i32, i32
  }
  func.func @transform_4(%arg0: i32, %arg1: i32) -> (i32, i32) {
    %c0_i32 = arith.constant 0 : i32
    %c0_i32_0 = arith.constant 0 : i32
    return %c0_i32, %arg1 : i32, i32
  }
  func.func @transform_5(%arg0: i32, %arg1: i32) -> (i32, i32) {
    %c0_i32 = arith.constant 0 : i32
    %c0_i32_0 = arith.constant 0 : i32
    return %c0_i32, %arg1 : i32, i32
  }
  func.func @transform_6(%arg0: i32, %arg1: i32) -> (i32, i32) {
    %c0_i32 = arith.constant 0 : i32
    %c0_i32_0 = arith.constant 0 : i32
    return %arg0, %c0_i32 : i32, i32
  }
  func.func @transform_7(%arg0: i32, %arg1: i32) -> (i32, i32) {
    %c0_i32 = arith.constant 0 : i32
    return %arg0, %arg1 : i32, i32
  }
}

</mosaic_0001>

<llo_original>
// kernel: forward.7
$region0: #{forward.7}
  #allocation0 [shape = 'u32[]', space=smem, size = 0x4, offset = 0x4, fixed_abs, tag = 'smem constant byte address 0x4 - core index']
  #allocation1 [shape = 'u32[144,128]{1,0:T(1,128)}', space=vmem, size = 0x12000, scoped, tag = 'internal scratch']
  %s0 = inlined_call_operand.vmem [shape: f32[16,64], index: 0, kind: input, shape index: {}]
  %s1 = inlined_call_operand.vmem [shape: f32[16,64], index: 1, kind: input, shape index: {}, may-alias: {1,6}]
  %s2 = inlined_call_operand.vmem [shape: f32[1,64], index: 2, kind: input, shape index: {}]
  %s3 = inlined_call_operand.vmem [shape: f32[1,64], index: 3, kind: input, shape index: {}]
  %s4 = inlined_call_operand.vmem [shape: bf16[64,128], index: 4, kind: input, shape index: {}]
  %s5 = inlined_call_operand.vmem [shape: f32[1,128], index: 5, kind: input, shape index: {}]
  %s6 = inlined_call_operand.vmem [shape: f32[16,64], index: 6, kind: output, shape index: {0}, may-alias: {1,6}]
  %s7 = inlined_call_operand.vmem [shape: f32[16,128], index: 7, kind: output, shape index: {1}]
  %8 = xla_tuple %s6, %s7
  %s9 = sld [smem:[#allocation0]]
  $region65: #{forward.7} parent=0
    _
  %s11 = ssub.s32 1, %s9
  %s12 = scalar_select 0, %s11, %s9
  loop: start=0, step=1, limit=4
  $region2: #{forward.7} parent=0 // loop_pre_header
    _
  $region3: #{forward.7} parent=0 // loop_header
    %s14 = sphi 0, %s18
    %p15 = scmp.ge.s32.totalorder %s14, 4
    %s24 = sphi 0, %s26
    %s27 = sphi 0, %s24
    %s28 = sphi 0, %s27
    %s44 = sphi 0, %s28
    %s50 = sphi 0, %s52
    %s53 = sphi 0, %s50
    %s54 = sphi 0, %s53
    %s70 = sphi 0, %s54
    %s74 = sphi 0, %s74
    %s76 = sphi 0, %s74
    %s77 = sphi 0, %s76
    %s91 = sphi 0, %s77
    %s95 = sphi 0, %s95
    %s97 = sphi 0, %s95
    %s98 = sphi 0, %s97
    %s112 = sphi 0, %s98
    %s116 = sphi 0, %s116
    %s118 = sphi 0, %s116
    %s119 = sphi 0, %s118
    %s133 = sphi 0, %s119
    %s137 = sphi 0, %s137
    %s139 = sphi 0, %s137
    %s140 = sphi 0, %s139
    %s154 = sphi 0, %s140
    %s160 = sphi 0, %s162
    %s163 = sphi 0, %s160
    %s164 = sphi 0, %s163
    %s180 = sphi 0, %s164
    %s186 = sphi 0, %s188
    %s189 = sphi 0, %s186
    %s190 = sphi 0, %s189
    %s206 = sphi 0, %s190
  $region4: #{forward.7} parent=0 // loop_header_branch
    %17 = sbr.rel (%p15) target = $region8
  $region5: #{forward.7} parent=0 // loop_body
    %s19 = ssub.s32 %s14, 1
    %s20 = ssub.s32 %s14, 2
    %s21 = sadd.s32 %s14, 1
    %s22 = ssub.s32 %s14, %s21
    %p23 = scmp.eq.s32.totalorder %s22, 0
    %s25 = sadd.s32 %s24, 1
    %s26 = scalar_select %p23, %s24, %s25
    %p29 = pneg %p23
    %p30 = scmp.eq.s32.totalorder %s14, 1
    %p31 = por %p29, %p30
    %p32 = scmp.ne.s32.totalorder %s24, %s27
    %p33 = scmp.eq.s32.totalorder %s14, 0
    %p34 = por %p32, %p33
    %p35 = scmp.ne.s32.totalorder %s24, %s27
    %p36 = scmp.eq.s32.totalorder %s19, 1
    %p37 = por %p35, %p36
    %p38 = scmp.ne.s32.totalorder %s27, %s28
    %p39 = scmp.eq.s32.totalorder %s19, 0
    %p40 = por %p38, %p39
    %p41 = scmp.ne.s32.totalorder %s27, %s28
    %p42 = scmp.eq.s32.totalorder %s20, 1
    %p43 = por %p41, %p42
    %p45 = scmp.ne.s32.totalorder %s28, %s44
    %p46 = scmp.eq.s32.totalorder %s20, 0
    %p47 = por %p45, %p46
    %s48 = ssub.s32 %s14, %s21
    %p49 = scmp.eq.s32.totalorder %s48, 0
    %s51 = sadd.s32 %s50, 1
    %s52 = scalar_select %p49, %s50, %s51
    %p55 = pneg %p49
    %p56 = scmp.eq.s32.totalorder %s14, 1
    %p57 = por %p55, %p56
    %p58 = scmp.ne.s32.totalorder %s50, %s53
    %p59 = scmp.eq.s32.totalorder %s14, 0
    %p60 = por %p58, %p59
    %p61 = scmp.ne.s32.totalorder %s50, %s53
    %p62 = scmp.eq.s32.totalorder %s19, 1
    %p63 = por %p61, %p62
    %p64 = scmp.ne.s32.totalorder %s53, %s54
    %p65 = scmp.eq.s32.totalorder %s19, 0
    %p66 = por %p64, %p65
    %p67 = scmp.ne.s32.totalorder %s53, %s54
    %p68 = scmp.eq.s32.totalorder %s20, 1
    %p69 = por %p67, %p68
    %p71 = scmp.ne.s32.totalorder %s54, %s70
    %p72 = scmp.eq.s32.totalorder %s20, 0
    %p73 = por %p71, %p72
    %s75 = sadd.s32 %s74, 1
    %p78 = scmp.eq.s32.totalorder %s14, 1
    %p79 = scmp.ne.s32.totalorder %s74, %s76
    %p80 = scmp.eq.s32.totalorder %s14, 0
    %p81 = por %p79, %p80
    %p82 = scmp.ne.s32.totalorder %s74, %s76
    %p83 = scmp.eq.s32.totalorder %s19, 1
    %p84 = por %p82, %p83
    %p85 = scmp.ne.s32.totalorder %s76, %s77
    %p86 = scmp.eq.s32.totalorder %s19, 0
    %p87 = por %p85, %p86
    %p88 = scmp.ne.s32.totalorder %s76, %s77
    %p89 = scmp.eq.s32.totalorder %s20, 1
    %p90 = por %p88, %p89
    %p92 = scmp.ne.s32.totalorder %s77, %s91
    %p93 = scmp.eq.s32.totalorder %s20, 0
    %p94 = por %p92, %p93
    %s96 = sadd.s32 %s95, 1
    %p99 = scmp.eq.s32.totalorder %s14, 1
    %p100 = scmp.ne.s32.totalorder %s95, %s97
    %p101 = scmp.eq.s32.totalorder %s14, 0
    %p102 = por %p100, %p101
    %p103 = scmp.ne.s32.totalorder %s95, %s97
    %p104 = scmp.eq.s32.totalorder %s19, 1
    %p105 = por %p103, %p104
    %p106 = scmp.ne.s32.totalorder %s97, %s98
    %p107 = scmp.eq.s32.totalorder %s19, 0
    %p108 = por %p106, %p107
    %p109 = scmp.ne.s32.totalorder %s97, %s98
    %p110 = scmp.eq.s32.totalorder %s20, 1
    %p111 = por %p109, %p110
    %p113 = scmp.ne.s32.totalorder %s98, %s112
    %p114 = scmp.eq.s32.totalorder %s20, 0
    %p115 = por %p113, %p114
    %s117 = sadd.s32 %s116, 1
    %p120 = scmp.eq.s32.totalorder %s14, 1
    %p121 = scmp.ne.s32.totalorder %s116, %s118
    %p122 = scmp.eq.s32.totalorder %s14, 0
    %p123 = por %p121, %p122
    %p124 = scmp.ne.s32.totalorder %s116, %s118
    %p125 = scmp.eq.s32.totalorder %s19, 1
    %p126 = por %p124, %p125
    %p127 = scmp.ne.s32.totalorder %s118, %s119
    %p128 = scmp.eq.s32.totalorder %s19, 0
    %p129 = por %p127, %p128
    %p130 = scmp.ne.s32.totalorder %s118, %s119
    %p131 = scmp.eq.s32.totalorder %s20, 1
    %p132 = por %p130, %p131
    %p134 = scmp.ne.s32.totalorder %s119, %s133
    %p135 = scmp.eq.s32.totalorder %s20, 0
    %p136 = por %p134, %p135
    %s138 = sadd.s32 %s137, 1
    %p141 = scmp.eq.s32.totalorder %s14, 1
    %p142 = scmp.ne.s32.totalorder %s137, %s139
    %p143 = scmp.eq.s32.totalorder %s14, 0
    %p144 = por %p142, %p143
    %p145 = scmp.ne.s32.totalorder %s137, %s139
    %p146 = scmp.eq.s32.totalorder %s19, 1
    %p147 = por %p145, %p146
    %p148 = scmp.ne.s32.totalorder %s139, %s140
    %p149 = scmp.eq.s32.totalorder %s19, 0
    %p150 = por %p148, %p149
    %p151 = scmp.ne.s32.totalorder %s139, %s140
    %p152 = scmp.eq.s32.totalorder %s20, 1
    %p153 = por %p151, %p152
    %p155 = scmp.ne.s32.totalorder %s140, %s154
    %p156 = scmp.eq.s32.totalorder %s20, 0
    %p157 = por %p155, %p156
    %s158 = ssub.s32 %s14, %s21
    %p159 = scmp.eq.s32.totalorder %s158, 0
    %s161 = sadd.s32 %s160, 1
    %s162 = scalar_select %p159, %s160, %s161
    %p165 = pneg %p159
    %p166 = scmp.eq.s32.totalorder %s14, 1
    %p167 = por %p165, %p166
    %p168 = scmp.ne.s32.totalorder %s160, %s163
    %p169 = scmp.eq.s32.totalorder %s14, 0
    %p170 = por %p168, %p169
    %p171 = scmp.ne.s32.totalorder %s160, %s163
    %p172 = scmp.eq.s32.totalorder %s19, 1
    %p173 = por %p171, %p172
    %p174 = scmp.ne.s32.totalorder %s163, %s164
    %p175 = scmp.eq.s32.totalorder %s19, 0
    %p176 = por %p174, %p175
    %p177 = scmp.ne.s32.totalorder %s163, %s164
    %p178 = scmp.eq.s32.totalorder %s20, 1
    %p179 = por %p177, %p178
    %p181 = scmp.ne.s32.totalorder %s164, %s180
    %p182 = scmp.eq.s32.totalorder %s20, 0
    %p183 = por %p181, %p182
    %s184 = ssub.s32 %s14, %s21
    %p185 = scmp.eq.s32.totalorder %s184, 0
    %s187 = sadd.s32 %s186, 1
    %s188 = scalar_select %p185, %s186, %s187
    %p191 = pneg %p185
    %p192 = scmp.eq.s32.totalorder %s14, 1
    %p193 = por %p191, %p192
    %p194 = scmp.ne.s32.totalorder %s186, %s189
    %p195 = scmp.eq.s32.totalorder %s14, 0
    %p196 = por %p194, %p195
    %p197 = scmp.ne.s32.totalorder %s186, %s189
    %p198 = scmp.eq.s32.totalorder %s19, 1
    %p199 = por %p197, %p198
    %p200 = scmp.ne.s32.totalorder %s189, %s190
    %p201 = scmp.eq.s32.totalorder %s19, 0
    %p202 = por %p200, %p201
    %p203 = scmp.ne.s32.totalorder %s189, %s190
    %p204 = scmp.eq.s32.totalorder %s20, 1
    %p205 = por %p203, %p204
    %p207 = scmp.ne.s32.totalorder %s190, %s206
    %p208 = scmp.eq.s32.totalorder %s20, 0
    %p209 = por %p207, %p208
    %p210 = scmp.le.s32.totalorder 1, %s14
    %p211 = scmp.lt.s32.totalorder %s14, 3
    %p212 = pnand %p210, %p211
    %p213 = pneg %p212
    // Predicated region
    $region9: #{forward.7} parent=5 // pred_check
      _
    $region10: #{forward.7} parent=5 // pred_check_branch
      %215 = sbr.rel (%p212) target = $region12
    $region11: #{forward.7} parent=5 // pred_region
      %s216 = ssub.s32 %s14, 1
      // Predicated region
      $region13: #{forward.7} parent=11 // pred_check
        %p217 = pneg %p87
      $region14: #{forward.7} parent=11 // pred_check_branch
        %219 = sbr.rel (%p217) target = $region16
      $region15: #{forward.7} parent=11 // pred_region
        _
      $region16: #{forward.7} parent=11 // pred_fallthru
        _
      // Predicated region
      $region17: #{forward.7} parent=11 // pred_check
        %p220 = pneg %p108
      $region18: #{forward.7} parent=11 // pred_check_branch
        %222 = sbr.rel (%p220) target = $region20
      $region19: #{forward.7} parent=11 // pred_region
        _
      $region20: #{forward.7} parent=11 // pred_fallthru
        _
      // Predicated region
      $region21: #{forward.7} parent=11 // pred_check
        %p223 = pneg %p129
      $region22: #{forward.7} parent=11 // pred_check_branch
        %225 = sbr.rel (%p223) target = $region24
      $region23: #{forward.7} parent=11 // pred_region
        _
      $region24: #{forward.7} parent=11 // pred_fallthru
        _
      // Predicated region
      $region25: #{forward.7} parent=11 // pred_check
        %p226 = pneg %p150
      $region26: #{forward.7} parent=11 // pred_check_branch
        %228 = sbr.rel (%p226) target = $region28
      $region27: #{forward.7} parent=11 // pred_region
        _
      $region28: #{forward.7} parent=11 // pred_fallthru
        _
    $region12: #{forward.7} parent=5 // pred_fallthru
      _
    %p229 = scmp.lt.s32.totalorder %s14, 2
    // Predicated region
    $region29: #{forward.7} parent=5 // pred_check
      %p230 = pneg %p229
    $region30: #{forward.7} parent=5 // pred_check_branch
      %232 = sbr.rel (%p230) target = $region32
    $region31: #{forward.7} parent=5 // pred_region
      // Predicated region
      $region33: #{forward.7} parent=31 // pred_check
        %p233 = pneg %p34
      $region34: #{forward.7} parent=31 // pred_check_branch
        %235 = sbr.rel (%p233) target = $region36
      $region35: #{forward.7} parent=31 // pred_region
        %p236 = scmp.lt.s32.totalorder %s14, 1
        %s237 = scalar_select %p236, %s14, 1
        %s238 = smul.addr %s237, 8
        %s239 = scalar_lea.vmem %s0, %s238
      $region36: #{forward.7} parent=31 // pred_fallthru
        _
      // Predicated region
      $region37: #{forward.7} parent=31 // pred_check
        %p240 = pneg %p60
      $region38: #{forward.7} parent=31 // pred_check_branch
        %242 = sbr.rel (%p240) target = $region40
      $region39: #{forward.7} parent=31 // pred_region
        %p243 = scmp.lt.s32.totalorder %s14, 1
        %s244 = scalar_select %p243, %s14, 1
        %s245 = smul.addr %s244, 8
        %s246 = scalar_lea.vmem %s1, %s245
      $region40: #{forward.7} parent=31 // pred_fallthru
        _
    $region32: #{forward.7} parent=5 // pred_fallthru
      _
    %p247 = scmp.le.s32.totalorder 1, %s14
    %p248 = scmp.lt.s32.totalorder %s14, 3
    %p249 = pnand %p247, %p248
    %p250 = pneg %p249
    // Predicated region
    $region41: #{forward.7} parent=5 // pred_check
      _
    $region42: #{forward.7} parent=5 // pred_check_branch
      %252 = sbr.rel (%p249) target = $region44
    $region43: #{forward.7} parent=5 // pred_region
      %s253 = ssub.s32 %s14, 1
      %p254 = scmp.lt.s32.totalorder %s19, 1
      %s255 = scalar_select %p254, %s19, 1
      %s256 = smul.addr %s255, 8
      %s257 = scalar_lea.vmem %s0, %s256
      %p258 = pneg %p40
      %p259 = pneg %p37
      %p260 = scmp.lt.s32.totalorder %s19, 1
      %s261 = scalar_select %p260, %s19, 1
      %s262 = smul.addr %s261, 8
      %s263 = scalar_lea.vmem %s1, %s262
      %p264 = pneg %p66
      %p265 = pneg %p63
      %p266 = pneg %p87
      %p267 = pneg %p84
      %p268 = pneg %p108
      %p269 = pneg %p105
      %p270 = pneg %p129
      %p271 = pneg %p126
      %p272 = pneg %p150
      %p273 = pneg %p147
      %p274 = pneg %p176
      %p275 = pneg %p173
      %p276 = scmp.lt.s32.totalorder %s19, 1
      %s277 = scalar_select %p276, %s19, 1
      %s278 = smul.addr %s277, 8
      %s279 = scalar_lea.vmem %s6, %s278
      %p280 = pneg %p202
      %p281 = pneg %p199
      %p282 = scmp.lt.s32.totalorder %s19, 1
      %s283 = scalar_select %p282, %s19, 1
      %s284 = smul.addr %s283, 8
      %s285 = scalar_lea.vmem %s7, %s284
      %p286 = scmp.lt.s32.totalorder %s19, 1
      %s287 = scalar_select %p286, %s19, 1
      %s288 = smul.addr %s287, 8
      %s289 = scalar_lea.vmem %s0, %s288
      %p290 = scmp.lt.s32.totalorder %s19, 1
      %s291 = scalar_select %p290, %s19, 1
      %s292 = smul.addr %s291, 8
      %s293 = scalar_lea.vmem %s1, %s292
      %p294 = scmp.lt.s32.totalorder %s19, 1
      %s295 = scalar_select %p294, %s19, 1
      %s296 = smul.addr %s295, 8
      %s297 = scalar_lea.vmem %s6, %s296
      %p298 = scmp.lt.s32.totalorder %s19, 1
      %s299 = scalar_select %p298, %s19, 1
      %s300 = smul.addr %s299, 8
      %s301 = scalar_lea.vmem %s7, %s300
      %v303 = vld [vmem:[%s289] sm:$0xff]
      %v304 = vld [vmem:[%s293] sm:$0xff]
      %v305 = vadd.f32 %v303, %v304
      %vm306 = vcmask 523264
      %307 = vst.msk [vmem:[%s297] sm:$0xff] %vm306, %v305
      %v308 = vsel %vm306, %v305, 0.0
      %309 = vadd.xlane.f32.xlu0 %v308
      %v310 = vpop.xlane.xlu0 %309
      %v311 = vrcp.pop 64.0
      %v312 = vmul.f32 %v310, %v311
      %v313 = vsub.f32 %v305, %v312
      %v314 = vmul.f32 %v313, %v313
      %v315 = vsel %vm306, %v314, 0.0
      %316 = vadd.xlane.f32.xlu0 %v315
      %v317 = vpop.xlane.xlu0 %316
      %v318 = vmul.f32 %v317, %v311
      %v319 = vadd.f32 %v318, 1e-05
      %v320 = vrsqrt.pop %v319
      %v321 = vmul.f32 %v313, %v320
      %v322 = vld [vmem:[%s2] sm:$0x1]
      %v324 = vlaneseq
      %v325 = vshrl.u32 %v324, 7
      %v326 = vsub.s32 0, %v325
      %v327 = vrot.slane %v322, %v326
      %v329 = vmul.f32 %v321, %v327
      %v330 = vld [vmem:[%s3] sm:$0x1]
      %v332 = vlaneseq
      %v333 = vshrl.u32 %v332, 7
      %v334 = vsub.s32 0, %v333
      %v335 = vrot.slane %v330, %v334
      %v337 = vadd.f32 %v329, %v335
      %v338 = vpack.c.bf16 %v337, %v337
      %v339 = vld [vmem:[%s4] sm:$0xf]
      %v340 = vld [vmem:[%s4 + $0x4] sm:$0xf]
      %v341 = vld [vmem:[%s4 + $0x8] sm:$0xf]
      %v342 = vld [vmem:[%s4 + $0xc] sm:$0xf]
      %v343 = vld [vmem:[%s4 + $0x10] sm:$0xf]
      %v344 = vld [vmem:[%s4 + $0x14] sm:$0xf]
      %v345 = vld [vmem:[%s4 + $0x18] sm:$0xf]
      %v346 = vld [vmem:[%s4 + $0x1c] sm:$0xf]
      %v347 = vld [vmem:[%s5] sm:$0x1]
      %v349 = vlaneseq
      %v350 = vshrl.u32 %v349, 7
      %v351 = vsub.s32 0, %v350
      %v352 = vrot.slane %v347, %v351
      %v362 = vunpack.c.l.b16 %v339
      %v363 = vunpack.c.l.b16 %v340
      %v364 = vunpack.c.l.b16 %v341
      %v365 = vunpack.c.l.b16 %v342
      %v366 = vunpack.c.l.b16 %v343
      %v367 = vunpack.c.l.b16 %v344
      %v368 = vunpack.c.l.b16 %v345
      %v369 = vunpack.c.l.b16 %v346
      %v370 = vpack.c.b16 %v363, %v362
      %v371 = vpack.c.b16 %v365, %v364
      %v372 = vpack.c.b16 %v367, %v366
      %v373 = vpack.c.b16 %v369, %v368
      %v379 = vsel %vm306, %v338, 0
      %381 = vmatprep.subr.bf16.mxu0 0
      %382 = vmatpush1.bf16.msra.mxu0 0
      %383 = vmatprep.subr.bf16.mxu0 0
      %384 = vmatpush1.bf16.msra.mxu0 0
      %385 = vmatprep.subr.bf16.mxu0 0
      %386 = vmatpush1.bf16.msra.mxu0 0
      %387 = vmatprep.subr.bf16.mxu0 0
      %388 = vmatpush1.bf16.msra.mxu0 0
      %389 = vmatprep.subr.bf16.mxu0 0
      %390 = vmatpush1.bf16.msra.mxu0 %v373
      %391 = vmatprep.subr.bf16.mxu0 0
      %392 = vmatpush1.bf16.msra.mxu0 %v372
      %393 = vmatprep.subr.bf16.mxu0 0
      %394 = vmatpush1.bf16.msra.mxu0 %v371
      %395 = vmatprep.subr.bf16.mxu0 0
      %396 = vmatpush1.bf16.msra.mxu0 %v370
      %397 = vmatprep.subr.bf16.mxu0 0
      %398 = vmatpush2.bf16.msra.mxu0 0
      %399 = vmatprep.subr.bf16.mxu0 0
      %400 = vmatpush2.bf16.msra.mxu0 0
      %401 = vmatprep.subr.bf16.mxu0 0
      %402 = vmatpush2.bf16.msra.mxu0 0
      %403 = vmatprep.subr.bf16.mxu0 0
      %404 = vmatpush2.bf16.msra.mxu0 0
      %405 = vmatprep.subr.bf16.mxu0 0
      %406 = vmatpush2.bf16.msra.mxu0 0
      %407 = vmatprep.subr.bf16.mxu0 0
      %408 = vmatpush2.bf16.msra.mxu0 0
      %409 = vmatprep.subr.bf16.mxu0 0
      %410 = vmatpush2.bf16.msra.mxu0 0
      %411 = vmatprep.subr.bf16.mxu0 0
      %412 = vmatpush2.bf16.msra.mxu0 0
      %413 = vmatprep.mubr.bf16.mxu0 0
      %414 = vmatmul.mubr.bf16.gmra.mxu0 %v379
      %v415 = vpop.f32.mrf.mxu0
      %v416 = vadd.f32 %v352, %v415
      %v417 = vpop.f32.mrf.mxu0
      %v418 = vpop.f32.mrf.mxu0
      %v419 = vpop.f32.mrf.mxu0
      %420 = vdwg.mxu0
      %421 = vst [vmem:[%s301] sm:$0xff] %v416
      %p422 = scmp.lt.s32.totalorder %s19, 1
      %s423 = scalar_select %p422, %s19, 1
      %s424 = smul.addr %s423, 8
      %s425 = scalar_lea.vmem %s6, %s424
      %p426 = scmp.lt.s32.totalorder %s19, 1
      %s427 = scalar_select %p426, %s19, 1
      %s428 = smul.addr %s427, 8
      %s429 = scalar_lea.vmem %s7, %s428
      // Predicated region
      $region45: #{forward.7} parent=43 // pred_check
        %p430 = pneg %p173
      $region46: #{forward.7} parent=43 // pred_check_branch
        %432 = sbr.rel (%p430) target = $region48
      $region47: #{forward.7} parent=43 // pred_region
        _
      $region48: #{forward.7} parent=43 // pred_fallthru
        _
      // Predicated region
      $region49: #{forward.7} parent=43 // pred_check
        %p433 = pneg %p199
      $region50: #{forward.7} parent=43 // pred_check_branch
        %435 = sbr.rel (%p433) target = $region52
      $region51: #{forward.7} parent=43 // pred_region
        _
      $region52: #{forward.7} parent=43 // pred_fallthru
        _
    $region44: #{forward.7} parent=5 // pred_fallthru
      _
    %p436 = scmp.le.s32.totalorder 2, %s14
    // Predicated region
    $region53: #{forward.7} parent=5 // pred_check
      %p437 = pneg %p436
    $region54: #{forward.7} parent=5 // pred_check_branch
      %439 = sbr.rel (%p437) target = $region56
    $region55: #{forward.7} parent=5 // pred_region
      %s440 = ssub.s32 %s14, 2
      // Predicated region
      $region57: #{forward.7} parent=55 // pred_check
        %p441 = pneg %p179
      $region58: #{forward.7} parent=55 // pred_check_branch
        %443 = sbr.rel (%p441) target = $region60
      $region59: #{forward.7} parent=55 // pred_region
        %p444 = scmp.lt.s32.totalorder %s20, 1
        %s445 = scalar_select %p444, %s20, 1
        %s446 = smul.addr %s445, 8
        %s447 = scalar_lea.vmem %s6, %s446
      $region60: #{forward.7} parent=55 // pred_fallthru
        _
      // Predicated region
      $region61: #{forward.7} parent=55 // pred_check
        %p448 = pneg %p205
      $region62: #{forward.7} parent=55 // pred_check_branch
        %450 = sbr.rel (%p448) target = $region64
      $region63: #{forward.7} parent=55 // pred_region
        %p451 = scmp.lt.s32.totalorder %s20, 1
        %s452 = scalar_select %p451, %s20, 1
        %s453 = smul.addr %s452, 8
        %s454 = scalar_lea.vmem %s7, %s453
      $region64: #{forward.7} parent=55 // pred_fallthru
        _
    $region56: #{forward.7} parent=5 // pred_fallthru
      _
  $region6: #{forward.7} parent=0 // loop_footer
    %s18 = sadd.s32 1, %s14
  $region7: #{forward.7} parent=0 // loop_footer_branch
    %13 = sbr.rel target = $region3
  $region8: #{forward.7} parent=0 // loop_exit
    _

// kernel: forward.9
$region0: #{forward.9}
  #allocation0 [shape = 'u32[]', space=smem, size = 0x4, offset = 0x4, fixed_abs, tag = 'smem constant byte address 0x4 - core index']
  #allocation1 [shape = 'u32[144,128]{1,0:T(1,128)}', space=vmem, size = 0x12000, scoped, tag = 'internal scratch']
  #allocation2 [shape = 's32[1]{0}', space=sflag, size = 0x4, scoped, tag = 'scoped memory for forward.9']
  #allocation3 [shape = 'u8[512]{0}', space=smem, size = 0x200, scoped, tag = 'prefetched SMEM operand 0']
  %s0 = inlined_call_operand.vmem [shape: s32[4], index: 0, kind: input, shape index: {}]
  %s1 = inlined_call_operand.vmem [shape: f32[16,64], index: 1, kind: input, shape index: {}]
  %s2 = inlined_call_operand.vmem [shape: bf16[4,64,256], index: 2, kind: input, shape index: {}]
  %s3 = inlined_call_operand.vmem [shape: bf16[4,128,64], index: 3, kind: input, shape index: {}]
  %s4 = inlined_call_operand.vmem [shape: f32[4,16,1], index: 4, kind: input, shape index: {}]
  %s5 = inlined_call_operand.vmem [shape: f32[16,64], index: 5, kind: output, shape index: {}]
  %s6 = sld [smem:[#allocation0]]
  $region57: #{forward.9} parent=0
    _
  %s8 = ssub.s32 1, %s6
  %s9 = scalar_select 0, %s8, %s6
  %s10 = sshll.u32 %s0, 4
  %s11 = int_to_ptr.vmem [resolvable:$true] %s10
  %13 = dma.vmem_to_smem %s11, 16, [#allocation3], [#allocation2]
  %14 = dma.done [#allocation2], 16
  %15 = sfence
  loop: start=0, step=1, limit=6
  $region2: #{forward.9} parent=0 // loop_pre_header
    _
  $region3: #{forward.9} parent=0 // loop_header
    %s17 = sphi 0, %s21
    %p18 = scmp.ge.s32.totalorder %s17, 6
    %s25 = sphi 0, %s25
    %s27 = sphi 0, %s25
    %s28 = sphi 0, %s27
    %s42 = sphi 0, %s28
    %s48 = sphi 0, %s50
    %s51 = sphi 0, %s48
    %s52 = sphi 0, %s51
    %s68 = sphi 0, %s52
    %s74 = sphi 0, %s76
    %s77 = sphi 0, %s74
    %s78 = sphi 0, %s77
    %s94 = sphi 0, %s78
    %s100 = sphi 0, %s102
    %s103 = sphi 0, %s100
    %s104 = sphi 0, %s103
    %s120 = sphi 0, %s104
    %s124 = sphi 0, %s124
    %s126 = sphi 0, %s124
    %s127 = sphi 0, %s126
    %s141 = sphi 0, %s127
  $region4: #{forward.9} parent=0 // loop_header_branch
    %20 = sbr.rel (%p18) target = $region8
  $region5: #{forward.9} parent=0 // loop_body
    %s22 = ssub.s32 %s17, 1
    %s23 = ssub.s32 %s17, 2
    %s24 = sadd.s32 %s17, 1
    %s26 = sadd.s32 %s25, 1
    %p29 = scmp.eq.s32.totalorder %s17, 3
    %p30 = scmp.ne.s32.totalorder %s25, %s27
    %p31 = scmp.eq.s32.totalorder %s17, 0
    %p32 = por %p30, %p31
    %p33 = scmp.ne.s32.totalorder %s25, %s27
    %p34 = scmp.eq.s32.totalorder %s22, 3
    %p35 = por %p33, %p34
    %p36 = scmp.ne.s32.totalorder %s27, %s28
    %p37 = scmp.eq.s32.totalorder %s22, 0
    %p38 = por %p36, %p37
    %p39 = scmp.ne.s32.totalorder %s27, %s28
    %p40 = scmp.eq.s32.totalorder %s23, 3
    %p41 = por %p39, %p40
    %p43 = scmp.ne.s32.totalorder %s28, %s42
    %p44 = scmp.eq.s32.totalorder %s23, 0
    %p45 = por %p43, %p44
    %s46 = ssub.s32 %s17, %s24
    %p47 = scmp.eq.s32.totalorder %s46, 0
    %s49 = sadd.s32 %s48, 1
    %s50 = scalar_select %p47, %s48, %s49
    %p53 = pneg %p47
    %p54 = scmp.eq.s32.totalorder %s17, 3
    %p55 = por %p53, %p54
    %p56 = scmp.ne.s32.totalorder %s48, %s51
    %p57 = scmp.eq.s32.totalorder %s17, 0
    %p58 = por %p56, %p57
    %p59 = scmp.ne.s32.totalorder %s48, %s51
    %p60 = scmp.eq.s32.totalorder %s22, 3
    %p61 = por %p59, %p60
    %p62 = scmp.ne.s32.totalorder %s51, %s52
    %p63 = scmp.eq.s32.totalorder %s22, 0
    %p64 = por %p62, %p63
    %p65 = scmp.ne.s32.totalorder %s51, %s52
    %p66 = scmp.eq.s32.totalorder %s23, 3
    %p67 = por %p65, %p66
    %p69 = scmp.ne.s32.totalorder %s52, %s68
    %p70 = scmp.eq.s32.totalorder %s23, 0
    %p71 = por %p69, %p70
    %s72 = ssub.s32 %s17, %s24
    %p73 = scmp.eq.s32.totalorder %s72, 0
    %s75 = sadd.s32 %s74, 1
    %s76 = scalar_select %p73, %s74, %s75
    %p79 = pneg %p73
    %p80 = scmp.eq.s32.totalorder %s17, 3
    %p81 = por %p79, %p80
    %p82 = scmp.ne.s32.totalorder %s74, %s77
    %p83 = scmp.eq.s32.totalorder %s17, 0
    %p84 = por %p82, %p83
    %p85 = scmp.ne.s32.totalorder %s74, %s77
    %p86 = scmp.eq.s32.totalorder %s22, 3
    %p87 = por %p85, %p86
    %p88 = scmp.ne.s32.totalorder %s77, %s78
    %p89 = scmp.eq.s32.totalorder %s22, 0
    %p90 = por %p88, %p89
    %p91 = scmp.ne.s32.totalorder %s77, %s78
    %p92 = scmp.eq.s32.totalorder %s23, 3
    %p93 = por %p91, %p92
    %p95 = scmp.ne.s32.totalorder %s78, %s94
    %p96 = scmp.eq.s32.totalorder %s23, 0
    %p97 = por %p95, %p96
    %s98 = ssub.s32 %s17, %s24
    %p99 = scmp.eq.s32.totalorder %s98, 0
    %s101 = sadd.s32 %s100, 1
    %s102 = scalar_select %p99, %s100, %s101
    %p105 = pneg %p99
    %p106 = scmp.eq.s32.totalorder %s17, 3
    %p107 = por %p105, %p106
    %p108 = scmp.ne.s32.totalorder %s100, %s103
    %p109 = scmp.eq.s32.totalorder %s17, 0
    %p110 = por %p108, %p109
    %p111 = scmp.ne.s32.totalorder %s100, %s103
    %p112 = scmp.eq.s32.totalorder %s22, 3
    %p113 = por %p111, %p112
    %p114 = scmp.ne.s32.totalorder %s103, %s104
    %p115 = scmp.eq.s32.totalorder %s22, 0
    %p116 = por %p114, %p115
    %p117 = scmp.ne.s32.totalorder %s103, %s104
    %p118 = scmp.eq.s32.totalorder %s23, 3
    %p119 = por %p117, %p118
    %p121 = scmp.ne.s32.totalorder %s104, %s120
    %p122 = scmp.eq.s32.totalorder %s23, 0
    %p123 = por %p121, %p122
    %s125 = sadd.s32 %s124, 1
    %p128 = scmp.eq.s32.totalorder %s17, 3
    %p129 = scmp.ne.s32.totalorder %s124, %s126
    %p130 = scmp.eq.s32.totalorder %s17, 0
    %p131 = por %p129, %p130
    %p132 = scmp.ne.s32.totalorder %s124, %s126
    %p133 = scmp.eq.s32.totalorder %s22, 3
    %p134 = por %p132, %p133
    %p135 = scmp.ne.s32.totalorder %s126, %s127
    %p136 = scmp.eq.s32.totalorder %s22, 0
    %p137 = por %p135, %p136
    %p138 = scmp.ne.s32.totalorder %s126, %s127
    %p139 = scmp.eq.s32.totalorder %s23, 3
    %p140 = por %p138, %p139
    %p142 = scmp.ne.s32.totalorder %s127, %s141
    %p143 = scmp.eq.s32.totalorder %s23, 0
    %p144 = por %p142, %p143
    %p145 = scmp.le.s32.totalorder 1, %s17
    %p146 = scmp.lt.s32.totalorder %s17, 5
    %p147 = pnand %p145, %p146
    %p148 = pneg %p147
    // Predicated region
    $region9: #{forward.9} parent=5 // pred_check
      _
    $region10: #{forward.9} parent=5 // pred_check_branch
      %150 = sbr.rel (%p147) target = $region12
    $region11: #{forward.9} parent=5 // pred_region
      %s151 = ssub.s32 %s17, 1
      // Predicated region
      $region13: #{forward.9} parent=11 // pred_check
        %p152 = pneg %p38
      $region14: #{forward.9} parent=11 // pred_check_branch
        %154 = sbr.rel (%p152) target = $region16
      $region15: #{forward.9} parent=11 // pred_region
        _
      $region16: #{forward.9} parent=11 // pred_fallthru
        _
    $region12: #{forward.9} parent=5 // pred_fallthru
      _
    %p155 = scmp.lt.s32.totalorder %s17, 4
    // Predicated region
    $region17: #{forward.9} parent=5 // pred_check
      %p156 = pneg %p155
    $region18: #{forward.9} parent=5 // pred_check_branch
      %158 = sbr.rel (%p156) target = $region20
    $region19: #{forward.9} parent=5 // pred_region
      // Predicated region
      $region21: #{forward.9} parent=19 // pred_check
        %p159 = pneg %p58
      $region22: #{forward.9} parent=19 // pred_check_branch
        %161 = sbr.rel (%p159) target = $region24
      $region23: #{forward.9} parent=19 // pred_region
        %p162 = scmp.lt.s32.totalorder %s17, 3
        %s163 = scalar_select %p162, %s17, 3
        %s164 = smul.addr %s163, 16
        %s165 = smul.addr %s164, 4
        %s166 = scalar_lea.vmem %s2, %s165
      $region24: #{forward.9} parent=19 // pred_fallthru
        _
      // Predicated region
      $region25: #{forward.9} parent=19 // pred_check
        %p167 = pneg %p84
      $region26: #{forward.9} parent=19 // pred_check_branch
        %169 = sbr.rel (%p167) target = $region28
      $region27: #{forward.9} parent=19 // pred_region
        %p170 = scmp.lt.s32.totalorder %s17, 3
        %s171 = scalar_select %p170, %s17, 3
        %s172 = smul.addr %s171, 16
        %s173 = smul.addr %s172, 4
        %s174 = scalar_lea.vmem %s3, %s173
      $region28: #{forward.9} parent=19 // pred_fallthru
        _
      // Predicated region
      $region29: #{forward.9} parent=19 // pred_check
        %p175 = pneg %p110
      $region30: #{forward.9} parent=19 // pred_check_branch
        %177 = sbr.rel (%p175) target = $region32
      $region31: #{forward.9} parent=19 // pred_region
        %p178 = scmp.lt.s32.totalorder %s17, 3
        %s179 = scalar_select %p178, %s17, 3
        %s180 = smul.addr %s179, 2
        %s181 = smul.addr %s180, 8
        %s182 = scalar_lea.vmem %s4, %s181
      $region32: #{forward.9} parent=19 // pred_fallthru
        _
    $region20: #{forward.9} parent=5 // pred_fallthru
      _
    %p183 = scmp.le.s32.totalorder 1, %s17
    %p184 = scmp.lt.s32.totalorder %s17, 5
    %p185 = pnand %p183, %p184
    %p186 = pneg %p185
    // Predicated region
    $region33: #{forward.9} parent=5 // pred_check
      _
    $region34: #{forward.9} parent=5 // pred_check_branch
      %188 = sbr.rel (%p185) target = $region36
    $region35: #{forward.9} parent=5 // pred_region
      %s189 = ssub.s32 %s17, 1
      %p190 = pneg %p38
      %p191 = pneg %p35
      %p192 = scmp.lt.s32.totalorder %s22, 3
      %s193 = scalar_select %p192, %s22, 3
      %s194 = smul.addr %s193, 16
      %s195 = smul.addr %s194, 4
      %s196 = scalar_lea.vmem %s2, %s195
      %p197 = pneg %p64
      %p198 = pneg %p61
      %p199 = scmp.lt.s32.totalorder %s22, 3
      %s200 = scalar_select %p199, %s22, 3
      %s201 = smul.addr %s200, 16
      %s202 = smul.addr %s201, 4
      %s203 = scalar_lea.vmem %s3, %s202
      %p204 = pneg %p90
      %p205 = pneg %p87
      %p206 = scmp.lt.s32.totalorder %s22, 3
      %s207 = scalar_select %p206, %s22, 3
      %s208 = smul.addr %s207, 2
      %s209 = smul.addr %s208, 8
      %s210 = scalar_lea.vmem %s4, %s209
      %p211 = pneg %p116
      %p212 = pneg %p113
      %p213 = pneg %p137
      %p214 = pneg %p134
      %p215 = scmp.lt.s32.totalorder %s22, 3
      %s216 = scalar_select %p215, %s22, 3
      %s217 = smul.addr %s216, 16
      %s218 = smul.addr %s217, 4
      %s219 = scalar_lea.vmem %s2, %s218
      %p220 = scmp.lt.s32.totalorder %s22, 3
      %s221 = scalar_select %p220, %s22, 3
      %s222 = smul.addr %s221, 16
      %s223 = smul.addr %s222, 4
      %s224 = scalar_lea.vmem %s3, %s223
      %p225 = scmp.lt.s32.totalorder %s22, 3
      %s226 = scalar_select %p225, %s22, 3
      %s227 = smul.addr %s226, 2
      %s228 = smul.addr %s227, 8
      %s229 = scalar_lea.vmem %s4, %s228
      %p231 = scmp.eq.s32.totalorder %s22, 0
      // Predicated region
      $region37: #{forward.9} parent=35 // pred_check
        %p232 = pneg %p231
      $region38: #{forward.9} parent=35 // pred_check_branch
        %234 = sbr.rel (%p232) target = $region40
      $region39: #{forward.9} parent=35 // pred_region
        %vm235 = vcmask 523264
        %236 = vst.msk [vmem:[%s5] sm:$0xff] %vm235, 0.0
        %237 = vst.msk [vmem:[%s5 + $0x8] sm:$0xff] %vm235, 0.0
      $region40: #{forward.9} parent=35 // pred_fallthru
        _
      %s238 = sld [smem:[#allocation3 + %s22]]
      %p239 = scmp.gt.s32.totalorder %s238, 0
      // Predicated region
      $region41: #{forward.9} parent=35 // pred_check
        %p240 = pneg %p239
      $region42: #{forward.9} parent=35 // pred_check_branch
        %242 = sbr.rel (%p240) target = $region44
      $region43: #{forward.9} parent=35 // pred_region
        %v243 = vld [vmem:[%s1] sm:$0xff]
        %v244 = vld [vmem:[%s1 + $0x8] sm:$0xff]
        %v245 = vpack.c.bf16 %v244, %v243
        %v246 = vld [vmem:[%s219] sm:$0xff]
        %v247 = vld [vmem:[%s219 + $0x8] sm:$0xff]
        %v248 = vld [vmem:[%s219 + $0x10] sm:$0xff]
        %v249 = vld [vmem:[%s219 + $0x18] sm:$0xff]
        %v250 = vld [vmem:[%s219 + $0x20] sm:$0xff]
        %v251 = vld [vmem:[%s219 + $0x28] sm:$0xff]
        %v252 = vld [vmem:[%s219 + $0x30] sm:$0xff]
        %v253 = vld [vmem:[%s219 + $0x38] sm:$0xff]
        %v262 = vunpack.c.l.b16 %v246
        %v263 = vunpack.c.h.b16 %v246
        %v264 = vunpack.c.l.b16 %v247
        %v265 = vunpack.c.h.b16 %v247
        %v266 = vunpack.c.l.b16 %v248
        %v267 = vunpack.c.h.b16 %v248
        %v268 = vunpack.c.l.b16 %v249
        %v269 = vunpack.c.h.b16 %v249
        %v270 = vunpack.c.l.b16 %v250
        %v271 = vunpack.c.h.b16 %v250
        %v272 = vunpack.c.l.b16 %v251
        %v273 = vunpack.c.h.b16 %v251
        %v274 = vunpack.c.l.b16 %v252
        %v275 = vunpack.c.h.b16 %v252
        %v276 = vunpack.c.l.b16 %v253
        %v277 = vunpack.c.h.b16 %v253
        %v278 = vpack.c.b16 %v264, %v262
        %v279 = vpack.c.b16 %v265, %v263
        %v280 = vpack.c.b16 %v268, %v266
        %v281 = vpack.c.b16 %v269, %v267
        %v282 = vpack.c.b16 %v272, %v270
        %v283 = vpack.c.b16 %v273, %v271
        %v284 = vpack.c.b16 %v276, %v274
        %v285 = vpack.c.b16 %v277, %v275
        %vm294 = vcmask 523264
        %v296 = vsel %vm294, %v245, 0
        %298 = vmatprep.subr.bf16.mxu0 0
        %299 = vmatpush1.bf16.msra.mxu0 0
        %300 = vmatprep.subr.bf16.mxu0 0
        %301 = vmatpush1.bf16.msra.mxu0 0
        %302 = vmatprep.subr.bf16.mxu0 0
        %303 = vmatpush1.bf16.msra.mxu0 0
        %304 = vmatprep.subr.bf16.mxu0 0
        %305 = vmatpush1.bf16.msra.mxu0 0
        %306 = vmatprep.subr.bf16.mxu0 %v285
        %307 = vmatpush1.bf16.msra.mxu0 %v284
        %308 = vmatprep.subr.bf16.mxu0 %v283
        %309 = vmatpush1.bf16.msra.mxu0 %v282
        %310 = vmatprep.subr.bf16.mxu0 %v281
        %311 = vmatpush1.bf16.msra.mxu0 %v280
        %312 = vmatprep.subr.bf16.mxu0 %v279
        %313 = vmatpush1.bf16.msra.mxu0 %v278
        %314 = vmatprep.subr.bf16.mxu0 0
        %315 = vmatpush2.bf16.msra.mxu0 0
        %316 = vmatprep.subr.bf16.mxu0 0
        %317 = vmatpush2.bf16.msra.mxu0 0
        %318 = vmatprep.subr.bf16.mxu0 0
        %319 = vmatpush2.bf16.msra.mxu0 0
        %320 = vmatprep.subr.bf16.mxu0 0
        %321 = vmatpush2.bf16.msra.mxu0 0
        %322 = vmatprep.subr.bf16.mxu0 0
        %323 = vmatpush2.bf16.msra.mxu0 0
        %324 = vmatprep.subr.bf16.mxu0 0
        %325 = vmatpush2.bf16.msra.mxu0 0
        %326 = vmatprep.subr.bf16.mxu0 0
        %327 = vmatpush2.bf16.msra.mxu0 0
        %328 = vmatprep.subr.bf16.mxu0 0
        %329 = vmatpush2.bf16.msra.mxu0 0
        %330 = vmatprep.mubr.bf16.mxu0 0
        %331 = vmatmul.mubr.bf16.gmra.mxu0 %v296
        %v332 = vpop.f32.mrf.mxu0
        %v333 = vadd.f32 0.0, %v332
        %v334 = vpop.f32.mrf.mxu0
        %v335 = vadd.f32 0.0, %v334
        %v336 = vpop.f32.mrf.mxu0
        %v337 = vadd.f32 0.0, %v336
        %v338 = vpop.f32.mrf.mxu0
        %v339 = vadd.f32 0.0, %v338
        %340 = vdwg.mxu0
        %v341 = vxor.u32 %v333, 2147483648
        %v342 = vxor.u32 %v337, 2147483648
        %v343 = vmul.f32 %v341, 1.442695
        %v344 = vpow.pop %v343
        %v345 = vmul.f32 %v342, 1.442695
        %v346 = vpow.pop %v345
        %v347 = vadd.f32 %v344, 1.0
        %v348 = vadd.f32 %v346, 1.0
        %v349 = vrcp.pop %v347
        %v350 = vmul.f32 1.0, %v349
        %v351 = vrcp.pop %v348
        %v352 = vmul.f32 1.0, %v351
        %v353 = vmul.f32 %v333, %v350
        %v354 = vmul.f32 %v337, %v352
        %v355 = vmul.f32 %v353, %v335
        %v356 = vmul.f32 %v354, %v339
        %v357 = vpack.c.bf16 %v356, %v355
        %v358 = vld [vmem:[%s224] sm:$0xf]
        %v359 = vld [vmem:[%s224 + $0x4] sm:$0xf]
        %v360 = vld [vmem:[%s224 + $0x8] sm:$0xf]
        %v361 = vld [vmem:[%s224 + $0xc] sm:$0xf]
        %v362 = vld [vmem:[%s224 + $0x10] sm:$0xf]
        %v363 = vld [vmem:[%s224 + $0x14] sm:$0xf]
        %v364 = vld [vmem:[%s224 + $0x18] sm:$0xf]
        %v365 = vld [vmem:[%s224 + $0x1c] sm:$0xf]
        %v366 = vld [vmem:[%s224 + $0x20] sm:$0xf]
        %v367 = vld [vmem:[%s224 + $0x24] sm:$0xf]
        %v368 = vld [vmem:[%s224 + $0x28] sm:$0xf]
        %v369 = vld [vmem:[%s224 + $0x2c] sm:$0xf]
        %v370 = vld [vmem:[%s224 + $0x30] sm:$0xf]
        %v371 = vld [vmem:[%s224 + $0x34] sm:$0xf]
        %v372 = vld [vmem:[%s224 + $0x38] sm:$0xf]
        %v373 = vld [vmem:[%s224 + $0x3c] sm:$0xf]
        %v390 = vunpack.c.l.b16 %v358
        %v391 = vunpack.c.l.b16 %v359
        %v392 = vunpack.c.l.b16 %v360
        %v393 = vunpack.c.l.b16 %v361
        %v394 = vunpack.c.l.b16 %v362
        %v395 = vunpack.c.l.b16 %v363
        %v396 = vunpack.c.l.b16 %v364
        %v397 = vunpack.c.l.b16 %v365
        %v398 = vunpack.c.l.b16 %v366
        %v399 = vunpack.c.l.b16 %v367
        %v400 = vunpack.c.l.b16 %v368
        %v401 = vunpack.c.l.b16 %v369
        %v402 = vunpack.c.l.b16 %v370
        %v403 = vunpack.c.l.b16 %v371
        %v404 = vunpack.c.l.b16 %v372
        %v405 = vunpack.c.l.b16 %v373
        %v406 = vpack.c.b16 %v391, %v390
        %v407 = vpack.c.b16 %v393, %v392
        %v408 = vpack.c.b16 %v395, %v394
        %v409 = vpack.c.b16 %v397, %v396
        %v410 = vpack.c.b16 %v399, %v398
        %v411 = vpack.c.b16 %v401, %v400
        %v412 = vpack.c.b16 %v403, %v402
        %v413 = vpack.c.b16 %v405, %v404
        %422 = vmatprep.subr.bf16.mxu0 0
        %423 = vmatpush1.bf16.msra.mxu0 %v413
        %424 = vmatprep.subr.bf16.mxu0 0
        %425 = vmatpush1.bf16.msra.mxu0 %v412
        %426 = vmatprep.subr.bf16.mxu0 0
        %427 = vmatpush1.bf16.msra.mxu0 %v411
        %428 = vmatprep.subr.bf16.mxu0 0
        %429 = vmatpush1.bf16.msra.mxu0 %v410
        %430 = vmatprep.subr.bf16.mxu0 0
        %431 = vmatpush1.bf16.msra.mxu0 %v409
        %432 = vmatprep.subr.bf16.mxu0 0
        %433 = vmatpush1.bf16.msra.mxu0 %v408
        %434 = vmatprep.subr.bf16.mxu0 0
        %435 = vmatpush1.bf16.msra.mxu0 %v407
        %436 = vmatprep.subr.bf16.mxu0 0
        %437 = vmatpush1.bf16.msra.mxu0 %v406
        %438 = vmatprep.subr.bf16.mxu0 0
        %439 = vmatpush2.bf16.msra.mxu0 0
        %440 = vmatprep.subr.bf16.mxu0 0
        %441 = vmatpush2.bf16.msra.mxu0 0
        %442 = vmatprep.subr.bf16.mxu0 0
        %443 = vmatpush2.bf16.msra.mxu0 0
        %444 = vmatprep.subr.bf16.mxu0 0
        %445 = vmatpush2.bf16.msra.mxu0 0
        %446 = vmatprep.subr.bf16.mxu0 0
        %447 = vmatpush2.bf16.msra.mxu0 0
        %448 = vmatprep.subr.bf16.mxu0 0
        %449 = vmatpush2.bf16.msra.mxu0 0
        %450 = vmatprep.subr.bf16.mxu0 0
        %451 = vmatpush2.bf16.msra.mxu0 0
        %452 = vmatprep.subr.bf16.mxu0 0
        %453 = vmatpush2.bf16.msra.mxu0 0
        %454 = vmatprep.mubr.bf16.mxu0 0
        %455 = vmatmul.mubr.bf16.gmra.mxu0 %v357
        %v456 = vpop.f32.mrf.mxu0
        %v457 = vadd.f32 0.0, %v456
        %v458 = vpop.f32.mrf.mxu0
        %v459 = vpop.f32.mrf.mxu0
        %v460 = vadd.f32 0.0, %v459
        %v461 = vpop.f32.mrf.mxu0
        %462 = vdwg.mxu0
        %v463 = vld [vmem:[%s5] sm:$0xff]
        %v464 = vld [vmem:[%s5 + $0x8] sm:$0xff]
        %v465 = vld [vmem:[%s229] sm:$0xff]
        %v466 = vld [vmem:[%s229 + $0x8] sm:$0xff]
        %468 = vset.pattern.permute.xlu0 0
        %469 = vperm.xlu0 %468, %v465
        %v470 = vpop.permute.xlu0 %469
        %473 = vset.pattern.permute.xlu0 0
        %474 = vperm.xlu0 %473, %v466
        %v475 = vpop.permute.xlu0 %474
        %v477 = vmul.f32 %v470, %v457
        %v478 = vmul.f32 %v475, %v460
        %v479 = vadd.f32 %v463, %v477
        %v480 = vadd.f32 %v464, %v478
        %481 = vst.msk [vmem:[%s5] sm:$0xff] %vm294, %v479
        %482 = vst.msk [vmem:[%s5 + $0x8] sm:$0xff] %vm294, %v480
      $region44: #{forward.9} parent=35 // pred_fallthru
        _
      // Predicated region
      $region45: #{forward.9} parent=35 // pred_check
        %p483 = pneg %p134
      $region46: #{forward.9} parent=35 // pred_check_branch
        %485 = sbr.rel (%p483) target = $region48
      $region47: #{forward.9} parent=35 // pred_region
        _
      $region48: #{forward.9} parent=35 // pred_fallthru
        _
      // Predicated region
      $region49: #{forward.9} parent=35 // pred_check
        %p486 = pneg %p134
      $region50: #{forward.9} parent=35 // pred_check_branch
        %488 = sbr.rel (%p486) target = $region52
      $region51: #{forward.9} parent=35 // pred_region
        _
      $region52: #{forward.9} parent=35 // pred_fallthru
        _
    $region36: #{forward.9} parent=5 // pred_fallthru
      _
    %p489 = scmp.le.s32.totalorder 2, %s17
    // Predicated region
    $region53: #{forward.9} parent=5 // pred_check
      %p490 = pneg %p489
    $region54: #{forward.9} parent=5 // pred_check_branch
      %492 = sbr.rel (%p490) target = $region56
    $region55: #{forward.9} parent=5 // pred_region
      %s493 = ssub.s32 %s17, 2
    $region56: #{forward.9} parent=5 // pred_fallthru
      _
  $region6: #{forward.9} parent=0 // loop_footer
    %s21 = sadd.s32 1, %s17
  $region7: #{forward.9} parent=0 // loop_footer_branch
    %16 = sbr.rel target = $region3
  $region8: #{forward.9} parent=0 // loop_exit
    _

// kernel: forward.13
$region0: #{forward.13}
  #allocation0 [shape = 'u32[]', space=smem, size = 0x4, offset = 0x4, fixed_abs, tag = 'smem constant byte address 0x4 - core index']
  #allocation1 [shape = 'u32[144,128]{1,0:T(1,128)}', space=vmem, size = 0x12000, scoped, tag = 'internal scratch']
  %s0 = inlined_call_operand.vmem [shape: f32[16,64], index: 0, kind: input, shape index: {}]
  %s1 = inlined_call_operand.vmem [shape: f32[16,64], index: 1, kind: input, shape index: {}]
  %s2 = inlined_call_operand.vmem [shape: f32[1,64], index: 2, kind: input, shape index: {}]
  %s3 = inlined_call_operand.vmem [shape: f32[1,64], index: 3, kind: input, shape index: {}]
  %s4 = inlined_call_operand.vmem [shape: bf16[64,256], index: 4, kind: input, shape index: {}]
  %s5 = inlined_call_operand.vmem [shape: f32[1,256], index: 5, kind: input, shape index: {}]
  %s6 = inlined_call_operand.hbm [shape: f32[16,64], index: 6, kind: output, shape index: {0}]
  %s7 = inlined_call_operand.hbm [shape: f32[16,256], index: 7, kind: output, shape index: {1}]
  %8 = xla_tuple %s6, %s7
  %s9 = sld [smem:[#allocation0]]
  $region110: #{forward.13} parent=0
    _
  %s11 = ssub.s32 1, %s9
  %s12 = scalar_select 0, %s11, %s9
  $region1: #{forward.13} parent=0
    #allocation2 [shape = 'u8[32768]{0}', space=vmem, size = 0x8000, scoped, tag = 'input window, operand 4']
    #allocation3 [shape = 'u8[8192]{0}', space=vmem, size = 0x2000, scoped, tag = 'output window, operand 0']
    #allocation4 [shape = 's32[2]{0}', space=sflag, size = 0x8, scoped, tag = 'scoped memory for forward.13']
    #allocation5 [shape = 'u8[8192]{0}', space=vmem, size = 0x2000, scoped, tag = 'output window, operand 1']
    #allocation6 [shape = 's32[2]{0}', space=sflag, size = 0x8, scoped, tag = 'scoped memory for forward.13']
    %13 = vsyncpa [#allocation4], 0
    %s14 = scalar_lea.sflag [#allocation4], 1
    %15 = vsyncpa %s14, 0
    %16 = vsyncpa [#allocation6], 0
    %s17 = scalar_lea.sflag [#allocation6], 1
    %18 = vsyncpa %s17, 0
    loop: start=0, step=1, limit=6
    $region2: #{forward.13} parent=1 // loop_pre_header
      _
    $region3: #{forward.13} parent=1 // loop_header
      %s20 = sphi 0, %s24
      %p21 = scmp.ge.s32.totalorder %s20, 6
      %s27 = sphi 0, %s39
      %s28 = sphi 0, %s35
      %s29 = sphi 0, %s27
      %s30 = sphi 0, %s28
      %s31 = sphi 0, %s29
      %s32 = sphi 0, %s30
      %s42 = sphi 0, %s44
      %s45 = sphi 0, %s42
      %s46 = sphi 0, %s45
      %s62 = sphi 0, %s46
      %s68 = sphi 0, %s70
      %s71 = sphi 0, %s68
      %s72 = sphi 0, %s71
      %s88 = sphi 0, %s72
      %s92 = sphi 0, %s92
      %s94 = sphi 0, %s92
      %s95 = sphi 0, %s94
      %s109 = sphi 0, %s95
      %s113 = sphi 0, %s113
      %s115 = sphi 0, %s113
      %s116 = sphi 0, %s115
      %s130 = sphi 0, %s116
      %s136 = sphi 0, %s138
      %s139 = sphi 0, %s136
      %s140 = sphi 0, %s139
      %s156 = sphi 0, %s140
      %s162 = sphi 0, %s164
      %s165 = sphi 0, %s162
      %s166 = sphi 0, %s165
      %s182 = sphi 0, %s166
      %s188 = sphi 0, %s190
      %s191 = sphi 0, %s188
      %s192 = sphi 0, %s191
      %s208 = sphi 0, %s192
      %s216 = sphi 0, %s218
      %s219 = sphi 0, %s216
      %s220 = sphi 0, %s219
      %s236 = sphi 0, %s220
    $region4: #{forward.13} parent=1 // loop_header_branch
      %23 = sbr.rel (%p21) target = $region8
    $region5: #{forward.13} parent=1 // loop_body
      %s25 = ssub.s32 %s20, 1
      %s26 = ssub.s32 %s20, 2
      %s33 = sadd.s32 1, %s28
      %p34 = scmp.ge.s32.totalorder %s33, 2
      %s35 = scalar_select %p34, 0, %s33
      %s36 = sadd.s32 1, %s27
      %s37 = scalar_select %p34, %s36, %s27
      %p38 = scmp.ge.s32.totalorder %s37, 2
      %s39 = scalar_select %p38, 0, %s37
      %s40 = ssub.s32 %s27, %s39
      %p41 = scmp.eq.s32.totalorder %s40, 0
      %s43 = sadd.s32 %s42, 1
      %s44 = scalar_select %p41, %s42, %s43
      %p47 = pneg %p41
      %p48 = scmp.eq.s32.totalorder %s20, 3
      %p49 = por %p47, %p48
      %p50 = scmp.ne.s32.totalorder %s42, %s45
      %p51 = scmp.eq.s32.totalorder %s20, 0
      %p52 = por %p50, %p51
      %p53 = scmp.ne.s32.totalorder %s42, %s45
      %p54 = scmp.eq.s32.totalorder %s25, 3
      %p55 = por %p53, %p54
      %p56 = scmp.ne.s32.totalorder %s45, %s46
      %p57 = scmp.eq.s32.totalorder %s25, 0
      %p58 = por %p56, %p57
      %p59 = scmp.ne.s32.totalorder %s45, %s46
      %p60 = scmp.eq.s32.totalorder %s26, 3
      %p61 = por %p59, %p60
      %p63 = scmp.ne.s32.totalorder %s46, %s62
      %p64 = scmp.eq.s32.totalorder %s26, 0
      %p65 = por %p63, %p64
      %s66 = ssub.s32 %s27, %s39
      %p67 = scmp.eq.s32.totalorder %s66, 0
      %s69 = sadd.s32 %s68, 1
      %s70 = scalar_select %p67, %s68, %s69
      %p73 = pneg %p67
      %p74 = scmp.eq.s32.totalorder %s20, 3
      %p75 = por %p73, %p74
      %p76 = scmp.ne.s32.totalorder %s68, %s71
      %p77 = scmp.eq.s32.totalorder %s20, 0
      %p78 = por %p76, %p77
      %p79 = scmp.ne.s32.totalorder %s68, %s71
      %p80 = scmp.eq.s32.totalorder %s25, 3
      %p81 = por %p79, %p80
      %p82 = scmp.ne.s32.totalorder %s71, %s72
      %p83 = scmp.eq.s32.totalorder %s25, 0
      %p84 = por %p82, %p83
      %p85 = scmp.ne.s32.totalorder %s71, %s72
      %p86 = scmp.eq.s32.totalorder %s26, 3
      %p87 = por %p85, %p86
      %p89 = scmp.ne.s32.totalorder %s72, %s88
      %p90 = scmp.eq.s32.totalorder %s26, 0
      %p91 = por %p89, %p90
      %s93 = sadd.s32 %s92, 1
      %p96 = scmp.eq.s32.totalorder %s20, 3
      %p97 = scmp.ne.s32.totalorder %s92, %s94
      %p98 = scmp.eq.s32.totalorder %s20, 0
      %p99 = por %p97, %p98
      %p100 = scmp.ne.s32.totalorder %s92, %s94
      %p101 = scmp.eq.s32.totalorder %s25, 3
      %p102 = por %p100, %p101
      %p103 = scmp.ne.s32.totalorder %s94, %s95
      %p104 = scmp.eq.s32.totalorder %s25, 0
      %p105 = por %p103, %p104
      %p106 = scmp.ne.s32.totalorder %s94, %s95
      %p107 = scmp.eq.s32.totalorder %s26, 3
      %p108 = por %p106, %p107
      %p110 = scmp.ne.s32.totalorder %s95, %s109
      %p111 = scmp.eq.s32.totalorder %s26, 0
      %p112 = por %p110, %p111
      %s114 = sadd.s32 %s113, 1
      %p117 = scmp.eq.s32.totalorder %s20, 3
      %p118 = scmp.ne.s32.totalorder %s113, %s115
      %p119 = scmp.eq.s32.totalorder %s20, 0
      %p120 = por %p118, %p119
      %p121 = scmp.ne.s32.totalorder %s113, %s115
      %p122 = scmp.eq.s32.totalorder %s25, 3
      %p123 = por %p121, %p122
      %p124 = scmp.ne.s32.totalorder %s115, %s116
      %p125 = scmp.eq.s32.totalorder %s25, 0
      %p126 = por %p124, %p125
      %p127 = scmp.ne.s32.totalorder %s115, %s116
      %p128 = scmp.eq.s32.totalorder %s26, 3
      %p129 = por %p127, %p128
      %p131 = scmp.ne.s32.totalorder %s116, %s130
      %p132 = scmp.eq.s32.totalorder %s26, 0
      %p133 = por %p131, %p132
      %s134 = ssub.s32 %s28, %s35
      %p135 = scmp.eq.s32.totalorder %s134, 0
      %s137 = sadd.s32 %s136, 1
      %s138 = scalar_select %p135, %s136, %s137
      %p141 = pneg %p135
      %p142 = scmp.eq.s32.totalorder %s20, 3
      %p143 = por %p141, %p142
      %p144 = scmp.ne.s32.totalorder %s136, %s139
      %p145 = scmp.eq.s32.totalorder %s20, 0
      %p146 = por %p144, %p145
      %p147 = scmp.ne.s32.totalorder %s136, %s139
      %p148 = scmp.eq.s32.totalorder %s25, 3
      %p149 = por %p147, %p148
      %p150 = scmp.ne.s32.totalorder %s139, %s140
      %p151 = scmp.eq.s32.totalorder %s25, 0
      %p152 = por %p150, %p151
      %p153 = scmp.ne.s32.totalorder %s139, %s140
      %p154 = scmp.eq.s32.totalorder %s26, 3
      %p155 = por %p153, %p154
      %p157 = scmp.ne.s32.totalorder %s140, %s156
      %p158 = scmp.eq.s32.totalorder %s26, 0
      %p159 = por %p157, %p158
      %s160 = ssub.s32 %s28, %s35
      %p161 = scmp.eq.s32.totalorder %s160, 0
      %s163 = sadd.s32 %s162, 1
      %s164 = scalar_select %p161, %s162, %s163
      %p167 = pneg %p161
      %p168 = scmp.eq.s32.totalorder %s20, 3
      %p169 = por %p167, %p168
      %p170 = scmp.ne.s32.totalorder %s162, %s165
      %p171 = scmp.eq.s32.totalorder %s20, 0
      %p172 = por %p170, %p171
      %p173 = scmp.ne.s32.totalorder %s162, %s165
      %p174 = scmp.eq.s32.totalorder %s25, 3
      %p175 = por %p173, %p174
      %p176 = scmp.ne.s32.totalorder %s165, %s166
      %p177 = scmp.eq.s32.totalorder %s25, 0
      %p178 = por %p176, %p177
      %p179 = scmp.ne.s32.totalorder %s165, %s166
      %p180 = scmp.eq.s32.totalorder %s26, 3
      %p181 = por %p179, %p180
      %p183 = scmp.ne.s32.totalorder %s166, %s182
      %p184 = scmp.eq.s32.totalorder %s26, 0
      %p185 = por %p183, %p184
      %s186 = ssub.s32 %s27, %s39
      %p187 = scmp.eq.s32.totalorder %s186, 0
      %s189 = sadd.s32 %s188, 1
      %s190 = scalar_select %p187, %s188, %s189
      %p193 = pneg %p187
      %p194 = scmp.eq.s32.totalorder %s20, 3
      %p195 = por %p193, %p194
      %p196 = scmp.ne.s32.totalorder %s188, %s191
      %p197 = scmp.eq.s32.totalorder %s20, 0
      %p198 = por %p196, %p197
      %p199 = scmp.ne.s32.totalorder %s188, %s191
      %p200 = scmp.eq.s32.totalorder %s25, 3
      %p201 = por %p199, %p200
      %p202 = scmp.ne.s32.totalorder %s191, %s192
      %p203 = scmp.eq.s32.totalorder %s25, 0
      %p204 = por %p202, %p203
      %p205 = scmp.ne.s32.totalorder %s191, %s192
      %p206 = scmp.eq.s32.totalorder %s26, 3
      %p207 = por %p205, %p206
      %p209 = scmp.ne.s32.totalorder %s192, %s208
      %p210 = scmp.eq.s32.totalorder %s26, 0
      %p211 = por %p209, %p210
      %s212 = ssub.s32 %s27, %s39
      %s213 = ssub.s32 %s28, %s35
      %s214 = sor.u32 %s212, %s213
      %p215 = scmp.eq.s32.totalorder %s214, 0
      %s217 = sadd.s32 %s216, 1
      %s218 = scalar_select %p215, %s216, %s217
      %p221 = pneg %p215
      %p222 = scmp.eq.s32.totalorder %s20, 3
      %p223 = por %p221, %p222
      %p224 = scmp.ne.s32.totalorder %s216, %s219
      %p225 = scmp.eq.s32.totalorder %s20, 0
      %p226 = por %p224, %p225
      %p227 = scmp.ne.s32.totalorder %s216, %s219
      %p228 = scmp.eq.s32.totalorder %s25, 3
      %p229 = por %p227, %p228
      %p230 = scmp.ne.s32.totalorder %s219, %s220
      %p231 = scmp.eq.s32.totalorder %s25, 0
      %p232 = por %p230, %p231
      %p233 = scmp.ne.s32.totalorder %s219, %s220
      %p234 = scmp.eq.s32.totalorder %s26, 3
      %p235 = por %p233, %p234
      %p237 = scmp.ne.s32.totalorder %s220, %s236
      %p238 = scmp.eq.s32.totalorder %s26, 0
      %p239 = por %p237, %p238
      %p240 = scmp.le.s32.totalorder 1, %s20
      %p241 = scmp.lt.s32.totalorder %s20, 5
      %p242 = pnand %p240, %p241
      %p243 = pneg %p242
      // Predicated region
      $region9: #{forward.13} parent=5 // pred_check
        _
      $region10: #{forward.13} parent=5 // pred_check_branch
        %245 = sbr.rel (%p242) target = $region12
      $region11: #{forward.13} parent=5 // pred_region
        %s246 = ssub.s32 %s20, 1
        // Predicated region
        $region13: #{forward.13} parent=11 // pred_check
          %p247 = pneg %p105
        $region14: #{forward.13} parent=11 // pred_check_branch
          %249 = sbr.rel (%p247) target = $region16
        $region15: #{forward.13} parent=11 // pred_region
          _
        $region16: #{forward.13} parent=11 // pred_fallthru
          _
        // Predicated region
        $region17: #{forward.13} parent=11 // pred_check
          %p250 = pneg %p126
        $region18: #{forward.13} parent=11 // pred_check_branch
          %252 = sbr.rel (%p250) target = $region20
        $region19: #{forward.13} parent=11 // pred_region
          _
        $region20: #{forward.13} parent=11 // pred_fallthru
          _
      $region12: #{forward.13} parent=5 // pred_fallthru
        _
      %p253 = scmp.lt.s32.totalorder %s20, 4
      // Predicated region
      $region21: #{forward.13} parent=5 // pred_check
        %p254 = pneg %p253
      $region22: #{forward.13} parent=5 // pred_check_branch
        %256 = sbr.rel (%p254) target = $region24
      $region23: #{forward.13} parent=5 // pred_region
        // Predicated region
        $region25: #{forward.13} parent=23 // pred_check
          %p257 = pneg %p52
        $region26: #{forward.13} parent=23 // pred_check_branch
          %259 = sbr.rel (%p257) target = $region28
        $region27: #{forward.13} parent=23 // pred_region
          %p260 = scmp.lt.s32.totalorder %s27, 1
          %s261 = scalar_select %p260, %s27, 1
          %s262 = smul.addr %s261, 8
          %s263 = scalar_lea.vmem %s0, %s262
        $region28: #{forward.13} parent=23 // pred_fallthru
          _
        // Predicated region
        $region29: #{forward.13} parent=23 // pred_check
          %p264 = pneg %p78
        $region30: #{forward.13} parent=23 // pred_check_branch
          %266 = sbr.rel (%p264) target = $region32
        $region31: #{forward.13} parent=23 // pred_region
          %p267 = scmp.lt.s32.totalorder %s27, 1
          %s268 = scalar_select %p267, %s27, 1
          %s269 = smul.addr %s268, 8
          %s270 = scalar_lea.vmem %s1, %s269
        $region32: #{forward.13} parent=23 // pred_fallthru
          _
        // Predicated region
        $region33: #{forward.13} parent=23 // pred_check
          %p271 = pneg %p146
        $region34: #{forward.13} parent=23 // pred_check_branch
          %273 = sbr.rel (%p271) target = $region36
        $region35: #{forward.13} parent=23 // pred_region
          %s274 = sand.u32 %s136, 1
          %s275 = sand.u32 %s136, 1
          %s276 = smul.addr %s275, 32
          %s277 = scalar_lea.vmem [#allocation2], %s276
          %s278 = smul.addr %s28, 4
          %s279 = scalar_lea.vmem %s4, %s278
          // Predicated region
          $region37: #{forward.13} parent=35 // pred_check
            _
          $region38: #{forward.13} parent=35 // pred_check_branch
            %281 = sbr.rel (0) target = $region40
          $region39: #{forward.13} parent=35 // pred_region
            // Predicated region
            $region41: #{forward.13} parent=39 // pred_check
              _
            $region42: #{forward.13} parent=39 // pred_check_branch
              %283 = sbr.rel target = $region44
            $region43: #{forward.13} parent=39 // pred_region
              // Predicated region
              $region56: #{forward.13} parent=43 // pred_check
                _
              $region57: #{forward.13} parent=43 // pred_check_branch
                %313 = sbr.rel (0) target = $region59
              $region58: #{forward.13} parent=43 // pred_region
                loop: start=0, step=1, limit=1
                $region60: #{forward.13} parent=58 // loop_pre_header
                  _
                $region61: #{forward.13} parent=58 // loop_header
                  %s315 = sphi 0, %s319
                  %p316 = scmp.ge.s32.totalorder %s315, 1
                  %s320 = sphi %s279, %s279
                  %s321 = sphi %s277, %s277
                $region62: #{forward.13} parent=58 // loop_header_branch
                  %318 = sbr.rel (%p316) target = $region66
                $region63: #{forward.13} parent=58 // loop_body
                  _
                $region64: #{forward.13} parent=58 // loop_footer
                  %s319 = sadd.s32 1, %s315
                $region65: #{forward.13} parent=58 // loop_footer_branch
                  %314 = sbr.rel target = $region61
                $region66: #{forward.13} parent=58 // loop_exit
                  _
                %s323 = ssub.s32 16, 1
                loop: start=0, step=1, limit=1
                $region67: #{forward.13} parent=58 // loop_pre_header
                  _
                $region68: #{forward.13} parent=58 // loop_header
                  %s325 = sphi 0, %s329
                  %p326 = scmp.ge.s32.totalorder %s325, 1
                  %s330 = sphi %s279, %s279
                  %s331 = sphi %s277, %s277
                $region69: #{forward.13} parent=58 // loop_header_branch
                  %328 = sbr.rel (%p326) target = $region73
                $region70: #{forward.13} parent=58 // loop_body
                  %v332 = vld [vmem:[%s330] sm:%s323]
                  %333 = vst [vmem:[%s331] sm:%s323] %v332
                  %v334 = vld [vmem:[%s330 + $0x8] sm:%s323]
                  %335 = vst [vmem:[%s331 + $0x4] sm:%s323] %v334
                  %v336 = vld [vmem:[%s330 + $0x10] sm:%s323]
                  %337 = vst [vmem:[%s331 + $0x8] sm:%s323] %v336
                  %v338 = vld [vmem:[%s330 + $0x18] sm:%s323]
                  %339 = vst [vmem:[%s331 + $0xc] sm:%s323] %v338
                  %v340 = vld [vmem:[%s330 + $0x20] sm:%s323]
                  %341 = vst [vmem:[%s331 + $0x10] sm:%s323] %v340
                  %v342 = vld [vmem:[%s330 + $0x28] sm:%s323]
                  %343 = vst [vmem:[%s331 + $0x14] sm:%s323] %v342
                  %v344 = vld [vmem:[%s330 + $0x30] sm:%s323]
                  %345 = vst [vmem:[%s331 + $0x18] sm:%s323] %v344
                  %v346 = vld [vmem:[%s330 + $0x38] sm:%s323]
                  %347 = vst [vmem:[%s331 + $0x1c] sm:%s323] %v346
                $region71: #{forward.13} parent=58 // loop_footer
                  %s329 = sadd.s32 1, %s325
                $region72: #{forward.13} parent=58 // loop_footer_branch
                  %324 = sbr.rel target = $region68
                $region73: #{forward.13} parent=58 // loop_exit
                  _
              $region59: #{forward.13} parent=43 // pred_fallthru
                _
            $region44: #{forward.13} parent=39 // pred_fallthru
              _
            // Predicated region
            $region45: #{forward.13} parent=39 // pred_check
              _
            $region46: #{forward.13} parent=39 // pred_check_branch
              %285 = sbr.rel (0) target = $region48
            $region47: #{forward.13} parent=39 // pred_region
              %s287 = ssub.s32 16, 1
              loop: start=0, step=1, limit=1
              $region49: #{forward.13} parent=47 // loop_pre_header
                _
              $region50: #{forward.13} parent=47 // loop_header
                %s289 = sphi 0, %s293
                %p290 = scmp.ge.s32.totalorder %s289, 1
                %s294 = sphi %s279, %s279
                %s295 = sphi %s277, %s277
              $region51: #{forward.13} parent=47 // loop_header_branch
                %292 = sbr.rel (%p290) target = $region55
              $region52: #{forward.13} parent=47 // loop_body
                %v296 = vld [vmem:[%s294] sm:%s287]
                %297 = vst [vmem:[%s295] sm:%s287] %v296
                %v298 = vld [vmem:[%s294 + $0x8] sm:%s287]
                %299 = vst [vmem:[%s295 + $0x4] sm:%s287] %v298
                %v300 = vld [vmem:[%s294 + $0x10] sm:%s287]
                %301 = vst [vmem:[%s295 + $0x8] sm:%s287] %v300
                %v302 = vld [vmem:[%s294 + $0x18] sm:%s287]
                %303 = vst [vmem:[%s295 + $0xc] sm:%s287] %v302
                %v304 = vld [vmem:[%s294 + $0x20] sm:%s287]
                %305 = vst [vmem:[%s295 + $0x10] sm:%s287] %v304
                %v306 = vld [vmem:[%s294 + $0x28] sm:%s287]
                %307 = vst [vmem:[%s295 + $0x14] sm:%s287] %v306
                %v308 = vld [vmem:[%s294 + $0x30] sm:%s287]
                %309 = vst [vmem:[%s295 + $0x18] sm:%s287] %v308
                %v310 = vld [vmem:[%s294 + $0x38] sm:%s287]
                %311 = vst [vmem:[%s295 + $0x1c] sm:%s287] %v310
              $region53: #{forward.13} parent=47 // loop_footer
                %s293 = sadd.s32 1, %s289
              $region54: #{forward.13} parent=47 // loop_footer_branch
                %288 = sbr.rel target = $region50
              $region55: #{forward.13} parent=47 // loop_exit
                _
            $region48: #{forward.13} parent=39 // pred_fallthru
              _
          $region40: #{forward.13} parent=35 // pred_fallthru
            _
          %348 = vnop
        $region36: #{forward.13} parent=23 // pred_fallthru
          _
        // Predicated region
        $region74: #{forward.13} parent=23 // pred_check
          %p349 = pneg %p172
        $region75: #{forward.13} parent=23 // pred_check_branch
          %351 = sbr.rel (%p349) target = $region77
        $region76: #{forward.13} parent=23 // pred_region
          %p352 = scmp.lt.s32.totalorder %s28, 1
          %s353 = scalar_select %p352, %s28, 1
          %s354 = scalar_lea.vmem %s5, %s353
        $region77: #{forward.13} parent=23 // pred_fallthru
          _
      $region24: #{forward.13} parent=5 // pred_fallthru
        _
      %p355 = scmp.le.s32.totalorder 1, %s20
      %p356 = scmp.lt.s32.totalorder %s20, 5
      %p357 = pnand %p355, %p356
      %p358 = pneg %p357
      // Predicated region
      $region78: #{forward.13} parent=5 // pred_check
        _
      $region79: #{forward.13} parent=5 // pred_check_branch
        %360 = sbr.rel (%p357) target = $region81
      $region80: #{forward.13} parent=5 // pred_region
        %s361 = ssub.s32 %s20, 1
        %s362 = sand.u32 %s139, 1
        %s363 = sand.u32 %s139, 1
        %s364 = smul.addr %s363, 32
        %s365 = scalar_lea.vmem [#allocation2], %s364
        // Predicated region
        $region82: #{forward.13} parent=80 // pred_check
          %p366 = pneg %p152
        $region83: #{forward.13} parent=80 // pred_check_branch
          %368 = sbr.rel (%p366) target = $region85
        $region84: #{forward.13} parent=80 // pred_region
          _
        $region85: #{forward.13} parent=80 // pred_fallthru
          _
        %p369 = scmp.lt.s32.totalorder %s29, 1
        %s370 = scalar_select %p369, %s29, 1
        %s371 = smul.addr %s370, 8
        %s372 = scalar_lea.vmem %s0, %s371
        %p373 = pneg %p58
        %p374 = pneg %p55
        %p375 = scmp.lt.s32.totalorder %s29, 1
        %s376 = scalar_select %p375, %s29, 1
        %s377 = smul.addr %s376, 8
        %s378 = scalar_lea.vmem %s1, %s377
        %p379 = pneg %p84
        %p380 = pneg %p81
        %p381 = pneg %p105
        %p382 = pneg %p102
        %p383 = pneg %p126
        %p384 = pneg %p123
        %s385 = sand.u32 %s139, 1
        %s386 = sand.u32 %s139, 1
        %s387 = smul.addr %s386, 32
        %s388 = scalar_lea.vmem [#allocation2], %s387
        %p389 = pneg %p152
        %p390 = pneg %p149
        %p391 = scmp.lt.s32.totalorder %s30, 1
        %s392 = scalar_select %p391, %s30, 1
        %s393 = scalar_lea.vmem %s5, %s392
        %p394 = pneg %p178
        %p395 = pneg %p175
        %p396 = pneg %p204
        %p397 = pneg %p201
        %s398 = sand.u32 %s191, 1
        %s399 = scalar_lea.sflag [#allocation4], %s398
        %s400 = sand.u32 %s191, 1
        %s401 = smul.addr %s400, 8
        %s402 = scalar_lea.vmem [#allocation3], %s401
        %p403 = pneg %p232
        %p404 = pneg %p229
        %s405 = sand.u32 %s219, 1
        %s406 = scalar_lea.sflag [#allocation6], %s405
        %s407 = sand.u32 %s219, 1
        %s408 = smul.addr %s407, 8
        %s409 = scalar_lea.vmem [#allocation5], %s408
        %p410 = scmp.lt.s32.totalorder %s29, 1
        %s411 = scalar_select %p410, %s29, 1
        %s412 = smul.addr %s411, 8
        %s413 = scalar_lea.vmem %s0, %s412
        %p414 = scmp.lt.s32.totalorder %s29, 1
        %s415 = scalar_select %p414, %s29, 1
        %s416 = smul.addr %s415, 8
        %s417 = scalar_lea.vmem %s1, %s416
        %p418 = scmp.lt.s32.totalorder %s30, 1
        %s419 = scalar_select %p418, %s30, 1
        %s420 = scalar_lea.vmem %s5, %s419
        %v422 = vld [vmem:[%s413] sm:$0xff]
        %v423 = vld [vmem:[%s417] sm:$0xff]
        %v424 = vadd.f32 %v422, %v423
        %vm425 = vcmask 523264
        %v426 = vsel %vm425, %v424, 0.0
        %427 = vadd.xlane.f32.xlu0 %v426
        %v428 = vpop.xlane.xlu0 %427
        %v429 = vrcp.pop 64.0
        %v430 = vmul.f32 %v428, %v429
        %v431 = vsub.f32 %v424, %v430
        %v432 = vmul.f32 %v431, %v431
        %v433 = vsel %vm425, %v432, 0.0
        %434 = vadd.xlane.f32.xlu0 %v433
        %v435 = vpop.xlane.xlu0 %434
        %v436 = vmul.f32 %v435, %v429
        %v437 = vadd.f32 %v436, 1e-05
        %v438 = vrsqrt.pop %v437
        %v439 = vmul.f32 %v431, %v438
        %v440 = vld [vmem:[%s2] sm:$0x1]
        %v442 = vlaneseq
        %v443 = vshrl.u32 %v442, 7
        %v444 = vsub.s32 0, %v443
        %v445 = vrot.slane %v440, %v444
        %v447 = vmul.f32 %v439, %v445
        %v448 = vld [vmem:[%s3] sm:$0x1]
        %v450 = vlaneseq
        %v451 = vshrl.u32 %v450, 7
        %v452 = vsub.s32 0, %v451
        %v453 = vrot.slane %v448, %v452
        %v455 = vadd.f32 %v447, %v453
        %p456 = scmp.eq.s32.totalorder %s30, 0
        // Predicated region
        $region86: #{forward.13} parent=80 // pred_check
          %p457 = pneg %p456
        $region87: #{forward.13} parent=80 // pred_check_branch
          %459 = sbr.rel (%p457) target = $region89
        $region88: #{forward.13} parent=80 // pred_region
          %460 = vst.msk [vmem:[%s402] sm:$0xff] %vm425, %v455
        $region89: #{forward.13} parent=80 // pred_fallthru
          _
        %v461 = vpack.c.bf16 %v455, %v455
        %v462 = vld [vmem:[%s365] sm:$0xf]
        %v463 = vld [vmem:[%s365 + $0x4] sm:$0xf]
        %v464 = vld [vmem:[%s365 + $0x8] sm:$0xf]
        %v465 = vld [vmem:[%s365 + $0xc] sm:$0xf]
        %v466 = vld [vmem:[%s365 + $0x10] sm:$0xf]
        %v467 = vld [vmem:[%s365 + $0x14] sm:$0xf]
        %v468 = vld [vmem:[%s365 + $0x18] sm:$0xf]
        %v469 = vld [vmem:[%s365 + $0x1c] sm:$0xf]
        %v470 = vld [vmem:[%s420] sm:$0x1]
        %v472 = vlaneseq
        %v473 = vshrl.u32 %v472, 7
        %v474 = vsub.s32 0, %v473
        %v475 = vrot.slane %v470, %v474
        %v485 = vunpack.c.l.b16 %v462
        %v486 = vunpack.c.l.b16 %v463
        %v487 = vunpack.c.l.b16 %v464
        %v488 = vunpack.c.l.b16 %v465
        %v489 = vunpack.c.l.b16 %v466
        %v490 = vunpack.c.l.b16 %v467
        %v491 = vunpack.c.l.b16 %v468
        %v492 = vunpack.c.l.b16 %v469
        %v493 = vpack.c.b16 %v486, %v485
        %v494 = vpack.c.b16 %v488, %v487
        %v495 = vpack.c.b16 %v490, %v489
        %v496 = vpack.c.b16 %v492, %v491
        %v502 = vsel %vm425, %v461, 0
        %504 = vmatprep.subr.bf16.mxu0 0
        %505 = vmatpush1.bf16.msra.mxu0 0
        %506 = vmatprep.subr.bf16.mxu0 0
        %507 = vmatpush1.bf16.msra.mxu0 0
        %508 = vmatprep.subr.bf16.mxu0 0
        %509 = vmatpush1.bf16.msra.mxu0 0
        %510 = vmatprep.subr.bf16.mxu0 0
        %511 = vmatpush1.bf16.msra.mxu0 0
        %512 = vmatprep.subr.bf16.mxu0 0
        %513 = vmatpush1.bf16.msra.mxu0 %v496
        %514 = vmatprep.subr.bf16.mxu0 0
        %515 = vmatpush1.bf16.msra.mxu0 %v495
        %516 = vmatprep.subr.bf16.mxu0 0
        %517 = vmatpush1.bf16.msra.mxu0 %v494
        %518 = vmatprep.subr.bf16.mxu0 0
        %519 = vmatpush1.bf16.msra.mxu0 %v493
        %520 = vmatprep.subr.bf16.mxu0 0
        %521 = vmatpush2.bf16.msra.mxu0 0
        %522 = vmatprep.subr.bf16.mxu0 0
        %523 = vmatpush2.bf16.msra.mxu0 0
        %524 = vmatprep.subr.bf16.mxu0 0
        %525 = vmatpush2.bf16.msra.mxu0 0
        %526 = vmatprep.subr.bf16.mxu0 0
        %527 = vmatpush2.bf16.msra.mxu0 0
        %528 = vmatprep.subr.bf16.mxu0 0
        %529 = vmatpush2.bf16.msra.mxu0 0
        %530 = vmatprep.subr.bf16.mxu0 0
        %531 = vmatpush2.bf16.msra.mxu0 0
        %532 = vmatprep.subr.bf16.mxu0 0
        %533 = vmatpush2.bf16.msra.mxu0 0
        %534 = vmatprep.subr.bf16.mxu0 0
        %535 = vmatpush2.bf16.msra.mxu0 0
        %536 = vmatprep.mubr.bf16.mxu0 0
        %537 = vmatmul.mubr.bf16.gmra.mxu0 %v502
        %v538 = vpop.f32.mrf.mxu0
        %v539 = vadd.f32 %v475, %v538
        %v540 = vpop.f32.mrf.mxu0
        %v541 = vpop.f32.mrf.mxu0
        %v542 = vpop.f32.mrf.mxu0
        %543 = vdwg.mxu0
        %544 = vst [vmem:[%s409] sm:$0xff] %v539
        %s545 = sand.u32 %s191, 1
        %s546 = scalar_lea.sflag [#allocation4], %s545
        %s547 = sand.u32 %s191, 1
        %s548 = smul.addr %s547, 8
        %s549 = scalar_lea.vmem [#allocation3], %s548
        %s550 = sand.u32 %s219, 1
        %s551 = scalar_lea.sflag [#allocation6], %s550
        %s552 = sand.u32 %s219, 1
        %s553 = smul.addr %s552, 8
        %s554 = scalar_lea.vmem [#allocation5], %s553
        // Predicated region
        $region90: #{forward.13} parent=80 // pred_check
          %p555 = pneg %p201
        $region91: #{forward.13} parent=80 // pred_check_branch
          %557 = sbr.rel (%p555) target = $region93
        $region92: #{forward.13} parent=80 // pred_region
          %s559 = ssub.s32 128, 128
          %560 = vsyncadd %s546, %s559
          %s561 = smul.addr %s29, 128
          %s562 = scalar_lea.hbm %s6, %s561
          %s564 = sshll.u32 %s549, 4
          %s565 = int_to_ptr.vmem [resolvable:$true] %s564
          %567 = dma.vmem_to_hbm [thread:$0]  %s565, 128, %s562, %s546
        $region93: #{forward.13} parent=80 // pred_fallthru
          _
        // Predicated region
        $region94: #{forward.13} parent=80 // pred_check
          %p568 = pneg %p229
        $region95: #{forward.13} parent=80 // pred_check_branch
          %570 = sbr.rel (%p568) target = $region97
        $region96: #{forward.13} parent=80 // pred_region
          %s572 = ssub.s32 128, 128
          %573 = vsyncadd %s551, %s572
          %s574 = smul.addr %s29, 2
          %s575 = sadd.s32 %s30, %s574
          %s576 = smul.addr %s575, 128
          %s577 = scalar_lea.hbm %s7, %s576
          %s579 = sshll.u32 %s554, 4
          %s580 = int_to_ptr.vmem [resolvable:$true] %s579
          %582 = dma.vmem_to_hbm [thread:$0]  %s580, 128, %s577, %s551
        $region97: #{forward.13} parent=80 // pred_fallthru
          _
      $region81: #{forward.13} parent=5 // pred_fallthru
        _
      %p583 = scmp.le.s32.totalorder 2, %s20
      // Predicated region
      $region98: #{forward.13} parent=5 // pred_check
        %p584 = pneg %p583
      $region99: #{forward.13} parent=5 // pred_check_branch
        %586 = sbr.rel (%p584) target = $region101
      $region100: #{forward.13} parent=5 // pred_region
        %s587 = ssub.s32 %s20, 2
        // Predicated region
        $region102: #{forward.13} parent=100 // pred_check
          %p588 = pneg %p207
        $region103: #{forward.13} parent=100 // pred_check_branch
          %590 = sbr.rel (%p588) target = $region105
        $region104: #{forward.13} parent=100 // pred_region
          %s591 = sand.u32 %s192, 1
          %s592 = scalar_lea.sflag [#allocation4], %s591
          %s593 = sand.u32 %s192, 1
          %s594 = smul.addr %s593, 8
          %s595 = scalar_lea.vmem [#allocation3], %s594
          %596 = dma.done %s592, 128
        $region105: #{forward.13} parent=100 // pred_fallthru
          _
        // Predicated region
        $region106: #{forward.13} parent=100 // pred_check
          %p597 = pneg %p235
        $region107: #{forward.13} parent=100 // pred_check_branch
          %599 = sbr.rel (%p597) target = $region109
        $region108: #{forward.13} parent=100 // pred_region
          %s600 = sand.u32 %s220, 1
          %s601 = scalar_lea.sflag [#allocation6], %s600
          %s602 = sand.u32 %s220, 1
          %s603 = smul.addr %s602, 8
          %s604 = scalar_lea.vmem [#allocation5], %s603
          %605 = dma.done %s601, 128
        $region109: #{forward.13} parent=100 // pred_fallthru
          _
      $region101: #{forward.13} parent=5 // pred_fallthru
        _
    $region6: #{forward.13} parent=1 // loop_footer
      %s24 = sadd.s32 1, %s20
    $region7: #{forward.13} parent=1 // loop_footer_branch
      %19 = sbr.rel target = $region3
    $region8: #{forward.13} parent=1 // loop_exit
      _
    %606 = vsyncpa [#allocation4], 1
    %s607 = scalar_lea.sflag [#allocation4], 1
    %608 = vsyncpa %s607, 1
    %609 = vsyncpa [#allocation6], 1
    %s610 = scalar_lea.sflag [#allocation6], 1
    %611 = vsyncpa %s610, 1

// kernel: forward.8
$region0: #{forward.8}
  #allocation0 [shape = 'u32[]', space=smem, size = 0x4, offset = 0x4, fixed_abs, tag = 'smem constant byte address 0x4 - core index']
  #allocation1 [shape = 'u32[144,128]{1,0:T(1,128)}', space=vmem, size = 0x12000, scoped, tag = 'internal scratch']
  %s0 = inlined_call_operand.vmem [shape: f32[16,128], index: 0, kind: input, shape index: {}]
  %s1 = inlined_call_operand.vmem [shape: f32[8,16], index: 1, kind: input, shape index: {}]
  %s2 = inlined_call_operand.vmem [shape: f32[8,16], index: 2, kind: input, shape index: {}]
  %s3 = inlined_call_operand.vmem [shape: f32[16,64], index: 3, kind: input, shape index: {}, may-alias: {3,9}]
  %s4 = inlined_call_operand.vmem [shape: bf16[64,64], index: 4, kind: input, shape index: {}]
  %s5 = inlined_call_operand.vmem [shape: f32[1,64], index: 5, kind: input, shape index: {}]
  %s6 = inlined_call_operand.vmem [shape: f32[1,64], index: 6, kind: input, shape index: {}]
  %s7 = inlined_call_operand.vmem [shape: f32[1,64], index: 7, kind: input, shape index: {}]
  %s8 = inlined_call_operand.vmem [shape: bf16[64,4], index: 8, kind: input, shape index: {}]
  %s9 = inlined_call_operand.vmem [shape: f32[16,64], index: 9, kind: output, shape index: {0}, may-alias: {3,9}]
  %s10 = inlined_call_operand.vmem [shape: f32[16,64], index: 10, kind: output, shape index: {1}]
  %s11 = inlined_call_operand.vmem [shape: f32[16,4], index: 11, kind: output, shape index: {2}]
  %12 = xla_tuple %s9, %s10, %s11
  %s13 = sld [smem:[#allocation0]]
  $region62: #{forward.8} parent=0
    _
  %s15 = ssub.s32 1, %s13
  %s16 = scalar_select 0, %s15, %s13
  // Predicated region
  $region2: #{forward.8} parent=0 // pred_check
    _
  $region3: #{forward.8} parent=0 // pred_check_branch
    %18 = sbr.rel (0) target = $region5
  $region4: #{forward.8} parent=0 // pred_region
    _
  $region5: #{forward.8} parent=0 // pred_fallthru
    _
  // Predicated region
  $region6: #{forward.8} parent=0 // pred_check
    _
  $region7: #{forward.8} parent=0 // pred_check_branch
    %20 = sbr.rel (0) target = $region9
  $region8: #{forward.8} parent=0 // pred_region
    _
  $region9: #{forward.8} parent=0 // pred_fallthru
    _
  // Predicated region
  $region10: #{forward.8} parent=0 // pred_check
    _
  $region11: #{forward.8} parent=0 // pred_check_branch
    %22 = sbr.rel (0) target = $region13
  $region12: #{forward.8} parent=0 // pred_region
    _
  $region13: #{forward.8} parent=0 // pred_fallthru
    _
  // Predicated region
  $region14: #{forward.8} parent=0 // pred_check
    _
  $region15: #{forward.8} parent=0 // pred_check_branch
    %24 = sbr.rel (0) target = $region17
  $region16: #{forward.8} parent=0 // pred_region
    _
  $region17: #{forward.8} parent=0 // pred_fallthru
    _
  // Predicated region
  $region18: #{forward.8} parent=0 // pred_check
    _
  $region19: #{forward.8} parent=0 // pred_check_branch
    %26 = sbr.rel (0) target = $region21
  $region20: #{forward.8} parent=0 // pred_region
    _
  $region21: #{forward.8} parent=0 // pred_fallthru
    _
  // Predicated region
  $region22: #{forward.8} parent=0 // pred_check
    _
  $region23: #{forward.8} parent=0 // pred_check_branch
    %28 = sbr.rel (0) target = $region25
  $region24: #{forward.8} parent=0 // pred_region
    _
  $region25: #{forward.8} parent=0 // pred_fallthru
    _
  // Predicated region
  $region26: #{forward.8} parent=0 // pred_check
    _
  $region27: #{forward.8} parent=0 // pred_check_branch
    %30 = sbr.rel (0) target = $region29
  $region28: #{forward.8} parent=0 // pred_region
    _
  $region29: #{forward.8} parent=0 // pred_fallthru
    _
  // Predicated region
  $region30: #{forward.8} parent=0 // pred_check
    _
  $region31: #{forward.8} parent=0 // pred_check_branch
    %32 = sbr.rel (0) target = $region33
  $region32: #{forward.8} parent=0 // pred_region
    _
  $region33: #{forward.8} parent=0 // pred_fallthru
    _
  // Predicated region
  $region34: #{forward.8} parent=0 // pred_check
    _
  $region35: #{forward.8} parent=0 // pred_check_branch
    %34 = sbr.rel (0) target = $region37
  $region36: #{forward.8} parent=0 // pred_region
    _
  $region37: #{forward.8} parent=0 // pred_fallthru
    _
  %v36 = vld [vmem:[%s0] sm:$0xff]
  %v37 = vld [vmem:[%s0 + $0x8] sm:$0xff]
  %v38 = vld [vmem:[%s1] sm:$0xff]
  %v39 = vld [vmem:[%s2] sm:$0xff]
  %v40 = vlaneseq
  %v41 = vand.u32 %v40, 127
  %vm42 = vcmp.lt.s32.totalorder %v41, 8
  %v43 = vsel %vm42, -1.0, 1.0
  %v44 = vlaneseq
  %v45 = vshrl.u32 %v44, 7
  %vm46 = vcmp.le.s32.totalorder %v41, %v45
  %48 = vrot.lane.b32.xlu0 %v38, 64
  %v49 = vpop.permute.xlu0 %48
  %v51 = vmul.f32 %v36, %v49
  %53 = vrot.lane.b32.xlu0 %v36, 64
  %v54 = vpop.permute.xlu0 %53
  %vm56 = vcmask 1047680
  %57 = vrot.lane.b32.xlu0 %v54, 16
  %v58 = vpop.permute.xlu0 %57
  %v59 = vsel %vm56, %v58, %v54
  %60 = vrot.lane.b32.xlu0 %v59, 16
  %v61 = vpop.permute.xlu0 %60
  %v62 = vsel %vm56, %v61, %v54
  %64 = vrot.lane.b32.xlu0 %v43, 8
  %v65 = vpop.permute.xlu0 %64
  %v67 = vmul.f32 %v62, %v65
  %69 = vrot.lane.b32.xlu0 %v39, 8
  %v70 = vpop.permute.xlu0 %69
  %v72 = vmul.f32 %v67, %v70
  %74 = vrot.lane.b32.xlu0 %v72, 56
  %v75 = vpop.permute.xlu0 %74
  %v77 = vadd.f32 %v51, %v75
  %v78 = vmul.f32 %v36, %v38
  %79 = vrot.lane.b32.xlu0 %v36, 16
  %v80 = vpop.permute.xlu0 %79
  %v81 = vsel %vm56, %v80, %v36
  %82 = vrot.lane.b32.xlu0 %v81, 16
  %v83 = vpop.permute.xlu0 %82
  %v84 = vsel %vm56, %v83, %v36
  %v85 = vmul.f32 %v84, %v65
  %v86 = vmul.f32 %v85, %v70
  %88 = vrot.lane.b32.xlu0 %v86, 120
  %v89 = vpop.permute.xlu0 %88
  %v91 = vadd.f32 %v78, %v89
  %92 = vrot.lane.b32.xlu0 %v38, 16
  %v93 = vpop.permute.xlu0 %92
  %v95 = vmul.f32 %v36, %v93
  %96 = vrot.lane.b32.xlu0 %v36, 112
  %v97 = vpop.permute.xlu0 %96
  %99 = vrot.lane.b32.xlu0 %v97, 16
  %v100 = vpop.permute.xlu0 %99
  %v101 = vsel %vm56, %v100, %v97
  %102 = vrot.lane.b32.xlu0 %v101, 16
  %v103 = vpop.permute.xlu0 %102
  %v104 = vsel %vm56, %v103, %v97
  %v105 = vmul.f32 %v104, %v65
  %v106 = vmul.f32 %v105, %v70
  %108 = vrot.lane.b32.xlu0 %v106, 8
  %v109 = vpop.permute.xlu0 %108
  %v111 = vadd.f32 %v95, %v109
  %113 = vrot.lane.b32.xlu0 %v111, 112
  %v114 = vpop.permute.xlu0 %113
  %116 = vrot.lane.b32.xlu0 %v77, 64
  %v117 = vpop.permute.xlu0 %116
  %vm118 = vcmask 130048
  %v120 = vsel %vm118, %v91, 0
  %v122 = vsel %vm118, %v114, 0
  %v124 = vsel %vm118, %v117, 0
  %126 = vmatprep.subr.mxu0 0.0
  %127 = vmatpush1.xpose.msra.mxu0 0.0
  %128 = vmatprep.subr.mxu0 0.0
  %129 = vmatpush1.xpose.msra.mxu0 0.0
  %130 = vmatprep.subr.mxu0 0.0
  %131 = vmatpush1.xpose.msra.mxu0 0.0
  %132 = vmatprep.subr.mxu0 0.0
  %133 = vmatpush1.xpose.msra.mxu0 0.0
  %134 = vmatprep.subr.mxu0 0.0
  %135 = vmatpush1.xpose.msra.mxu0 0.0
  %136 = vmatprep.subr.mxu0 0.0
  %137 = vmatpush1.xpose.msra.mxu0 0.0
  %138 = vmatprep.subr.mxu0 0.0
  %139 = vmatpush1.xpose.msra.mxu0 0.0
  %140 = vmatprep.subr.mxu0 0.0
  %141 = vmatpush1.xpose.msra.mxu0 0.0
  %142 = vmatprep.subr.mxu0 0.0
  %143 = vmatpush1.xpose.msra.mxu0 0.0
  %144 = vmatprep.subr.mxu0 0.0
  %145 = vmatpush1.xpose.msra.mxu0 0.0
  %146 = vmatprep.subr.mxu0 0.0
  %147 = vmatpush1.xpose.msra.mxu0 0.0
  %148 = vmatprep.subr.mxu0 0.0
  %149 = vmatpush1.xpose.msra.mxu0 0.0
  %150 = vmatprep.subr.mxu0 0.0
  %151 = vmatpush1.xpose.msra.mxu0 0.0
  %152 = vmatprep.subr.mxu0 0.0
  %153 = vmatpush1.xpose.msra.mxu0 0.0
  %154 = vmatprep.subr.mxu0 0.0
  %155 = vmatpush1.xpose.msra.mxu0 0.0
  %156 = vmatprep.subr.mxu0 0.0
  %157 = vmatpush1.xpose.msra.mxu0 %v124
  %158 = vmatprep.subr.mxu0 0.0
  %159 = vmatpush2.xpose.msra.mxu0 0.0
  %160 = vmatprep.subr.mxu0 0.0
  %161 = vmatpush2.xpose.msra.mxu0 0.0
  %162 = vmatprep.subr.mxu0 0.0
  %163 = vmatpush2.xpose.msra.mxu0 0.0
  %164 = vmatprep.subr.mxu0 0.0
  %165 = vmatpush2.xpose.msra.mxu0 0.0
  %166 = vmatprep.subr.mxu0 0.0
  %167 = vmatpush2.xpose.msra.mxu0 0.0
  %168 = vmatprep.subr.mxu0 0.0
  %169 = vmatpush2.xpose.msra.mxu0 0.0
  %170 = vmatprep.subr.mxu0 0.0
  %171 = vmatpush2.xpose.msra.mxu0 0.0
  %172 = vmatprep.subr.mxu0 0.0
  %173 = vmatpush2.xpose.msra.mxu0 0.0
  %174 = vmatprep.subr.mxu0 0.0
  %175 = vmatpush2.xpose.msra.mxu0 0.0
  %176 = vmatprep.subr.mxu0 0.0
  %177 = vmatpush2.xpose.msra.mxu0 0.0
  %178 = vmatprep.subr.mxu0 0.0
  %179 = vmatpush2.xpose.msra.mxu0 0.0
  %180 = vmatprep.subr.mxu0 0.0
  %181 = vmatpush2.xpose.msra.mxu0 0.0
  %182 = vmatprep.subr.mxu0 0.0
  %183 = vmatpush2.xpose.msra.mxu0 0.0
  %184 = vmatprep.subr.mxu0 0.0
  %185 = vmatpush2.xpose.msra.mxu0 0.0
  %186 = vmatprep.subr.mxu0 0.0
  %187 = vmatpush2.xpose.msra.mxu0 0.0
  %188 = vmatprep.subr.mxu0 0.0
  %189 = vmatpush2.xpose.msra.mxu0 0.0
  %190 = vmatprep.mubr.f32.mxu0 0.0
  %191 = vmatmul.mubr.f32.gmra.mxu0 %v120
  %v192 = vpop.f32.mrf.mxu0
  %v193 = vadd.f32 0.0, %v192
  %v194 = vpop.f32.mrf.mxu0
  %195 = vmatprep.mubr.f32.mxu0 0.0
  %196 = vmatmul.mubr.f32.gmra.mxu0 %v122
  %v197 = vpop.f32.mrf.mxu0
  %v198 = vadd.f32 0.0, %v197
  %v199 = vpop.f32.mrf.mxu0
  %200 = vdwg.mxu0
  %v201 = vmul.f32 %v193, 0.25
  %v202 = vmul.f32 %v198, 0.25
  %v203 = vsel %vm46, %v201, -inf
  %v204 = vsel %vm46, %v202, -inf
  %vm205 = vcmask 64512
  %v206 = vsel %vm205, %v203, -inf
  %207 = vmax.xlane.f32.xlu0 %v206
  %v208 = vpop.xlane.xlu0 %207
  %v209 = vsel %vm205, %v204, -inf
  %210 = vmax.xlane.f32.xlu0 %v209
  %v211 = vpop.xlane.xlu0 %210
  %v212 = vsub.f32 %v203, %v208
  %v213 = vsub.f32 %v204, %v211
  %v214 = vmul.f32 %v212, 1.442695
  %v215 = vpow.pop %v214
  %v216 = vmul.f32 %v213, 1.442695
  %v217 = vpow.pop %v216
  %v218 = vsel %vm205, %v215, 0.0
  %219 = vadd.xlane.f32.xlu0 %v218
  %v220 = vpop.xlane.xlu0 %219
  %v221 = vsel %vm205, %v217, 0.0
  %222 = vadd.xlane.f32.xlu0 %v221
  %v223 = vpop.xlane.xlu0 %222
  %v224 = vrcp.pop %v220
  %v225 = vrcp.pop %v223
  %v226 = vmul.f32 %v215, %v224
  %v227 = vmul.f32 %v217, %v225
  %228 = vrot.lane.b32.xlu0 %v36, 32
  %v229 = vpop.permute.xlu0 %228
  %v232 = vsel %vm205, %v226, 0
  %v235 = vsel %vm205, %v227, 0
  %237 = vmatprep.subr.mxu0 0.0
  %238 = vmatpush1.msra.mxu0 0.0
  %239 = vmatprep.subr.mxu0 0.0
  %240 = vmatpush1.msra.mxu0 0.0
  %241 = vmatprep.subr.mxu0 0.0
  %242 = vmatpush1.msra.mxu0 0.0
  %243 = vmatprep.subr.mxu0 0.0
  %244 = vmatpush1.msra.mxu0 0.0
  %245 = vmatprep.subr.mxu0 0.0
  %246 = vmatpush1.msra.mxu0 0.0
  %247 = vmatprep.subr.mxu0 0.0
  %248 = vmatpush1.msra.mxu0 0.0
  %249 = vmatprep.subr.mxu0 0.0
  %250 = vmatpush1.msra.mxu0 0.0
  %251 = vmatprep.subr.mxu0 0.0
  %252 = vmatpush1.msra.mxu0 0.0
  %253 = vmatprep.subr.mxu0 0.0
  %254 = vmatpush1.msra.mxu0 0.0
  %255 = vmatprep.subr.mxu0 0.0
  %256 = vmatpush1.msra.mxu0 0.0
  %257 = vmatprep.subr.mxu0 0.0
  %258 = vmatpush1.msra.mxu0 0.0
  %259 = vmatprep.subr.mxu0 0.0
  %260 = vmatpush1.msra.mxu0 0.0
  %261 = vmatprep.subr.mxu0 0.0
  %262 = vmatpush1.msra.mxu0 0.0
  %263 = vmatprep.subr.mxu0 0.0
  %264 = vmatpush1.msra.mxu0 0.0
  %265 = vmatprep.subr.mxu0 0.0
  %266 = vmatpush1.msra.mxu0 0.0
  %267 = vmatprep.subr.mxu0 0.0
  %268 = vmatpush1.msra.mxu0 %v229
  %269 = vmatprep.subr.mxu0 0.0
  %270 = vmatpush2.msra.mxu0 0.0
  %271 = vmatprep.subr.mxu0 0.0
  %272 = vmatpush2.msra.mxu0 0.0
  %273 = vmatprep.subr.mxu0 0.0
  %274 = vmatpush2.msra.mxu0 0.0
  %275 = vmatprep.subr.mxu0 0.0
  %276 = vmatpush2.msra.mxu0 0.0
  %277 = vmatprep.subr.mxu0 0.0
  %278 = vmatpush2.msra.mxu0 0.0
  %279 = vmatprep.subr.mxu0 0.0
  %280 = vmatpush2.msra.mxu0 0.0
  %281 = vmatprep.subr.mxu0 0.0
  %282 = vmatpush2.msra.mxu0 0.0
  %283 = vmatprep.subr.mxu0 0.0
  %284 = vmatpush2.msra.mxu0 0.0
  %285 = vmatprep.subr.mxu0 0.0
  %286 = vmatpush2.msra.mxu0 0.0
  %287 = vmatprep.subr.mxu0 0.0
  %288 = vmatpush2.msra.mxu0 0.0
  %289 = vmatprep.subr.mxu0 0.0
  %290 = vmatpush2.msra.mxu0 0.0
  %291 = vmatprep.subr.mxu0 0.0
  %292 = vmatpush2.msra.mxu0 0.0
  %293 = vmatprep.subr.mxu0 0.0
  %294 = vmatpush2.msra.mxu0 0.0
  %295 = vmatprep.subr.mxu0 0.0
  %296 = vmatpush2.msra.mxu0 0.0
  %297 = vmatprep.subr.mxu0 0.0
  %298 = vmatpush2.msra.mxu0 0.0
  %299 = vmatprep.subr.mxu0 0.0
  %300 = vmatpush2.msra.mxu0 0.0
  %301 = vmatprep.mubr.f32.mxu0 0.0
  %302 = vmatmul.mubr.f32.gmra.mxu0 %v232
  %v303 = vpop.f32.mrf.mxu0
  %v304 = vadd.f32 0.0, %v303
  %v305 = vpop.f32.mrf.mxu0
  %306 = vmatprep.mubr.f32.mxu0 0.0
  %307 = vmatmul.mubr.f32.gmra.mxu0 %v235
  %v308 = vpop.f32.mrf.mxu0
  %v309 = vadd.f32 0.0, %v308
  %v310 = vpop.f32.mrf.mxu0
  %311 = vdwg.mxu0
  %312 = vrot.lane.b32.xlu0 %v38, 80
  %v313 = vpop.permute.xlu0 %312
  %v315 = vmul.f32 %v36, %v313
  %316 = vrot.lane.b32.xlu0 %v36, 48
  %v317 = vpop.permute.xlu0 %316
  %319 = vrot.lane.b32.xlu0 %v317, 16
  %v320 = vpop.permute.xlu0 %319
  %v321 = vsel %vm56, %v320, %v317
  %322 = vrot.lane.b32.xlu0 %v321, 16
  %v323 = vpop.permute.xlu0 %322
  %v324 = vsel %vm56, %v323, %v317
  %v325 = vmul.f32 %v324, %v65
  %v326 = vmul.f32 %v325, %v70
  %328 = vrot.lane.b32.xlu0 %v326, 72
  %v329 = vpop.permute.xlu0 %328
  %v331 = vadd.f32 %v315, %v329
  %332 = vrot.lane.b32.xlu0 %v38, 32
  %v333 = vpop.permute.xlu0 %332
  %v335 = vmul.f32 %v36, %v333
  %336 = vrot.lane.b32.xlu0 %v36, 96
  %v337 = vpop.permute.xlu0 %336
  %339 = vrot.lane.b32.xlu0 %v337, 16
  %v340 = vpop.permute.xlu0 %339
  %v341 = vsel %vm56, %v340, %v337
  %342 = vrot.lane.b32.xlu0 %v341, 16
  %v343 = vpop.permute.xlu0 %342
  %v344 = vsel %vm56, %v343, %v337
  %v345 = vmul.f32 %v344, %v65
  %v346 = vmul.f32 %v345, %v70
  %348 = vrot.lane.b32.xlu0 %v346, 24
  %v349 = vpop.permute.xlu0 %348
  %v351 = vadd.f32 %v335, %v349
  %352 = vrot.lane.b32.xlu0 %v38, 48
  %v353 = vpop.permute.xlu0 %352
  %v355 = vmul.f32 %v36, %v353
  %356 = vrot.lane.b32.xlu0 %v36, 80
  %v357 = vpop.permute.xlu0 %356
  %359 = vrot.lane.b32.xlu0 %v357, 16
  %v360 = vpop.permute.xlu0 %359
  %v361 = vsel %vm56, %v360, %v357
  %362 = vrot.lane.b32.xlu0 %v361, 16
  %v363 = vpop.permute.xlu0 %362
  %v364 = vsel %vm56, %v363, %v357
  %v365 = vmul.f32 %v364, %v65
  %v366 = vmul.f32 %v365, %v70
  %368 = vrot.lane.b32.xlu0 %v366, 40
  %v369 = vpop.permute.xlu0 %368
  %v371 = vadd.f32 %v355, %v369
  %373 = vrot.lane.b32.xlu0 %v371, 112
  %v374 = vpop.permute.xlu0 %373
  %376 = vrot.lane.b32.xlu0 %v351, 96
  %v377 = vpop.permute.xlu0 %376
  %378 = vrot.lane.b32.xlu0 %v374, 96
  %v379 = vpop.permute.xlu0 %378
  %381 = vrot.lane.b32.xlu0 %v331, 48
  %v382 = vpop.permute.xlu0 %381
  %v383 = vsel %vm118, %v377, 0
  %v385 = vsel %vm118, %v379, 0
  %v387 = vsel %vm118, %v382, 0
  %389 = vmatprep.subr.mxu0 0.0
  %390 = vmatpush1.xpose.msra.mxu0 0.0
  %391 = vmatprep.subr.mxu0 0.0
  %392 = vmatpush1.xpose.msra.mxu0 0.0
  %393 = vmatprep.subr.mxu0 0.0
  %394 = vmatpush1.xpose.msra.mxu0 0.0
  %395 = vmatprep.subr.mxu0 0.0
  %396 = vmatpush1.xpose.msra.mxu0 0.0
  %397 = vmatprep.subr.mxu0 0.0
  %398 = vmatpush1.xpose.msra.mxu0 0.0
  %399 = vmatprep.subr.mxu0 0.0
  %400 = vmatpush1.xpose.msra.mxu0 0.0
  %401 = vmatprep.subr.mxu0 0.0
  %402 = vmatpush1.xpose.msra.mxu0 0.0
  %403 = vmatprep.subr.mxu0 0.0
  %404 = vmatpush1.xpose.msra.mxu0 0.0
  %405 = vmatprep.subr.mxu0 0.0
  %406 = vmatpush1.xpose.msra.mxu0 0.0
  %407 = vmatprep.subr.mxu0 0.0
  %408 = vmatpush1.xpose.msra.mxu0 0.0
  %409 = vmatprep.subr.mxu0 0.0
  %410 = vmatpush1.xpose.msra.mxu0 0.0
  %411 = vmatprep.subr.mxu0 0.0
  %412 = vmatpush1.xpose.msra.mxu0 0.0
  %413 = vmatprep.subr.mxu0 0.0
  %414 = vmatpush1.xpose.msra.mxu0 0.0
  %415 = vmatprep.subr.mxu0 0.0
  %416 = vmatpush1.xpose.msra.mxu0 0.0
  %417 = vmatprep.subr.mxu0 0.0
  %418 = vmatpush1.xpose.msra.mxu0 0.0
  %419 = vmatprep.subr.mxu0 0.0
  %420 = vmatpush1.xpose.msra.mxu0 %v387
  %421 = vmatprep.subr.mxu0 0.0
  %422 = vmatpush2.xpose.msra.mxu0 0.0
  %423 = vmatprep.subr.mxu0 0.0
  %424 = vmatpush2.xpose.msra.mxu0 0.0
  %425 = vmatprep.subr.mxu0 0.0
  %426 = vmatpush2.xpose.msra.mxu0 0.0
  %427 = vmatprep.subr.mxu0 0.0
  %428 = vmatpush2.xpose.msra.mxu0 0.0
  %429 = vmatprep.subr.mxu0 0.0
  %430 = vmatpush2.xpose.msra.mxu0 0.0
  %431 = vmatprep.subr.mxu0 0.0
  %432 = vmatpush2.xpose.msra.mxu0 0.0
  %433 = vmatprep.subr.mxu0 0.0
  %434 = vmatpush2.xpose.msra.mxu0 0.0
  %435 = vmatprep.subr.mxu0 0.0
  %436 = vmatpush2.xpose.msra.mxu0 0.0
  %437 = vmatprep.subr.mxu0 0.0
  %438 = vmatpush2.xpose.msra.mxu0 0.0
  %439 = vmatprep.subr.mxu0 0.0
  %440 = vmatpush2.xpose.msra.mxu0 0.0
  %441 = vmatprep.subr.mxu0 0.0
  %442 = vmatpush2.xpose.msra.mxu0 0.0
  %443 = vmatprep.subr.mxu0 0.0
  %444 = vmatpush2.xpose.msra.mxu0 0.0
  %445 = vmatprep.subr.mxu0 0.0
  %446 = vmatpush2.xpose.msra.mxu0 0.0
  %447 = vmatprep.subr.mxu0 0.0
  %448 = vmatpush2.xpose.msra.mxu0 0.0
  %449 = vmatprep.subr.mxu0 0.0
  %450 = vmatpush2.xpose.msra.mxu0 0.0
  %451 = vmatprep.subr.mxu0 0.0
  %452 = vmatpush2.xpose.msra.mxu0 0.0
  %453 = vmatprep.mubr.f32.mxu0 0.0
  %454 = vmatmul.mubr.f32.gmra.mxu0 %v383
  %v455 = vpop.f32.mrf.mxu0
  %v456 = vadd.f32 0.0, %v455
  %v457 = vpop.f32.mrf.mxu0
  %458 = vmatprep.mubr.f32.mxu0 0.0
  %459 = vmatmul.mubr.f32.gmra.mxu0 %v385
  %v460 = vpop.f32.mrf.mxu0
  %v461 = vadd.f32 0.0, %v460
  %v462 = vpop.f32.mrf.mxu0
  %463 = vdwg.mxu0
  %v464 = vmul.f32 %v456, 0.25
  %v465 = vmul.f32 %v461, 0.25
  %v466 = vsel %vm46, %v464, -inf
  %v467 = vsel %vm46, %v465, -inf
  %v468 = vsel %vm205, %v466, -inf
  %469 = vmax.xlane.f32.xlu0 %v468
  %v470 = vpop.xlane.xlu0 %469
  %v471 = vsel %vm205, %v467, -inf
  %472 = vmax.xlane.f32.xlu0 %v471
  %v473 = vpop.xlane.xlu0 %472
  %v474 = vsub.f32 %v466, %v470
  %v475 = vsub.f32 %v467, %v473
  %v476 = vmul.f32 %v474, 1.442695
  %v477 = vpow.pop %v476
  %v478 = vmul.f32 %v475, 1.442695
  %v479 = vpow.pop %v478
  %v480 = vsel %vm205, %v477, 0.0
  %481 = vadd.xlane.f32.xlu0 %v480
  %v482 = vpop.xlane.xlu0 %481
  %v483 = vsel %vm205, %v479, 0.0
  %484 = vadd.xlane.f32.xlu0 %v483
  %v485 = vpop.xlane.xlu0 %484
  %v486 = vrcp.pop %v482
  %v487 = vrcp.pop %v485
  %v488 = vmul.f32 %v477, %v486
  %v489 = vmul.f32 %v479, %v487
  %490 = vrot.lane.b32.xlu0 %v36, 16
  %v491 = vpop.permute.xlu0 %490
  %v494 = vsel %vm205, %v488, 0
  %v497 = vsel %vm205, %v489, 0
  %499 = vmatprep.subr.mxu0 0.0
  %500 = vmatpush1.msra.mxu0 0.0
  %501 = vmatprep.subr.mxu0 0.0
  %502 = vmatpush1.msra.mxu0 0.0
  %503 = vmatprep.subr.mxu0 0.0
  %504 = vmatpush1.msra.mxu0 0.0
  %505 = vmatprep.subr.mxu0 0.0
  %506 = vmatpush1.msra.mxu0 0.0
  %507 = vmatprep.subr.mxu0 0.0
  %508 = vmatpush1.msra.mxu0 0.0
  %509 = vmatprep.subr.mxu0 0.0
  %510 = vmatpush1.msra.mxu0 0.0
  %511 = vmatprep.subr.mxu0 0.0
  %512 = vmatpush1.msra.mxu0 0.0
  %513 = vmatprep.subr.mxu0 0.0
  %514 = vmatpush1.msra.mxu0 0.0
  %515 = vmatprep.subr.mxu0 0.0
  %516 = vmatpush1.msra.mxu0 0.0
  %517 = vmatprep.subr.mxu0 0.0
  %518 = vmatpush1.msra.mxu0 0.0
  %519 = vmatprep.subr.mxu0 0.0
  %520 = vmatpush1.msra.mxu0 0.0
  %521 = vmatprep.subr.mxu0 0.0
  %522 = vmatpush1.msra.mxu0 0.0
  %523 = vmatprep.subr.mxu0 0.0
  %524 = vmatpush1.msra.mxu0 0.0
  %525 = vmatprep.subr.mxu0 0.0
  %526 = vmatpush1.msra.mxu0 0.0
  %527 = vmatprep.subr.mxu0 0.0
  %528 = vmatpush1.msra.mxu0 0.0
  %529 = vmatprep.subr.mxu0 0.0
  %530 = vmatpush1.msra.mxu0 %v491
  %531 = vmatprep.subr.mxu0 0.0
  %532 = vmatpush2.msra.mxu0 0.0
  %533 = vmatprep.subr.mxu0 0.0
  %534 = vmatpush2.msra.mxu0 0.0
  %535 = vmatprep.subr.mxu0 0.0
  %536 = vmatpush2.msra.mxu0 0.0
  %537 = vmatprep.subr.mxu0 0.0
  %538 = vmatpush2.msra.mxu0 0.0
  %539 = vmatprep.subr.mxu0 0.0
  %540 = vmatpush2.msra.mxu0 0.0
  %541 = vmatprep.subr.mxu0 0.0
  %542 = vmatpush2.msra.mxu0 0.0
  %543 = vmatprep.subr.mxu0 0.0
  %544 = vmatpush2.msra.mxu0 0.0
  %545 = vmatprep.subr.mxu0 0.0
  %546 = vmatpush2.msra.mxu0 0.0
  %547 = vmatprep.subr.mxu0 0.0
  %548 = vmatpush2.msra.mxu0 0.0
  %549 = vmatprep.subr.mxu0 0.0
  %550 = vmatpush2.msra.mxu0 0.0
  %551 = vmatprep.subr.mxu0 0.0
  %552 = vmatpush2.msra.mxu0 0.0
  %553 = vmatprep.subr.mxu0 0.0
  %554 = vmatpush2.msra.mxu0 0.0
  %555 = vmatprep.subr.mxu0 0.0
  %556 = vmatpush2.msra.mxu0 0.0
  %557 = vmatprep.subr.mxu0 0.0
  %558 = vmatpush2.msra.mxu0 0.0
  %559 = vmatprep.subr.mxu0 0.0
  %560 = vmatpush2.msra.mxu0 0.0
  %561 = vmatprep.subr.mxu0 0.0
  %562 = vmatpush2.msra.mxu0 0.0
  %563 = vmatprep.mubr.f32.mxu0 0.0
  %564 = vmatmul.mubr.f32.gmra.mxu0 %v494
  %v565 = vpop.f32.mrf.mxu0
  %v566 = vadd.f32 0.0, %v565
  %v567 = vpop.f32.mrf.mxu0
  %568 = vmatprep.mubr.f32.mxu0 0.0
  %569 = vmatmul.mubr.f32.gmra.mxu0 %v497
  %v570 = vpop.f32.mrf.mxu0
  %v571 = vadd.f32 0.0, %v570
  %v572 = vpop.f32.mrf.mxu0
  %573 = vdwg.mxu0
  %575 = vrot.lane.b32.xlu0 %v309, 16
  %v576 = vpop.permute.xlu0 %575
  %579 = vrot.lane.b32.xlu0 %v566, 32
  %v580 = vpop.permute.xlu0 %579
  %583 = vrot.lane.b32.xlu0 %v571, 48
  %v584 = vpop.permute.xlu0 %583
  %v586 = vsel %vm118, %v304, %v576
  %vm587 = vcmask 261120
  %v588 = vsel %vm587, %v586, %v580
  %vm589 = vcmask 392192
  %v590 = vsel %vm589, %v588, %v584
  %v591 = vmul.f32 %v37, %v49
  %593 = vrot.lane.b32.xlu0 %v37, 64
  %v594 = vpop.permute.xlu0 %593
  %596 = vrot.lane.b32.xlu0 %v594, 16
  %v597 = vpop.permute.xlu0 %596
  %v598 = vsel %vm56, %v597, %v594
  %599 = vrot.lane.b32.xlu0 %v598, 16
  %v600 = vpop.permute.xlu0 %599
  %v601 = vsel %vm56, %v600, %v594
  %v602 = vmul.f32 %v601, %v65
  %v603 = vmul.f32 %v602, %v70
  %605 = vrot.lane.b32.xlu0 %v603, 56
  %v606 = vpop.permute.xlu0 %605
  %v608 = vadd.f32 %v591, %v606
  %v609 = vmul.f32 %v37, %v38
  %610 = vrot.lane.b32.xlu0 %v37, 16
  %v611 = vpop.permute.xlu0 %610
  %v612 = vsel %vm56, %v611, %v37
  %613 = vrot.lane.b32.xlu0 %v612, 16
  %v614 = vpop.permute.xlu0 %613
  %v615 = vsel %vm56, %v614, %v37
  %v616 = vmul.f32 %v615, %v65
  %v617 = vmul.f32 %v616, %v70
  %619 = vrot.lane.b32.xlu0 %v617, 120
  %v620 = vpop.permute.xlu0 %619
  %v622 = vadd.f32 %v609, %v620
  %v623 = vmul.f32 %v37, %v93
  %624 = vrot.lane.b32.xlu0 %v37, 112
  %v625 = vpop.permute.xlu0 %624
  %627 = vrot.lane.b32.xlu0 %v625, 16
  %v628 = vpop.permute.xlu0 %627
  %v629 = vsel %vm56, %v628, %v625
  %630 = vrot.lane.b32.xlu0 %v629, 16
  %v631 = vpop.permute.xlu0 %630
  %v632 = vsel %vm56, %v631, %v625
  %v633 = vmul.f32 %v632, %v65
  %v634 = vmul.f32 %v633, %v70
  %636 = vrot.lane.b32.xlu0 %v634, 8
  %v637 = vpop.permute.xlu0 %636
  %v639 = vadd.f32 %v623, %v637
  %641 = vrot.lane.b32.xlu0 %v639, 112
  %v642 = vpop.permute.xlu0 %641
  %644 = vrot.lane.b32.xlu0 %v608, 64
  %v645 = vpop.permute.xlu0 %644
  %v647 = vsel %vm118, %v622, 0
  %v649 = vsel %vm118, %v642, 0
  %v651 = vsel %vm118, %v645, 0
  %653 = vmatprep.subr.mxu0 0.0
  %654 = vmatpush1.xpose.msra.mxu0 0.0
  %655 = vmatprep.subr.mxu0 0.0
  %656 = vmatpush1.xpose.msra.mxu0 0.0
  %657 = vmatprep.subr.mxu0 0.0
  %658 = vmatpush1.xpose.msra.mxu0 0.0
  %659 = vmatprep.subr.mxu0 0.0
  %660 = vmatpush1.xpose.msra.mxu0 0.0
  %661 = vmatprep.subr.mxu0 0.0
  %662 = vmatpush1.xpose.msra.mxu0 0.0
  %663 = vmatprep.subr.mxu0 0.0
  %664 = vmatpush1.xpose.msra.mxu0 0.0
  %665 = vmatprep.subr.mxu0 0.0
  %666 = vmatpush1.xpose.msra.mxu0 0.0
  %667 = vmatprep.subr.mxu0 0.0
  %668 = vmatpush1.xpose.msra.mxu0 0.0
  %669 = vmatprep.subr.mxu0 0.0
  %670 = vmatpush1.xpose.msra.mxu0 0.0
  %671 = vmatprep.subr.mxu0 0.0
  %672 = vmatpush1.xpose.msra.mxu0 0.0
  %673 = vmatprep.subr.mxu0 0.0
  %674 = vmatpush1.xpose.msra.mxu0 0.0
  %675 = vmatprep.subr.mxu0 0.0
  %676 = vmatpush1.xpose.msra.mxu0 0.0
  %677 = vmatprep.subr.mxu0 0.0
  %678 = vmatpush1.xpose.msra.mxu0 0.0
  %679 = vmatprep.subr.mxu0 0.0
  %680 = vmatpush1.xpose.msra.mxu0 0.0
  %681 = vmatprep.subr.mxu0 0.0
  %682 = vmatpush1.xpose.msra.mxu0 0.0
  %683 = vmatprep.subr.mxu0 0.0
  %684 = vmatpush1.xpose.msra.mxu0 %v651
  %685 = vmatprep.subr.mxu0 0.0
  %686 = vmatpush2.xpose.msra.mxu0 0.0
  %687 = vmatprep.subr.mxu0 0.0
  %688 = vmatpush2.xpose.msra.mxu0 0.0
  %689 = vmatprep.subr.mxu0 0.0
  %690 = vmatpush2.xpose.msra.mxu0 0.0
  %691 = vmatprep.subr.mxu0 0.0
  %692 = vmatpush2.xpose.msra.mxu0 0.0
  %693 = vmatprep.subr.mxu0 0.0
  %694 = vmatpush2.xpose.msra.mxu0 0.0
  %695 = vmatprep.subr.mxu0 0.0
  %696 = vmatpush2.xpose.msra.mxu0 0.0
  %697 = vmatprep.subr.mxu0 0.0
  %698 = vmatpush2.xpose.msra.mxu0 0.0
  %699 = vmatprep.subr.mxu0 0.0
  %700 = vmatpush2.xpose.msra.mxu0 0.0
  %701 = vmatprep.subr.mxu0 0.0
  %702 = vmatpush2.xpose.msra.mxu0 0.0
  %703 = vmatprep.subr.mxu0 0.0
  %704 = vmatpush2.xpose.msra.mxu0 0.0
  %705 = vmatprep.subr.mxu0 0.0
  %706 = vmatpush2.xpose.msra.mxu0 0.0
  %707 = vmatprep.subr.mxu0 0.0
  %708 = vmatpush2.xpose.msra.mxu0 0.0
  %709 = vmatprep.subr.mxu0 0.0
  %710 = vmatpush2.xpose.msra.mxu0 0.0
  %711 = vmatprep.subr.mxu0 0.0
  %712 = vmatpush2.xpose.msra.mxu0 0.0
  %713 = vmatprep.subr.mxu0 0.0
  %714 = vmatpush2.xpose.msra.mxu0 0.0
  %715 = vmatprep.subr.mxu0 0.0
  %716 = vmatpush2.xpose.msra.mxu0 0.0
  %717 = vmatprep.mubr.f32.mxu0 0.0
  %718 = vmatmul.mubr.f32.gmra.mxu0 %v647
  %v719 = vpop.f32.mrf.mxu0
  %v720 = vadd.f32 0.0, %v719
  %v721 = vpop.f32.mrf.mxu0
  %722 = vmatprep.mubr.f32.mxu0 0.0
  %723 = vmatmul.mubr.f32.gmra.mxu0 %v649
  %v724 = vpop.f32.mrf.mxu0
  %v725 = vadd.f32 0.0, %v724
  %v726 = vpop.f32.mrf.mxu0
  %727 = vdwg.mxu0
  %v728 = vmul.f32 %v720, 0.25
  %v729 = vmul.f32 %v725, 0.25
  %v730 = vsel %vm46, %v728, -inf
  %v731 = vsel %vm46, %v729, -inf
  %v732 = vsel %vm205, %v730, -inf
  %733 = vmax.xlane.f32.xlu0 %v732
  %v734 = vpop.xlane.xlu0 %733
  %v735 = vsel %vm205, %v731, -inf
  %736 = vmax.xlane.f32.xlu0 %v735
  %v737 = vpop.xlane.xlu0 %736
  %v738 = vsub.f32 %v730, %v734
  %v739 = vsub.f32 %v731, %v737
  %v740 = vmul.f32 %v738, 1.442695
  %v741 = vpow.pop %v740
  %v742 = vmul.f32 %v739, 1.442695
  %v743 = vpow.pop %v742
  %v744 = vsel %vm205, %v741, 0.0
  %745 = vadd.xlane.f32.xlu0 %v744
  %v746 = vpop.xlane.xlu0 %745
  %v747 = vsel %vm205, %v743, 0.0
  %748 = vadd.xlane.f32.xlu0 %v747
  %v749 = vpop.xlane.xlu0 %748
  %v750 = vrcp.pop %v746
  %v751 = vrcp.pop %v749
  %v752 = vmul.f32 %v741, %v750
  %v753 = vmul.f32 %v743, %v751
  %754 = vrot.lane.b32.xlu0 %v37, 32
  %v755 = vpop.permute.xlu0 %754
  %v758 = vsel %vm205, %v752, 0
  %v761 = vsel %vm205, %v753, 0
  %763 = vmatprep.subr.mxu0 0.0
  %764 = vmatpush1.msra.mxu0 0.0
  %765 = vmatprep.subr.mxu0 0.0
  %766 = vmatpush1.msra.mxu0 0.0
  %767 = vmatprep.subr.mxu0 0.0
  %768 = vmatpush1.msra.mxu0 0.0
  %769 = vmatprep.subr.mxu0 0.0
  %770 = vmatpush1.msra.mxu0 0.0
  %771 = vmatprep.subr.mxu0 0.0
  %772 = vmatpush1.msra.mxu0 0.0
  %773 = vmatprep.subr.mxu0 0.0
  %774 = vmatpush1.msra.mxu0 0.0
  %775 = vmatprep.subr.mxu0 0.0
  %776 = vmatpush1.msra.mxu0 0.0
  %777 = vmatprep.subr.mxu0 0.0
  %778 = vmatpush1.msra.mxu0 0.0
  %779 = vmatprep.subr.mxu0 0.0
  %780 = vmatpush1.msra.mxu0 0.0
  %781 = vmatprep.subr.mxu0 0.0
  %782 = vmatpush1.msra.mxu0 0.0
  %783 = vmatprep.subr.mxu0 0.0
  %784 = vmatpush1.msra.mxu0 0.0
  %785 = vmatprep.subr.mxu0 0.0
  %786 = vmatpush1.msra.mxu0 0.0
  %787 = vmatprep.subr.mxu0 0.0
  %788 = vmatpush1.msra.mxu0 0.0
  %789 = vmatprep.subr.mxu0 0.0
  %790 = vmatpush1.msra.mxu0 0.0
  %791 = vmatprep.subr.mxu0 0.0
  %792 = vmatpush1.msra.mxu0 0.0
  %793 = vmatprep.subr.mxu0 0.0
  %794 = vmatpush1.msra.mxu0 %v755
  %795 = vmatprep.subr.mxu0 0.0
  %796 = vmatpush2.msra.mxu0 0.0
  %797 = vmatprep.subr.mxu0 0.0
  %798 = vmatpush2.msra.mxu0 0.0
  %799 = vmatprep.subr.mxu0 0.0
  %800 = vmatpush2.msra.mxu0 0.0
  %801 = vmatprep.subr.mxu0 0.0
  %802 = vmatpush2.msra.mxu0 0.0
  %803 = vmatprep.subr.mxu0 0.0
  %804 = vmatpush2.msra.mxu0 0.0
  %805 = vmatprep.subr.mxu0 0.0
  %806 = vmatpush2.msra.mxu0 0.0
  %807 = vmatprep.subr.mxu0 0.0
  %808 = vmatpush2.msra.mxu0 0.0
  %809 = vmatprep.subr.mxu0 0.0
  %810 = vmatpush2.msra.mxu0 0.0
  %811 = vmatprep.subr.mxu0 0.0
  %812 = vmatpush2.msra.mxu0 0.0
  %813 = vmatprep.subr.mxu0 0.0
  %814 = vmatpush2.msra.mxu0 0.0
  %815 = vmatprep.subr.mxu0 0.0
  %816 = vmatpush2.msra.mxu0 0.0
  %817 = vmatprep.subr.mxu0 0.0
  %818 = vmatpush2.msra.mxu0 0.0
  %819 = vmatprep.subr.mxu0 0.0
  %820 = vmatpush2.msra.mxu0 0.0
  %821 = vmatprep.subr.mxu0 0.0
  %822 = vmatpush2.msra.mxu0 0.0
  %823 = vmatprep.subr.mxu0 0.0
  %824 = vmatpush2.msra.mxu0 0.0
  %825 = vmatprep.subr.mxu0 0.0
  %826 = vmatpush2.msra.mxu0 0.0
  %827 = vmatprep.mubr.f32.mxu0 0.0
  %828 = vmatmul.mubr.f32.gmra.mxu0 %v758
  %v829 = vpop.f32.mrf.mxu0
  %v830 = vadd.f32 0.0, %v829
  %v831 = vpop.f32.mrf.mxu0
  %832 = vmatprep.mubr.f32.mxu0 0.0
  %833 = vmatmul.mubr.f32.gmra.mxu0 %v761
  %v834 = vpop.f32.mrf.mxu0
  %v835 = vadd.f32 0.0, %v834
  %v836 = vpop.f32.mrf.mxu0
  %837 = vdwg.mxu0
  %v838 = vmul.f32 %v37, %v313
  %839 = vrot.lane.b32.xlu0 %v37, 48
  %v840 = vpop.permute.xlu0 %839
  %842 = vrot.lane.b32.xlu0 %v840, 16
  %v843 = vpop.permute.xlu0 %842
  %v844 = vsel %vm56, %v843, %v840
  %845 = vrot.lane.b32.xlu0 %v844, 16
  %v846 = vpop.permute.xlu0 %845
  %v847 = vsel %vm56, %v846, %v840
  %v848 = vmul.f32 %v847, %v65
  %v849 = vmul.f32 %v848, %v70
  %851 = vrot.lane.b32.xlu0 %v849, 72
  %v852 = vpop.permute.xlu0 %851
  %v854 = vadd.f32 %v838, %v852
  %v855 = vmul.f32 %v37, %v333
  %856 = vrot.lane.b32.xlu0 %v37, 96
  %v857 = vpop.permute.xlu0 %856
  %859 = vrot.lane.b32.xlu0 %v857, 16
  %v860 = vpop.permute.xlu0 %859
  %v861 = vsel %vm56, %v860, %v857
  %862 = vrot.lane.b32.xlu0 %v861, 16
  %v863 = vpop.permute.xlu0 %862
  %v864 = vsel %vm56, %v863, %v857
  %v865 = vmul.f32 %v864, %v65
  %v866 = vmul.f32 %v865, %v70
  %868 = vrot.lane.b32.xlu0 %v866, 24
  %v869 = vpop.permute.xlu0 %868
  %v871 = vadd.f32 %v855, %v869
  %v872 = vmul.f32 %v37, %v353
  %873 = vrot.lane.b32.xlu0 %v37, 80
  %v874 = vpop.permute.xlu0 %873
  %876 = vrot.lane.b32.xlu0 %v874, 16
  %v877 = vpop.permute.xlu0 %876
  %v878 = vsel %vm56, %v877, %v874
  %879 = vrot.lane.b32.xlu0 %v878, 16
  %v880 = vpop.permute.xlu0 %879
  %v881 = vsel %vm56, %v880, %v874
  %v882 = vmul.f32 %v881, %v65
  %v883 = vmul.f32 %v882, %v70
  %885 = vrot.lane.b32.xlu0 %v883, 40
  %v886 = vpop.permute.xlu0 %885
  %v888 = vadd.f32 %v872, %v886
  %890 = vrot.lane.b32.xlu0 %v888, 112
  %v891 = vpop.permute.xlu0 %890
  %893 = vrot.lane.b32.xlu0 %v871, 96
  %v894 = vpop.permute.xlu0 %893
  %895 = vrot.lane.b32.xlu0 %v891, 96
  %v896 = vpop.permute.xlu0 %895
  %898 = vrot.lane.b32.xlu0 %v854, 48
  %v899 = vpop.permute.xlu0 %898
  %v900 = vsel %vm118, %v894, 0
  %v902 = vsel %vm118, %v896, 0
  %v904 = vsel %vm118, %v899, 0
  %906 = vmatprep.subr.mxu0 0.0
  %907 = vmatpush1.xpose.msra.mxu0 0.0
  %908 = vmatprep.subr.mxu0 0.0
  %909 = vmatpush1.xpose.msra.mxu0 0.0
  %910 = vmatprep.subr.mxu0 0.0
  %911 = vmatpush1.xpose.msra.mxu0 0.0
  %912 = vmatprep.subr.mxu0 0.0
  %913 = vmatpush1.xpose.msra.mxu0 0.0
  %914 = vmatprep.subr.mxu0 0.0
  %915 = vmatpush1.xpose.msra.mxu0 0.0
  %916 = vmatprep.subr.mxu0 0.0
  %917 = vmatpush1.xpose.msra.mxu0 0.0
  %918 = vmatprep.subr.mxu0 0.0
  %919 = vmatpush1.xpose.msra.mxu0 0.0
  %920 = vmatprep.subr.mxu0 0.0
  %921 = vmatpush1.xpose.msra.mxu0 0.0
  %922 = vmatprep.subr.mxu0 0.0
  %923 = vmatpush1.xpose.msra.mxu0 0.0
  %924 = vmatprep.subr.mxu0 0.0
  %925 = vmatpush1.xpose.msra.mxu0 0.0
  %926 = vmatprep.subr.mxu0 0.0
  %927 = vmatpush1.xpose.msra.mxu0 0.0
  %928 = vmatprep.subr.mxu0 0.0
  %929 = vmatpush1.xpose.msra.mxu0 0.0
  %930 = vmatprep.subr.mxu0 0.0
  %931 = vmatpush1.xpose.msra.mxu0 0.0
  %932 = vmatprep.subr.mxu0 0.0
  %933 = vmatpush1.xpose.msra.mxu0 0.0
  %934 = vmatprep.subr.mxu0 0.0
  %935 = vmatpush1.xpose.msra.mxu0 0.0
  %936 = vmatprep.subr.mxu0 0.0
  %937 = vmatpush1.xpose.msra.mxu0 %v904
  %938 = vmatprep.subr.mxu0 0.0
  %939 = vmatpush2.xpose.msra.mxu0 0.0
  %940 = vmatprep.subr.mxu0 0.0
  %941 = vmatpush2.xpose.msra.mxu0 0.0
  %942 = vmatprep.subr.mxu0 0.0
  %943 = vmatpush2.xpose.msra.mxu0 0.0
  %944 = vmatprep.subr.mxu0 0.0
  %945 = vmatpush2.xpose.msra.mxu0 0.0
  %946 = vmatprep.subr.mxu0 0.0
  %947 = vmatpush2.xpose.msra.mxu0 0.0
  %948 = vmatprep.subr.mxu0 0.0
  %949 = vmatpush2.xpose.msra.mxu0 0.0
  %950 = vmatprep.subr.mxu0 0.0
  %951 = vmatpush2.xpose.msra.mxu0 0.0
  %952 = vmatprep.subr.mxu0 0.0
  %953 = vmatpush2.xpose.msra.mxu0 0.0
  %954 = vmatprep.subr.mxu0 0.0
  %955 = vmatpush2.xpose.msra.mxu0 0.0
  %956 = vmatprep.subr.mxu0 0.0
  %957 = vmatpush2.xpose.msra.mxu0 0.0
  %958 = vmatprep.subr.mxu0 0.0
  %959 = vmatpush2.xpose.msra.mxu0 0.0
  %960 = vmatprep.subr.mxu0 0.0
  %961 = vmatpush2.xpose.msra.mxu0 0.0
  %962 = vmatprep.subr.mxu0 0.0
  %963 = vmatpush2.xpose.msra.mxu0 0.0
  %964 = vmatprep.subr.mxu0 0.0
  %965 = vmatpush2.xpose.msra.mxu0 0.0
  %966 = vmatprep.subr.mxu0 0.0
  %967 = vmatpush2.xpose.msra.mxu0 0.0
  %968 = vmatprep.subr.mxu0 0.0
  %969 = vmatpush2.xpose.msra.mxu0 0.0
  %970 = vmatprep.mubr.f32.mxu0 0.0
  %971 = vmatmul.mubr.f32.gmra.mxu0 %v900
  %v972 = vpop.f32.mrf.mxu0
  %v973 = vadd.f32 0.0, %v972
  %v974 = vpop.f32.mrf.mxu0
  %975 = vmatprep.mubr.f32.mxu0 0.0
  %976 = vmatmul.mubr.f32.gmra.mxu0 %v902
  %v977 = vpop.f32.mrf.mxu0
  %v978 = vadd.f32 0.0, %v977
  %v979 = vpop.f32.mrf.mxu0
  %980 = vdwg.mxu0
  %v981 = vmul.f32 %v973, 0.25
  %v982 = vmul.f32 %v978, 0.25
  %v983 = vsel %vm46, %v981, -inf
  %v984 = vsel %vm46, %v982, -inf
  %v985 = vsel %vm205, %v983, -inf
  %986 = vmax.xlane.f32.xlu0 %v985
  %v987 = vpop.xlane.xlu0 %986
  %v988 = vsel %vm205, %v984, -inf
  %989 = vmax.xlane.f32.xlu0 %v988
  %v990 = vpop.xlane.xlu0 %989
  %v991 = vsub.f32 %v983, %v987
  %v992 = vsub.f32 %v984, %v990
  %v993 = vmul.f32 %v991, 1.442695
  %v994 = vpow.pop %v993
  %v995 = vmul.f32 %v992, 1.442695
  %v996 = vpow.pop %v995
  %v997 = vsel %vm205, %v994, 0.0
  %998 = vadd.xlane.f32.xlu0 %v997
  %v999 = vpop.xlane.xlu0 %998
  %v1000 = vsel %vm205, %v996, 0.0
  %1001 = vadd.xlane.f32.xlu0 %v1000
  %v1002 = vpop.xlane.xlu0 %1001
  %v1003 = vrcp.pop %v999
  %v1004 = vrcp.pop %v1002
  %v1005 = vmul.f32 %v994, %v1003
  %v1006 = vmul.f32 %v996, %v1004
  %1007 = vrot.lane.b32.xlu0 %v37, 16
  %v1008 = vpop.permute.xlu0 %1007
  %v1011 = vsel %vm205, %v1005, 0
  %v1014 = vsel %vm205, %v1006, 0
  %1016 = vmatprep.subr.mxu0 0.0
  %1017 = vmatpush1.msra.mxu0 0.0
  %1018 = vmatprep.subr.mxu0 0.0
  %1019 = vmatpush1.msra.mxu0 0.0
  %1020 = vmatprep.subr.mxu0 0.0
  %1021 = vmatpush1.msra.mxu0 0.0
  %1022 = vmatprep.subr.mxu0 0.0
  %1023 = vmatpush1.msra.mxu0 0.0
  %1024 = vmatprep.subr.mxu0 0.0
  %1025 = vmatpush1.msra.mxu0 0.0
  %1026 = vmatprep.subr.mxu0 0.0
  %1027 = vmatpush1.msra.mxu0 0.0
  %1028 = vmatprep.subr.mxu0 0.0
  %1029 = vmatpush1.msra.mxu0 0.0
  %1030 = vmatprep.subr.mxu0 0.0
  %1031 = vmatpush1.msra.mxu0 0.0
  %1032 = vmatprep.subr.mxu0 0.0
  %1033 = vmatpush1.msra.mxu0 0.0
  %1034 = vmatprep.subr.mxu0 0.0
  %1035 = vmatpush1.msra.mxu0 0.0
  %1036 = vmatprep.subr.mxu0 0.0
  %1037 = vmatpush1.msra.mxu0 0.0
  %1038 = vmatprep.subr.mxu0 0.0
  %1039 = vmatpush1.msra.mxu0 0.0
  %1040 = vmatprep.subr.mxu0 0.0
  %1041 = vmatpush1.msra.mxu0 0.0
  %1042 = vmatprep.subr.mxu0 0.0
  %1043 = vmatpush1.msra.mxu0 0.0
  %1044 = vmatprep.subr.mxu0 0.0
  %1045 = vmatpush1.msra.mxu0 0.0
  %1046 = vmatprep.subr.mxu0 0.0
  %1047 = vmatpush1.msra.mxu0 %v1008
  %1048 = vmatprep.subr.mxu0 0.0
  %1049 = vmatpush2.msra.mxu0 0.0
  %1050 = vmatprep.subr.mxu0 0.0
  %1051 = vmatpush2.msra.mxu0 0.0
  %1052 = vmatprep.subr.mxu0 0.0
  %1053 = vmatpush2.msra.mxu0 0.0
  %1054 = vmatprep.subr.mxu0 0.0
  %1055 = vmatpush2.msra.mxu0 0.0
  %1056 = vmatprep.subr.mxu0 0.0
  %1057 = vmatpush2.msra.mxu0 0.0
  %1058 = vmatprep.subr.mxu0 0.0
  %1059 = vmatpush2.msra.mxu0 0.0
  %1060 = vmatprep.subr.mxu0 0.0
  %1061 = vmatpush2.msra.mxu0 0.0
  %1062 = vmatprep.subr.mxu0 0.0
  %1063 = vmatpush2.msra.mxu0 0.0
  %1064 = vmatprep.subr.mxu0 0.0
  %1065 = vmatpush2.msra.mxu0 0.0
  %1066 = vmatprep.subr.mxu0 0.0
  %1067 = vmatpush2.msra.mxu0 0.0
  %1068 = vmatprep.subr.mxu0 0.0
  %1069 = vmatpush2.msra.mxu0 0.0
  %1070 = vmatprep.subr.mxu0 0.0
  %1071 = vmatpush2.msra.mxu0 0.0
  %1072 = vmatprep.subr.mxu0 0.0
  %1073 = vmatpush2.msra.mxu0 0.0
  %1074 = vmatprep.subr.mxu0 0.0
  %1075 = vmatpush2.msra.mxu0 0.0
  %1076 = vmatprep.subr.mxu0 0.0
  %1077 = vmatpush2.msra.mxu0 0.0
  %1078 = vmatprep.subr.mxu0 0.0
  %1079 = vmatpush2.msra.mxu0 0.0
  %1080 = vmatprep.mubr.f32.mxu0 0.0
  %1081 = vmatmul.mubr.f32.gmra.mxu0 %v1011
  %v1082 = vpop.f32.mrf.mxu0
  %v1083 = vadd.f32 0.0, %v1082
  %v1084 = vpop.f32.mrf.mxu0
  %1085 = vmatprep.mubr.f32.mxu0 0.0
  %1086 = vmatmul.mubr.f32.gmra.mxu0 %v1014
  %v1087 = vpop.f32.mrf.mxu0
  %v1088 = vadd.f32 0.0, %v1087
  %v1089 = vpop.f32.mrf.mxu0
  %1090 = vdwg.mxu0
  %1092 = vrot.lane.b32.xlu0 %v835, 16
  %v1093 = vpop.permute.xlu0 %1092
  %1096 = vrot.lane.b32.xlu0 %v1083, 32
  %v1097 = vpop.permute.xlu0 %1096
  %1100 = vrot.lane.b32.xlu0 %v1088, 48
  %v1101 = vpop.permute.xlu0 %1100
  %v1103 = vsel %vm118, %v830, %v1093
  %v1104 = vsel %vm587, %v1103, %v1097
  %v1105 = vsel %vm589, %v1104, %v1101
  %v1106 = vpack.c.bf16 %v1105, %v590
  %v1107 = vld [vmem:[%s4] sm:$0xf]
  %v1108 = vld [vmem:[%s4 + $0x4] sm:$0xf]
  %v1109 = vld [vmem:[%s4 + $0x8] sm:$0xf]
  %v1110 = vld [vmem:[%s4 + $0xc] sm:$0xf]
  %v1111 = vld [vmem:[%s4 + $0x10] sm:$0xf]
  %v1112 = vld [vmem:[%s4 + $0x14] sm:$0xf]
  %v1113 = vld [vmem:[%s4 + $0x18] sm:$0xf]
  %v1114 = vld [vmem:[%s4 + $0x1c] sm:$0xf]
  %v1115 = vld [vmem:[%s5] sm:$0x1]
  %v1117 = vlaneseq
  %v1118 = vshrl.u32 %v1117, 7
  %v1119 = vsub.s32 0, %v1118
  %v1120 = vrot.slane %v1115, %v1119
  %v1130 = vunpack.c.l.b16 %v1107
  %v1131 = vunpack.c.l.b16 %v1108
  %v1132 = vunpack.c.l.b16 %v1109
  %v1133 = vunpack.c.l.b16 %v1110
  %v1134 = vunpack.c.l.b16 %v1111
  %v1135 = vunpack.c.l.b16 %v1112
  %v1136 = vunpack.c.l.b16 %v1113
  %v1137 = vunpack.c.l.b16 %v1114
  %v1138 = vpack.c.b16 %v1131, %v1130
  %v1139 = vpack.c.b16 %v1133, %v1132
  %v1140 = vpack.c.b16 %v1135, %v1134
  %v1141 = vpack.c.b16 %v1137, %v1136
  %vm1146 = vcmask 523264
  %v1148 = vsel %vm1146, %v1106, 0
  %1150 = vmatprep.subr.bf16.mxu0 0
  %1151 = vmatpush1.bf16.msra.mxu0 0
  %1152 = vmatprep.subr.bf16.mxu0 0
  %1153 = vmatpush1.bf16.msra.mxu0 0
  %1154 = vmatprep.subr.bf16.mxu0 0
  %1155 = vmatpush1.bf16.msra.mxu0 0
  %1156 = vmatprep.subr.bf16.mxu0 0
  %1157 = vmatpush1.bf16.msra.mxu0 0
  %1158 = vmatprep.subr.bf16.mxu0 0
  %1159 = vmatpush1.bf16.msra.mxu0 %v1141
  %1160 = vmatprep.subr.bf16.mxu0 0
  %1161 = vmatpush1.bf16.msra.mxu0 %v1140
  %1162 = vmatprep.subr.bf16.mxu0 0
  %1163 = vmatpush1.bf16.msra.mxu0 %v1139
  %1164 = vmatprep.subr.bf16.mxu0 0
  %1165 = vmatpush1.bf16.msra.mxu0 %v1138
  %1166 = vmatprep.subr.bf16.mxu0 0
  %1167 = vmatpush2.bf16.msra.mxu0 0
  %1168 = vmatprep.subr.bf16.mxu0 0
  %1169 = vmatpush2.bf16.msra.mxu0 0
  %1170 = vmatprep.subr.bf16.mxu0 0
  %1171 = vmatpush2.bf16.msra.mxu0 0
  %1172 = vmatprep.subr.bf16.mxu0 0
  %1173 = vmatpush2.bf16.msra.mxu0 0
  %1174 = vmatprep.subr.bf16.mxu0 0
  %1175 = vmatpush2.bf16.msra.mxu0 0
  %1176 = vmatprep.subr.bf16.mxu0 0
  %1177 = vmatpush2.bf16.msra.mxu0 0
  %1178 = vmatprep.subr.bf16.mxu0 0
  %1179 = vmatpush2.bf16.msra.mxu0 0
  %1180 = vmatprep.subr.bf16.mxu0 0
  %1181 = vmatpush2.bf16.msra.mxu0 0
  %1182 = vmatprep.mubr.bf16.mxu0 0
  %1183 = vmatmul.mubr.bf16.gmra.mxu0 %v1148
  %v1184 = vpop.f32.mrf.mxu0
  %v1185 = vadd.f32 %v1120, %v1184
  %v1186 = vpop.f32.mrf.mxu0
  %v1187 = vpop.f32.mrf.mxu0
  %v1188 = vadd.f32 %v1120, %v1187
  %v1189 = vpop.f32.mrf.mxu0
  %1190 = vdwg.mxu0
  %v1191 = vld [vmem:[%s3] sm:$0xff]
  %v1192 = vld [vmem:[%s3 + $0x8] sm:$0xff]
  %v1193 = vadd.f32 %v1185, %v1191
  %v1194 = vadd.f32 %v1188, %v1192
  %1195 = vst.msk [vmem:[%s9] sm:$0xff] %vm1146, %v1193
  %1196 = vst.msk [vmem:[%s9 + $0x8] sm:$0xff] %vm1146, %v1194
  %v1197 = vsel %vm1146, %v1193, 0.0
  %1198 = vadd.xlane.f32.xlu0 %v1197
  %v1199 = vpop.xlane.xlu0 %1198
  %v1200 = vsel %vm1146, %v1194, 0.0
  %1201 = vadd.xlane.f32.xlu0 %v1200
  %v1202 = vpop.xlane.xlu0 %1201
  %v1203 = vrcp.pop 64.0
  %v1204 = vmul.f32 %v1199, %v1203
  %v1205 = vmul.f32 %v1202, %v1203
  %v1206 = vsub.f32 %v1193, %v1204
  %v1207 = vsub.f32 %v1194, %v1205
  %v1208 = vmul.f32 %v1206, %v1206
  %v1209 = vmul.f32 %v1207, %v1207
  %v1210 = vsel %vm1146, %v1208, 0.0
  %1211 = vadd.xlane.f32.xlu0 %v1210
  %v1212 = vpop.xlane.xlu0 %1211
  %v1213 = vsel %vm1146, %v1209, 0.0
  %1214 = vadd.xlane.f32.xlu0 %v1213
  %v1215 = vpop.xlane.xlu0 %1214
  %v1216 = vmul.f32 %v1212, %v1203
  %v1217 = vmul.f32 %v1215, %v1203
  %v1218 = vadd.f32 %v1216, 1e-05
  %v1219 = vadd.f32 %v1217, 1e-05
  %v1220 = vrsqrt.pop %v1218
  %v1221 = vrsqrt.pop %v1219
  %v1222 = vmul.f32 %v1206, %v1220
  %v1223 = vmul.f32 %v1207, %v1221
  %v1224 = vld [vmem:[%s6] sm:$0x1]
  %v1226 = vlaneseq
  %v1227 = vshrl.u32 %v1226, 7
  %v1228 = vsub.s32 0, %v1227
  %v1229 = vrot.slane %v1224, %v1228
  %v1231 = vmul.f32 %v1222, %v1229
  %v1232 = vmul.f32 %v1223, %v1229
  %v1233 = vld [vmem:[%s7] sm:$0x1]
  %v1235 = vlaneseq
  %v1236 = vshrl.u32 %v1235, 7
  %v1237 = vsub.s32 0, %v1236
  %v1238 = vrot.slane %v1233, %v1237
  %v1240 = vadd.f32 %v1231, %v1238
  %v1241 = vadd.f32 %v1232, %v1238
  %1242 = vst.msk [vmem:[%s10] sm:$0xff] %vm1146, %v1240
  %1243 = vst.msk [vmem:[%s10 + $0x8] sm:$0xff] %vm1146, %v1241
  %v1244 = vpack.c.bf16 %v1241, %v1240
  %v1245 = vld [vmem:[%s8] sm:$0xf]
  %v1246 = vld [vmem:[%s8 + $0x4] sm:$0xf]
  %v1247 = vld [vmem:[%s8 + $0x8] sm:$0xf]
  %v1248 = vld [vmem:[%s8 + $0xc] sm:$0xf]
  %v1249 = vld [vmem:[%s8 + $0x10] sm:$0xf]
  %v1250 = vld [vmem:[%s8 + $0x14] sm:$0xf]
  %v1251 = vld [vmem:[%s8 + $0x18] sm:$0xf]
  %v1252 = vld [vmem:[%s8 + $0x1c] sm:$0xf]
  %v1261 = vunpack.c.l.b16 %v1245
  %v1262 = vunpack.c.l.b16 %v1246
  %v1263 = vunpack.c.l.b16 %v1247
  %v1264 = vunpack.c.l.b16 %v1248
  %v1265 = vunpack.c.l.b16 %v1249
  %v1266 = vunpack.c.l.b16 %v1250
  %v1267 = vunpack.c.l.b16 %v1251
  %v1268 = vunpack.c.l.b16 %v1252
  %v1269 = vpack.c.b16 %v1262, %v1261
  %v1270 = vpack.c.b16 %v1264, %v1263
  %v1271 = vpack.c.b16 %v1266, %v1265
  %v1272 = vpack.c.b16 %v1268, %v1267
  %v1278 = vsel %vm1146, %v1244, 0
  %1280 = vmatprep.subr.bf16.mxu0 0
  %1281 = vmatpush1.bf16.msra.mxu0 0
  %1282 = vmatprep.subr.bf16.mxu0 0
  %1283 = vmatpush1.bf16.msra.mxu0 0
  %1284 = vmatprep.subr.bf16.mxu0 0
  %1285 = vmatpush1.bf16.msra.mxu0 0
  %1286 = vmatprep.subr.bf16.mxu0 0
  %1287 = vmatpush1.bf16.msra.mxu0 0
  %1288 = vmatprep.subr.bf16.mxu0 0
  %1289 = vmatpush1.bf16.msra.mxu0 %v1272
  %1290 = vmatprep.subr.bf16.mxu0 0
  %1291 = vmatpush1.bf16.msra.mxu0 %v1271
  %1292 = vmatprep.subr.bf16.mxu0 0
  %1293 = vmatpush1.bf16.msra.mxu0 %v1270
  %1294 = vmatprep.subr.bf16.mxu0 0
  %1295 = vmatpush1.bf16.msra.mxu0 %v1269
  %1296 = vmatprep.subr.bf16.mxu0 0
  %1297 = vmatpush2.bf16.msra.mxu0 0
  %1298 = vmatprep.subr.bf16.mxu0 0
  %1299 = vmatpush2.bf16.msra.mxu0 0
  %1300 = vmatprep.subr.bf16.mxu0 0
  %1301 = vmatpush2.bf16.msra.mxu0 0
  %1302 = vmatprep.subr.bf16.mxu0 0
  %1303 = vmatpush2.bf16.msra.mxu0 0
  %1304 = vmatprep.subr.bf16.mxu0 0
  %1305 = vmatpush2.bf16.msra.mxu0 0
  %1306 = vmatprep.subr.bf16.mxu0 0
  %1307 = vmatpush2.bf16.msra.mxu0 0
  %1308 = vmatprep.subr.bf16.mxu0 0
  %1309 = vmatpush2.bf16.msra.mxu0 0
  %1310 = vmatprep.subr.bf16.mxu0 0
  %1311 = vmatpush2.bf16.msra.mxu0 0
  %1312 = vmatprep.mubr.bf16.mxu0 0
  %1313 = vmatmul.mubr.bf16.gmra.mxu0 %v1278
  %v1314 = vpop.f32.mrf.mxu0
  %v1315 = vadd.f32 0.0, %v1314
  %v1316 = vpop.f32.mrf.mxu0
  %v1317 = vpop.f32.mrf.mxu0
  %v1318 = vadd.f32 0.0, %v1317
  %v1319 = vpop.f32.mrf.mxu0
  %1320 = vdwg.mxu0
  %vm1321 = vcmask 31744
  %1322 = vst.msk [vmem:[%s11] sm:$0xff] %vm1321, %v1315
  %1323 = vst.msk [vmem:[%s11 + $0x8] sm:$0xff] %vm1321, %v1318
  // Predicated region
  $region38: #{forward.8} parent=0 // pred_check
    _
  $region39: #{forward.8} parent=0 // pred_check_branch
    %1325 = sbr.rel (0) target = $region41
  $region40: #{forward.8} parent=0 // pred_region
    _
  $region41: #{forward.8} parent=0 // pred_fallthru
    _
  // Predicated region
  $region42: #{forward.8} parent=0 // pred_check
    _
  $region43: #{forward.8} parent=0 // pred_check_branch
    %1327 = sbr.rel (0) target = $region45
  $region44: #{forward.8} parent=0 // pred_region
    _
  $region45: #{forward.8} parent=0 // pred_fallthru
    _
  // Predicated region
  $region46: #{forward.8} parent=0 // pred_check
    _
  $region47: #{forward.8} parent=0 // pred_check_branch
    %1329 = sbr.rel (0) target = $region49
  $region48: #{forward.8} parent=0 // pred_region
    _
  $region49: #{forward.8} parent=0 // pred_fallthru
    _
  // Predicated region
  $region50: #{forward.8} parent=0 // pred_check
    _
  $region51: #{forward.8} parent=0 // pred_check_branch
    %1331 = sbr.rel (0) target = $region53
  $region52: #{forward.8} parent=0 // pred_region
    _
  $region53: #{forward.8} parent=0 // pred_fallthru
    _
  // Predicated region
  $region54: #{forward.8} parent=0 // pred_check
    _
  $region55: #{forward.8} parent=0 // pred_check_branch
    %1333 = sbr.rel (0) target = $region57
  $region56: #{forward.8} parent=0 // pred_region
    _
  $region57: #{forward.8} parent=0 // pred_fallthru
    _
  // Predicated region
  $region58: #{forward.8} parent=0 // pred_check
    _
  $region59: #{forward.8} parent=0 // pred_check_branch
    %1335 = sbr.rel (0) target = $region61
  $region60: #{forward.8} parent=0 // pred_region
    _
  $region61: #{forward.8} parent=0 // pred_fallthru
    _

</llo_original>
